<compile_context>
chip_gen: v6e
topology: v6e:2x2x1
jax: 0.10.0
libtpu: 0.0.40
codegen_flags: <defaults>
</compile_context>

<pallas_src>
import numpy as np
import jax
import jax.numpy as jnp
from jax.experimental import pallas as pl
from jax.experimental.pallas import tpu as pltpu


def _cdiv(a, b):
    return -(-a // b)


def make_pair_count_kernel(n_thresh):
    T = n_thresh

    def kernel(prs_i_ref, pos_i_ref, prs_tj_ref, neg_j_ref, cnt_ref, acc_ref):
        i = pl.program_id(1)
        j = pl.program_id(2)
        ni = pl.num_programs(1)
        nj = pl.num_programs(2)

        @pl.when(jnp.logical_and(i == 0, j == 0))
        def _init():
            acc_ref[...] = jnp.zeros_like(acc_ref)

        p_i = prs_i_ref[...]          # (TM, T)  case-side subject tile
        p_tj = prs_tj_ref[...]        # (T, TN)  control-side subject tile (prs^T)
        neg_row = neg_j_ref[...]      # (1, TN)  1.0 where column subject is a control
        pos_col = pos_i_ref[...]      # (TM, 1)  1.0 where row subject is a case

        # Per threshold: fused compare/select against the control mask,
        # lane-reduced to a (TM, 1) column.  Note
        #   w*(2*gt + eq) == where(>, neg, 0) + where(>=, neg, 0),
        # the 0.5 tie credit is folded into the final 0.5/(P*Q) scale, and the
        # case mask is applied only after the lane reduce (no (TM,TN) weight
        # matrix live across the T unroll).
        col_sums = []
        for t in range(T):
            c_col = p_i[:, t:t + 1]                          # (TM, 1)
            c_row = p_tj[t:t + 1, :]                         # (1, TN)
            contrib = (jnp.where(c_col > c_row, neg_row, 0.0)
                       + jnp.where(c_col >= c_row, neg_row, 0.0))
            col_sums.append(jnp.sum(contrib, axis=1, keepdims=True))
        per_row = jnp.concatenate(col_sums, axis=1)          # (TM, T)
        # Single sublane reduce + single accumulator update per grid step.
        acc_ref[...] += jnp.sum(per_row * pos_col, axis=0, keepdims=True)

        @pl.when(jnp.logical_and(i == ni - 1, j == nj - 1))
        def _finalize():
            cnt_ref[0] = acc_ref[...]                        # per-shard (1, T) counts

    return kernel


def pred_gather_kernel(best_ref, prs_tj_ref, pred_ref):
    # Dynamic sublane slice: row `best` of prs^T for this lane tile.
    pred_ref[...] = prs_tj_ref[pl.ds(best_ref[0], 1), :]


def prs_fit_and_evaluate(prs, labels, *, tile_m=256, tile_n=128, row_shards=2):
    """prs: (N, T) float32 scores, labels: (N,) float32 in {0,1}.
    Returns (aucs (1, T), predicts (N, 1, 1))."""
    N, T = prs.shape
    prs = prs.astype(jnp.float32)
    labels = labels.astype(jnp.float32)

    # Row (case/i) side: pad to row_shards * ni * tile_m rows.
    ni = _cdiv(_cdiv(N, row_shards), tile_m)
    n_pad_i = row_shards * ni * tile_m
    # Column (control/j) side: pad to a 128-lane multiple.
    nj = _cdiv(N, tile_n)
    n_pad_j = nj * tile_n

    prs_i = jnp.zeros((n_pad_i, T), jnp.float32).at[:N].set(prs)
    pos_i = jnp.zeros((n_pad_i, 1), jnp.float32).at[:N, 0].set(labels)
    prs_tj = jnp.zeros((T, n_pad_j), jnp.float32).at[:, :N].set(prs.T)
    neg_j = jnp.zeros((1, n_pad_j), jnp.float32).at[0, :N].set(1.0 - labels)

    counts = pl.pallas_call(
        make_pair_count_kernel(T),
        out_shape=jax.ShapeDtypeStruct((row_shards, 1, T), jnp.float32),
        grid=(row_shards, ni, nj),
        in_specs=[
            pl.BlockSpec((tile_m, T), lambda c, i, j: (c * ni + i, 0)),
            pl.BlockSpec((tile_m, 1), lambda c, i, j: (c * ni + i, 0)),
            pl.BlockSpec((T, tile_n), lambda c, i, j: (0, j)),
            pl.BlockSpec((1, tile_n), lambda c, i, j: (0, j)),
        ],
        out_specs=pl.BlockSpec((1, 1, T), lambda c, i, j: (c, 0, 0)),
        scratch_shapes=[pltpu.VMEM((1, T), jnp.float32)],
        compiler_params=pltpu.CompilerParams(
            dimension_semantics=("parallel", "arbitrary", "arbitrary"),
            vmem_limit_bytes=32 * 1024 * 1024),
    )(prs_i, pos_i, prs_tj, neg_j)

    # Tiny epilogue in plain JAX: sum the per-shard partial counts, normalize,
    # first-occurrence argmax (matches np.argmax semantics).
    counts = counts.reshape(row_shards, T).sum(axis=0)        # (T,)
    n_pos = jnp.sum(labels)
    n_neg = jnp.sum(1.0 - labels)
    denom = jnp.maximum(n_pos * n_neg, 1.0)                   # degenerate-label guard
    aucs = (0.5 * counts / denom).reshape(1, T)
    best = jnp.argmax(aucs[0]).astype(jnp.int32).reshape(1)

    # evaluate_data: prediction = best-threshold PRS column, lane-dense gather.
    pred_row = pl.pallas_call(
        pred_gather_kernel,
        out_shape=jax.ShapeDtypeStruct((1, n_pad_j), jnp.float32),
        grid_spec=pltpu.PrefetchScalarGridSpec(
            num_scalar_prefetch=1,
            grid=(nj,),
            in_specs=[pl.BlockSpec((T, tile_n), lambda j, best: (0, j))],
            out_specs=pl.BlockSpec((1, tile_n), lambda j, best: (0, j)),
        ),
        compiler_params=pltpu.CompilerParams(
            dimension_semantics=("parallel",)),
    )(best, prs_tj)

    predicts = pred_row[0, :N].reshape(-1, 1, 1)
    return aucs, predicts


def prs_reference(prs_np, labels_np):
    """Pure-numpy reference: pairwise AUC per threshold (== roc_curve+auc) + argmax."""
    pos = prs_np[labels_np == 1.0]                  # (P, T)
    neg = prs_np[labels_np == 0.0]                  # (Q, T)
    gt = (pos[:, None, :] > neg[None, :, :]).astype(np.float32)
    eq = (pos[:, None, :] == neg[None, :, :]).astype(np.float32)
    aucs = (gt + 0.5 * eq).sum((0, 1)) / (pos.shape[0] * neg.shape[0])
    best = int(np.argmax(aucs))
    pred = prs_np[:, best].reshape(-1, 1, 1)
    return aucs.reshape(1, -1), pred


if __name__ == "__main__":
    # Deterministic synthetic data: N subjects x T p-value thresholds.
    # (The unused `self._ = nn.Linear(1, 1)` placeholder has no compute path.)
    N, T = 32, 8
    key = jax.random.PRNGKey(0)
    k_prs, k_lab = jax.random.split(key)

    prs = jax.random.normal(k_prs, (N, T), dtype=jnp.float32)
    labels = jax.random.bernoulli(k_lab, 0.5, (N,)).astype(jnp.float32)
    labels = labels.at[0].set(1.0).at[1].set(0.0)   # ensure both classes present

    aucs, predicts = prs_fit_and_evaluate(prs, labels)
    jax.block_until_ready((aucs, predicts))

    ref_aucs, ref_pred = prs_reference(np.asarray(prs), np.asarray(labels))
    np.testing.assert_allclose(np.asarray(aucs), ref_aucs, rtol=1e-5, atol=1e-6)
    np.testing.assert_allclose(np.asarray(predicts), ref_pred, rtol=1e-6, atol=1e-6)

    print("KERNEL_OK")
</pallas_src>

<mosaic_0001>
module attributes {stable_mosaic.version = 11 : i64} {
  func.func @kernel(%arg0: i32, %arg1: i32, %arg2: i32, %arg3: memref<256x8xf32, #tpu.memory_space<vmem>>, %arg4: memref<256x1xf32, #tpu.memory_space<vmem>>, %arg5: memref<8x128xf32, #tpu.memory_space<vmem>>, %arg6: memref<1x128xf32, #tpu.memory_space<vmem>>, %arg7: memref<1x1x8xf32, #tpu.memory_space<vmem>>, %arg8: memref<1x8xf32, #tpu.memory_space<vmem>>) attributes {dimension_semantics = [#tpu.dimension_semantics<parallel>, #tpu.dimension_semantics<arbitrary>, #tpu.dimension_semantics<arbitrary>], iteration_bounds = array<i64: 2, 1, 1>, scalar_prefetch = 0 : i64, scratch_operands = 1 : i64, tpu.core_type = #tpu.core_type<tc>, window_params = [{transform_indices = @transform_0, window_bounds = array<i64: 256, 8>}, {transform_indices = @transform_1, window_bounds = array<i64: 256, 1>}, {transform_indices = @transform_2, window_bounds = array<i64: 8, 128>}, {transform_indices = @transform_3, window_bounds = array<i64: 1, 128>}, {transform_indices = @transform_4, window_bounds = array<i64: 1, 1, 8>}]} {
    %c0_i32 = arith.constant 0 : i32
    %0 = arith.cmpi eq, %arg1, %c0_i32 : i32
    %c0_i32_0 = arith.constant 0 : i32
    %1 = arith.cmpi eq, %arg2, %c0_i32_0 : i32
    %2 = arith.andi %0, %1 : i1
    %3 = arith.extui %2 : i1 to i32
    %c0_i32_1 = arith.constant 0 : i32
    %4 = arith.cmpi ne, %3, %c0_i32_1 : i32
    scf.if %4 {
      %cst_40 = arith.constant 0.000000e+00 : f32
      %174 = vector.broadcast %cst_40 : f32 to vector<1x8xf32>
      %c0_41 = arith.constant 0 : index
      %c0_42 = arith.constant 0 : index
      %175 = vector.load %arg8[%c0_41, %c0_42] : memref<1x8xf32, #tpu.memory_space<vmem>>, vector<1x8xf32>
      tpu.vector_store %arg8[%c0_41, %c0_42], %174 {strides = array<i32>} : memref<1x8xf32, #tpu.memory_space<vmem>>, vector<1x8xf32>,
    } else {
    }
    %c0 = arith.constant 0 : index
    %c0_2 = arith.constant 0 : index
    %5 = vector.load %arg3[%c0, %c0_2] : memref<256x8xf32, #tpu.memory_space<vmem>>, vector<256x8xf32>
    %c0_3 = arith.constant 0 : index
    %c0_4 = arith.constant 0 : index
    %6 = vector.load %arg5[%c0_3, %c0_4] : memref<8x128xf32, #tpu.memory_space<vmem>>, vector<8x128xf32>
    %c0_5 = arith.constant 0 : index
    %c0_6 = arith.constant 0 : index
    %7 = vector.load %arg6[%c0_5, %c0_6] : memref<1x128xf32, #tpu.memory_space<vmem>>, vector<1x128xf32>
    %c0_7 = arith.constant 0 : index
    %c0_8 = arith.constant 0 : index
    %8 = vector.load %arg4[%c0_7, %c0_8] : memref<256x1xf32, #tpu.memory_space<vmem>>, vector<256x1xf32>
    %9 = vector.extract_strided_slice %5 {offsets = [0, 0], sizes = [256, 1], strides = [1, 1]} : vector<256x8xf32> to vector<256x1xf32>
    %10 = vector.extract_strided_slice %6 {offsets = [0, 0], sizes = [1, 128], strides = [1, 1]} : vector<8x128xf32> to vector<1x128xf32>
    %11 = vector.broadcast %9 : vector<256x1xf32> to vector<256x128xf32>
    %12 = vector.broadcast %10 : vector<1x128xf32> to vector<256x128xf32>
    %13 = arith.cmpf ogt, %11, %12 : vector<256x128xf32>
    %cst = arith.constant 0.000000e+00 : f32
    %14 = vector.shape_cast %7 : vector<1x128xf32> to vector<1x128xf32>
    %15 = vector.broadcast %14 : vector<1x128xf32> to vector<256x128xf32>
    %16 = vector.broadcast %cst : f32 to vector<256x128xf32>
    %17 = arith.select %13, %15, %16 : vector<256x128xi1>, vector<256x128xf32>
    %18 = vector.broadcast %9 : vector<256x1xf32> to vector<256x128xf32>
    %19 = vector.broadcast %10 : vector<1x128xf32> to vector<256x128xf32>
    %20 = arith.cmpf oge, %18, %19 : vector<256x128xf32>
    %cst_9 = arith.constant 0.000000e+00 : f32
    %21 = vector.shape_cast %7 : vector<1x128xf32> to vector<1x128xf32>
    %22 = vector.broadcast %21 : vector<1x128xf32> to vector<256x128xf32>
    %23 = vector.broadcast %cst_9 : f32 to vector<256x128xf32>
    %24 = arith.select %20, %22, %23 : vector<256x128xi1>, vector<256x128xf32>
    %25 = arith.addf %17, %24 : vector<256x128xf32>
    %cst_10 = arith.constant dense<0.000000e+00> : vector<256xf32>
    %26 = vector.multi_reduction <add>, %25, %cst_10 [1] : vector<256x128xf32> to vector<256xf32>
    %27 = vector.shape_cast %26 : vector<256xf32> to vector<256x1xf32>
    %28 = vector.extract_strided_slice %5 {offsets = [0, 1], sizes = [256, 1], strides = [1, 1]} : vector<256x8xf32> to vector<256x1xf32>
    %29 = vector.extract_strided_slice %6 {offsets = [1, 0], sizes = [1, 128], strides = [1, 1]} : vector<8x128xf32> to vector<1x128xf32>
    %30 = vector.broadcast %28 : vector<256x1xf32> to vector<256x128xf32>
    %31 = vector.broadcast %29 : vector<1x128xf32> to vector<256x128xf32>
    %32 = arith.cmpf ogt, %30, %31 : vector<256x128xf32>
    %cst_11 = arith.constant 0.000000e+00 : f32
    %33 = vector.shape_cast %7 : vector<1x128xf32> to vector<1x128xf32>
    %34 = vector.broadcast %33 : vector<1x128xf32> to vector<256x128xf32>
    %35 = vector.broadcast %cst_11 : f32 to vector<256x128xf32>
    %36 = arith.select %32, %34, %35 : vector<256x128xi1>, vector<256x128xf32>
    %37 = vector.broadcast %28 : vector<256x1xf32> to vector<256x128xf32>
    %38 = vector.broadcast %29 : vector<1x128xf32> to vector<256x128xf32>
    %39 = arith.cmpf oge, %37, %38 : vector<256x128xf32>
    %cst_12 = arith.constant 0.000000e+00 : f32
    %40 = vector.shape_cast %7 : vector<1x128xf32> to vector<1x128xf32>
    %41 = vector.broadcast %40 : vector<1x128xf32> to vector<256x128xf32>
    %42 = vector.broadcast %cst_12 : f32 to vector<256x128xf32>
    %43 = arith.select %39, %41, %42 : vector<256x128xi1>, vector<256x128xf32>
    %44 = arith.addf %36, %43 : vector<256x128xf32>
    %cst_13 = arith.constant dense<0.000000e+00> : vector<256xf32>
    %45 = vector.multi_reduction <add>, %44, %cst_13 [1] : vector<256x128xf32> to vector<256xf32>
    %46 = vector.shape_cast %45 : vector<256xf32> to vector<256x1xf32>
    %47 = vector.extract_strided_slice %5 {offsets = [0, 2], sizes = [256, 1], strides = [1, 1]} : vector<256x8xf32> to vector<256x1xf32>
    %48 = vector.extract_strided_slice %6 {offsets = [2, 0], sizes = [1, 128], strides = [1, 1]} : vector<8x128xf32> to vector<1x128xf32>
    %49 = vector.broadcast %47 : vector<256x1xf32> to vector<256x128xf32>
    %50 = vector.broadcast %48 : vector<1x128xf32> to vector<256x128xf32>
    %51 = arith.cmpf ogt, %49, %50 : vector<256x128xf32>
    %cst_14 = arith.constant 0.000000e+00 : f32
    %52 = vector.shape_cast %7 : vector<1x128xf32> to vector<1x128xf32>
    %53 = vector.broadcast %52 : vector<1x128xf32> to vector<256x128xf32>
    %54 = vector.broadcast %cst_14 : f32 to vector<256x128xf32>
    %55 = arith.select %51, %53, %54 : vector<256x128xi1>, vector<256x128xf32>
    %56 = vector.broadcast %47 : vector<256x1xf32> to vector<256x128xf32>
    %57 = vector.broadcast %48 : vector<1x128xf32> to vector<256x128xf32>
    %58 = arith.cmpf oge, %56, %57 : vector<256x128xf32>
    %cst_15 = arith.constant 0.000000e+00 : f32
    %59 = vector.shape_cast %7 : vector<1x128xf32> to vector<1x128xf32>
    %60 = vector.broadcast %59 : vector<1x128xf32> to vector<256x128xf32>
    %61 = vector.broadcast %cst_15 : f32 to vector<256x128xf32>
    %62 = arith.select %58, %60, %61 : vector<256x128xi1>, vector<256x128xf32>
    %63 = arith.addf %55, %62 : vector<256x128xf32>
    %cst_16 = arith.constant dense<0.000000e+00> : vector<256xf32>
    %64 = vector.multi_reduction <add>, %63, %cst_16 [1] : vector<256x128xf32> to vector<256xf32>
    %65 = vector.shape_cast %64 : vector<256xf32> to vector<256x1xf32>
    %66 = vector.extract_strided_slice %5 {offsets = [0, 3], sizes = [256, 1], strides = [1, 1]} : vector<256x8xf32> to vector<256x1xf32>
    %67 = vector.extract_strided_slice %6 {offsets = [3, 0], sizes = [1, 128], strides = [1, 1]} : vector<8x128xf32> to vector<1x128xf32>
    %68 = vector.broadcast %66 : vector<256x1xf32> to vector<256x128xf32>
    %69 = vector.broadcast %67 : vector<1x128xf32> to vector<256x128xf32>
    %70 = arith.cmpf ogt, %68, %69 : vector<256x128xf32>
    %cst_17 = arith.constant 0.000000e+00 : f32
    %71 = vector.shape_cast %7 : vector<1x128xf32> to vector<1x128xf32>
    %72 = vector.broadcast %71 : vector<1x128xf32> to vector<256x128xf32>
    %73 = vector.broadcast %cst_17 : f32 to vector<256x128xf32>
    %74 = arith.select %70, %72, %73 : vector<256x128xi1>, vector<256x128xf32>
    %75 = vector.broadcast %66 : vector<256x1xf32> to vector<256x128xf32>
    %76 = vector.broadcast %67 : vector<1x128xf32> to vector<256x128xf32>
    %77 = arith.cmpf oge, %75, %76 : vector<256x128xf32>
    %cst_18 = arith.constant 0.000000e+00 : f32
    %78 = vector.shape_cast %7 : vector<1x128xf32> to vector<1x128xf32>
    %79 = vector.broadcast %78 : vector<1x128xf32> to vector<256x128xf32>
    %80 = vector.broadcast %cst_18 : f32 to vector<256x128xf32>
    %81 = arith.select %77, %79, %80 : vector<256x128xi1>, vector<256x128xf32>
    %82 = arith.addf %74, %81 : vector<256x128xf32>
    %cst_19 = arith.constant dense<0.000000e+00> : vector<256xf32>
    %83 = vector.multi_reduction <add>, %82, %cst_19 [1] : vector<256x128xf32> to vector<256xf32>
    %84 = vector.shape_cast %83 : vector<256xf32> to vector<256x1xf32>
    %85 = vector.extract_strided_slice %5 {offsets = [0, 4], sizes = [256, 1], strides = [1, 1]} : vector<256x8xf32> to vector<256x1xf32>
    %86 = vector.extract_strided_slice %6 {offsets = [4, 0], sizes = [1, 128], strides = [1, 1]} : vector<8x128xf32> to vector<1x128xf32>
    %87 = vector.broadcast %85 : vector<256x1xf32> to vector<256x128xf32>
    %88 = vector.broadcast %86 : vector<1x128xf32> to vector<256x128xf32>
    %89 = arith.cmpf ogt, %87, %88 : vector<256x128xf32>
    %cst_20 = arith.constant 0.000000e+00 : f32
    %90 = vector.shape_cast %7 : vector<1x128xf32> to vector<1x128xf32>
    %91 = vector.broadcast %90 : vector<1x128xf32> to vector<256x128xf32>
    %92 = vector.broadcast %cst_20 : f32 to vector<256x128xf32>
    %93 = arith.select %89, %91, %92 : vector<256x128xi1>, vector<256x128xf32>
    %94 = vector.broadcast %85 : vector<256x1xf32> to vector<256x128xf32>
    %95 = vector.broadcast %86 : vector<1x128xf32> to vector<256x128xf32>
    %96 = arith.cmpf oge, %94, %95 : vector<256x128xf32>
    %cst_21 = arith.constant 0.000000e+00 : f32
    %97 = vector.shape_cast %7 : vector<1x128xf32> to vector<1x128xf32>
    %98 = vector.broadcast %97 : vector<1x128xf32> to vector<256x128xf32>
    %99 = vector.broadcast %cst_21 : f32 to vector<256x128xf32>
    %100 = arith.select %96, %98, %99 : vector<256x128xi1>, vector<256x128xf32>
    %101 = arith.addf %93, %100 : vector<256x128xf32>
    %cst_22 = arith.constant dense<0.000000e+00> : vector<256xf32>
    %102 = vector.multi_reduction <add>, %101, %cst_22 [1] : vector<256x128xf32> to vector<256xf32>
    %103 = vector.shape_cast %102 : vector<256xf32> to vector<256x1xf32>
    %104 = vector.extract_strided_slice %5 {offsets = [0, 5], sizes = [256, 1], strides = [1, 1]} : vector<256x8xf32> to vector<256x1xf32>
    %105 = vector.extract_strided_slice %6 {offsets = [5, 0], sizes = [1, 128], strides = [1, 1]} : vector<8x128xf32> to vector<1x128xf32>
    %106 = vector.broadcast %104 : vector<256x1xf32> to vector<256x128xf32>
    %107 = vector.broadcast %105 : vector<1x128xf32> to vector<256x128xf32>
    %108 = arith.cmpf ogt, %106, %107 : vector<256x128xf32>
    %cst_23 = arith.constant 0.000000e+00 : f32
    %109 = vector.shape_cast %7 : vector<1x128xf32> to vector<1x128xf32>
    %110 = vector.broadcast %109 : vector<1x128xf32> to vector<256x128xf32>
    %111 = vector.broadcast %cst_23 : f32 to vector<256x128xf32>
    %112 = arith.select %108, %110, %111 : vector<256x128xi1>, vector<256x128xf32>
    %113 = vector.broadcast %104 : vector<256x1xf32> to vector<256x128xf32>
    %114 = vector.broadcast %105 : vector<1x128xf32> to vector<256x128xf32>
    %115 = arith.cmpf oge, %113, %114 : vector<256x128xf32>
    %cst_24 = arith.constant 0.000000e+00 : f32
    %116 = vector.shape_cast %7 : vector<1x128xf32> to vector<1x128xf32>
    %117 = vector.broadcast %116 : vector<1x128xf32> to vector<256x128xf32>
    %118 = vector.broadcast %cst_24 : f32 to vector<256x128xf32>
    %119 = arith.select %115, %117, %118 : vector<256x128xi1>, vector<256x128xf32>
    %120 = arith.addf %112, %119 : vector<256x128xf32>
    %cst_25 = arith.constant dense<0.000000e+00> : vector<256xf32>
    %121 = vector.multi_reduction <add>, %120, %cst_25 [1] : vector<256x128xf32> to vector<256xf32>
    %122 = vector.shape_cast %121 : vector<256xf32> to vector<256x1xf32>
    %123 = vector.extract_strided_slice %5 {offsets = [0, 6], sizes = [256, 1], strides = [1, 1]} : vector<256x8xf32> to vector<256x1xf32>
    %124 = vector.extract_strided_slice %6 {offsets = [6, 0], sizes = [1, 128], strides = [1, 1]} : vector<8x128xf32> to vector<1x128xf32>
    %125 = vector.broadcast %123 : vector<256x1xf32> to vector<256x128xf32>
    %126 = vector.broadcast %124 : vector<1x128xf32> to vector<256x128xf32>
    %127 = arith.cmpf ogt, %125, %126 : vector<256x128xf32>
    %cst_26 = arith.constant 0.000000e+00 : f32
    %128 = vector.shape_cast %7 : vector<1x128xf32> to vector<1x128xf32>
    %129 = vector.broadcast %128 : vector<1x128xf32> to vector<256x128xf32>
    %130 = vector.broadcast %cst_26 : f32 to vector<256x128xf32>
    %131 = arith.select %127, %129, %130 : vector<256x128xi1>, vector<256x128xf32>
    %132 = vector.broadcast %123 : vector<256x1xf32> to vector<256x128xf32>
    %133 = vector.broadcast %124 : vector<1x128xf32> to vector<256x128xf32>
    %134 = arith.cmpf oge, %132, %133 : vector<256x128xf32>
    %cst_27 = arith.constant 0.000000e+00 : f32
    %135 = vector.shape_cast %7 : vector<1x128xf32> to vector<1x128xf32>
    %136 = vector.broadcast %135 : vector<1x128xf32> to vector<256x128xf32>
    %137 = vector.broadcast %cst_27 : f32 to vector<256x128xf32>
    %138 = arith.select %134, %136, %137 : vector<256x128xi1>, vector<256x128xf32>
    %139 = arith.addf %131, %138 : vector<256x128xf32>
    %cst_28 = arith.constant dense<0.000000e+00> : vector<256xf32>
    %140 = vector.multi_reduction <add>, %139, %cst_28 [1] : vector<256x128xf32> to vector<256xf32>
    %141 = vector.shape_cast %140 : vector<256xf32> to vector<256x1xf32>
    %142 = vector.extract_strided_slice %5 {offsets = [0, 7], sizes = [256, 1], strides = [1, 1]} : vector<256x8xf32> to vector<256x1xf32>
    %143 = vector.extract_strided_slice %6 {offsets = [7, 0], sizes = [1, 128], strides = [1, 1]} : vector<8x128xf32> to vector<1x128xf32>
    %144 = vector.broadcast %142 : vector<256x1xf32> to vector<256x128xf32>
    %145 = vector.broadcast %143 : vector<1x128xf32> to vector<256x128xf32>
    %146 = arith.cmpf ogt, %144, %145 : vector<256x128xf32>
    %cst_29 = arith.constant 0.000000e+00 : f32
    %147 = vector.shape_cast %7 : vector<1x128xf32> to vector<1x128xf32>
    %148 = vector.broadcast %147 : vector<1x128xf32> to vector<256x128xf32>
    %149 = vector.broadcast %cst_29 : f32 to vector<256x128xf32>
    %150 = arith.select %146, %148, %149 : vector<256x128xi1>, vector<256x128xf32>
    %151 = vector.broadcast %142 : vector<256x1xf32> to vector<256x128xf32>
    %152 = vector.broadcast %143 : vector<1x128xf32> to vector<256x128xf32>
    %153 = arith.cmpf oge, %151, %152 : vector<256x128xf32>
    %cst_30 = arith.constant 0.000000e+00 : f32
    %154 = vector.shape_cast %7 : vector<1x128xf32> to vector<1x128xf32>
    %155 = vector.broadcast %154 : vector<1x128xf32> to vector<256x128xf32>
    %156 = vector.broadcast %cst_30 : f32 to vector<256x128xf32>
    %157 = arith.select %153, %155, %156 : vector<256x128xi1>, vector<256x128xf32>
    %158 = arith.addf %150, %157 : vector<256x128xf32>
    %cst_31 = arith.constant dense<0.000000e+00> : vector<256xf32>
    %159 = vector.multi_reduction <add>, %158, %cst_31 [1] : vector<256x128xf32> to vector<256xf32>
    %160 = vector.shape_cast %159 : vector<256xf32> to vector<256x1xf32>
    %161 = tpu.concatenate %27, %46, %65, %84, %103, %122, %141, %160 in 1 : vector<256x1xf32>, vector<256x1xf32>, vector<256x1xf32>, vector<256x1xf32>, vector<256x1xf32>, vector<256x1xf32>, vector<256x1xf32>, vector<256x1xf32> -> vector<256x8xf32>
    %c0_32 = arith.constant 0 : index
    %c0_33 = arith.constant 0 : index
    %162 = vector.load %arg8[%c0_32, %c0_33] : memref<1x8xf32, #tpu.memory_space<vmem>>, vector<1x8xf32>
    %163 = vector.broadcast %8 : vector<256x1xf32> to vector<256x8xf32>
    %164 = arith.mulf %161, %163 : vector<256x8xf32>
    %cst_34 = arith.constant dense<0.000000e+00> : vector<8xf32>
    %165 = vector.multi_reduction <add>, %164, %cst_34 [0] : vector<256x8xf32> to vector<8xf32>
    %166 = vector.shape_cast %165 : vector<8xf32> to vector<1x8xf32>
    %167 = arith.addf %162, %166 : vector<1x8xf32>
    %c0_35 = arith.constant 0 : index
    %c0_36 = arith.constant 0 : index
    %168 = vector.load %arg8[%c0_35, %c0_36] : memref<1x8xf32, #tpu.memory_space<vmem>>, vector<1x8xf32>
    tpu.vector_store %arg8[%c0_35, %c0_36], %167 {strides = array<i32>} : memref<1x8xf32, #tpu.memory_space<vmem>>, vector<1x8xf32>,
    %c0_i32_37 = arith.constant 0 : i32
    %169 = arith.cmpi eq, %arg1, %c0_i32_37 : i32
    %c0_i32_38 = arith.constant 0 : i32
    %170 = arith.cmpi eq, %arg2, %c0_i32_38 : i32
    %171 = arith.andi %169, %170 : i1
    %172 = arith.extui %171 : i1 to i32
    %c0_i32_39 = arith.constant 0 : i32
    %173 = arith.cmpi ne, %172, %c0_i32_39 : i32
    scf.if %173 {
      %c0_40 = arith.constant 0 : index
      %c0_41 = arith.constant 0 : index
      %174 = vector.load %arg8[%c0_40, %c0_41] : memref<1x8xf32, #tpu.memory_space<vmem>>, vector<1x8xf32>
      %c0_42 = arith.constant 0 : index
      %c0_43 = arith.constant 0 : index
      %c0_44 = arith.constant 0 : index
      %175 = vector.load %arg7[%c0_42, %c0_43, %c0_44] : memref<1x1x8xf32, #tpu.memory_space<vmem>>, vector<1x1x8xf32>
      %176 = vector.shape_cast %175 : vector<1x1x8xf32> to vector<1x8xf32>
      %177 = vector.shape_cast %174 : vector<1x8xf32> to vector<1x1x8xf32>
      tpu.vector_store %arg7[%c0_42, %c0_43, %c0_44], %177 {strides = array<i32>} : memref<1x1x8xf32, #tpu.memory_space<vmem>>, vector<1x1x8xf32>,
    } else {
    }
    return
  }
  func.func @transform_0(%arg0: i32, %arg1: i32, %arg2: i32) -> (i32, i32) {
    %c1_i32 = arith.constant 1 : i32
    %0 = arith.muli %arg0, %c1_i32 : i32
    %1 = arith.addi %0, %arg1 : i32
    %c0_i32 = arith.constant 0 : i32
    %c0_i32_0 = arith.constant 0 : i32
    return %1, %c0_i32 : i32, i32
  }
  func.func @transform_1(%arg0: i32, %arg1: i32, %arg2: i32) -> (i32, i32) {
    %c1_i32 = arith.constant 1 : i32
    %0 = arith.muli %arg0, %c1_i32 : i32
    %1 = arith.addi %0, %arg1 : i32
    %c0_i32 = arith.constant 0 : i32
    %c0_i32_0 = arith.constant 0 : i32
    return %1, %c0_i32 : i32, i32
  }
  func.func @transform_2(%arg0: i32, %arg1: i32, %arg2: i32) -> (i32, i32) {
    %c0_i32 = arith.constant 0 : i32
    %c0_i32_0 = arith.constant 0 : i32
    return %c0_i32, %arg2 : i32, i32
  }
  func.func @transform_3(%arg0: i32, %arg1: i32, %arg2: i32) -> (i32, i32) {
    %c0_i32 = arith.constant 0 : i32
    %c0_i32_0 = arith.constant 0 : i32
    return %c0_i32, %arg2 : i32, i32
  }
  func.func @transform_4(%arg0: i32, %arg1: i32, %arg2: i32) -> (i32, i32, i32) {
    %c0_i32 = arith.constant 0 : i32
    %c0_i32_0 = arith.constant 0 : i32
    %c0_i32_1 = arith.constant 0 : i32
    return %arg0, %c0_i32, %c0_i32_0 : i32, i32, i32
  }
}

</mosaic_0001>

<llo_original>
// kernel: tpu_custom_call.1
$region0: #{tpu_custom_call.1}
  #allocation0 [shape = 'u32[]', space=smem, size = 0x4, offset = 0x4, fixed_abs, tag = 'smem constant byte address 0x4 - core index']
  #allocation1 [shape = 'u32[144,128]{1,0:T(1,128)}', space=vmem, size = 0x12000, scoped, tag = 'internal scratch']
  #allocation2 [shape = 'f32[1,8]{1,0:T(1,128)}', space=vmem, size = 0x200, scoped, tag = 'scratch operand']
  %s0 = inlined_call_operand.vmem [shape: f32[512,8], index: 0, kind: input, shape index: {}]
  %s1 = inlined_call_operand.vmem [shape: f32[512,1], index: 1, kind: input, shape index: {}]
  %s2 = inlined_call_operand.vmem [shape: f32[8,128], index: 2, kind: input, shape index: {}]
  %s3 = inlined_call_operand.vmem [shape: f32[1,128], index: 3, kind: input, shape index: {}]
  %s4 = inlined_call_operand.hbm [shape: f32[2,1,8], index: 4, kind: output, shape index: {}]
  %s5 = sld [smem:[#allocation0]]
  $region57: #{tpu_custom_call.1} parent=0
    _
  %s7 = ssub.s32 1, %s5
  %s8 = scalar_select 0, %s7, %s5
  $region1: #{tpu_custom_call.1} parent=0
    #allocation3 [shape = 'u8[1024]{0}', space=vmem, size = 0x400, scoped, tag = 'output window, operand 0']
    #allocation4 [shape = 's32[2]{0}', space=sflag, size = 0x8, scoped, tag = 'scoped memory for tpu_custom_call.1']
    %9 = vsyncpa [#allocation4], 0
    %s10 = scalar_lea.sflag [#allocation4], 1
    %11 = vsyncpa %s10, 0
    loop: start=0, step=1, limit=4
    $region2: #{tpu_custom_call.1} parent=1 // loop_pre_header
      _
    $region3: #{tpu_custom_call.1} parent=1 // loop_header
      %s13 = sphi 0, %s17
      %p14 = scmp.ge.s32.totalorder %s13, 4
      %s20 = sphi 0, %s39
      %s21 = sphi 0, %s35
      %s22 = sphi 0, %s31
      %s23 = sphi 0, %s20
      %s24 = sphi 0, %s21
      %s25 = sphi 0, %s22
      %s26 = sphi 0, %s23
      %s27 = sphi 0, %s24
      %s28 = sphi 0, %s25
      %s44 = sphi 0, %s46
      %s47 = sphi 0, %s44
      %s48 = sphi 0, %s47
      %s64 = sphi 0, %s48
      %s72 = sphi 0, %s74
      %s75 = sphi 0, %s72
      %s76 = sphi 0, %s75
      %s92 = sphi 0, %s76
      %s98 = sphi 0, %s100
      %s101 = sphi 0, %s98
      %s102 = sphi 0, %s101
      %s118 = sphi 0, %s102
      %s124 = sphi 0, %s126
      %s127 = sphi 0, %s124
      %s128 = sphi 0, %s127
      %s144 = sphi 0, %s128
      %s150 = sphi 0, %s152
      %s153 = sphi 0, %s150
      %s154 = sphi 0, %s153
      %s170 = sphi 0, %s154
    $region4: #{tpu_custom_call.1} parent=1 // loop_header_branch
      %16 = sbr.rel (%p14) target = $region8
    $region5: #{tpu_custom_call.1} parent=1 // loop_body
      %s18 = ssub.s32 %s13, 1
      %s19 = ssub.s32 %s13, 2
      %s29 = sadd.s32 1, %s22
      %p30 = scmp.ge.s32.totalorder %s29, 1
      %s31 = scalar_select %p30, 0, %s29
      %s32 = sadd.s32 1, %s21
      %s33 = scalar_select %p30, %s32, %s21
      %p34 = scmp.ge.s32.totalorder %s33, 1
      %s35 = scalar_select %p34, 0, %s33
      %s36 = sadd.s32 1, %s20
      %s37 = scalar_select %p34, %s36, %s20
      %p38 = scmp.ge.s32.totalorder %s37, 2
      %s39 = scalar_select %p38, 0, %s37
      %s40 = sadd.s32 %s20, %s21
      %s41 = sadd.s32 %s39, %s35
      %s42 = ssub.s32 %s40, %s41
      %p43 = scmp.eq.s32.totalorder %s42, 0
      %s45 = sadd.s32 %s44, 1
      %s46 = scalar_select %p43, %s44, %s45
      %p49 = pneg %p43
      %p50 = scmp.eq.s32.totalorder %s13, 1
      %p51 = por %p49, %p50
      %p52 = scmp.ne.s32.totalorder %s44, %s47
      %p53 = scmp.eq.s32.totalorder %s13, 0
      %p54 = por %p52, %p53
      %p55 = scmp.ne.s32.totalorder %s44, %s47
      %p56 = scmp.eq.s32.totalorder %s18, 1
      %p57 = por %p55, %p56
      %p58 = scmp.ne.s32.totalorder %s47, %s48
      %p59 = scmp.eq.s32.totalorder %s18, 0
      %p60 = por %p58, %p59
      %p61 = scmp.ne.s32.totalorder %s47, %s48
      %p62 = scmp.eq.s32.totalorder %s19, 1
      %p63 = por %p61, %p62
      %p65 = scmp.ne.s32.totalorder %s48, %s64
      %p66 = scmp.eq.s32.totalorder %s19, 0
      %p67 = por %p65, %p66
      %s68 = sadd.s32 %s20, %s21
      %s69 = sadd.s32 %s39, %s35
      %s70 = ssub.s32 %s68, %s69
      %p71 = scmp.eq.s32.totalorder %s70, 0
      %s73 = sadd.s32 %s72, 1
      %s74 = scalar_select %p71, %s72, %s73
      %p77 = pneg %p71
      %p78 = scmp.eq.s32.totalorder %s13, 1
      %p79 = por %p77, %p78
      %p80 = scmp.ne.s32.totalorder %s72, %s75
      %p81 = scmp.eq.s32.totalorder %s13, 0
      %p82 = por %p80, %p81
      %p83 = scmp.ne.s32.totalorder %s72, %s75
      %p84 = scmp.eq.s32.totalorder %s18, 1
      %p85 = por %p83, %p84
      %p86 = scmp.ne.s32.totalorder %s75, %s76
      %p87 = scmp.eq.s32.totalorder %s18, 0
      %p88 = por %p86, %p87
      %p89 = scmp.ne.s32.totalorder %s75, %s76
      %p90 = scmp.eq.s32.totalorder %s19, 1
      %p91 = por %p89, %p90
      %p93 = scmp.ne.s32.totalorder %s76, %s92
      %p94 = scmp.eq.s32.totalorder %s19, 0
      %p95 = por %p93, %p94
      %s96 = ssub.s32 %s22, %s31
      %p97 = scmp.eq.s32.totalorder %s96, 0
      %s99 = sadd.s32 %s98, 1
      %s100 = scalar_select %p97, %s98, %s99
      %p103 = pneg %p97
      %p104 = scmp.eq.s32.totalorder %s13, 1
      %p105 = por %p103, %p104
      %p106 = scmp.ne.s32.totalorder %s98, %s101
      %p107 = scmp.eq.s32.totalorder %s13, 0
      %p108 = por %p106, %p107
      %p109 = scmp.ne.s32.totalorder %s98, %s101
      %p110 = scmp.eq.s32.totalorder %s18, 1
      %p111 = por %p109, %p110
      %p112 = scmp.ne.s32.totalorder %s101, %s102
      %p113 = scmp.eq.s32.totalorder %s18, 0
      %p114 = por %p112, %p113
      %p115 = scmp.ne.s32.totalorder %s101, %s102
      %p116 = scmp.eq.s32.totalorder %s19, 1
      %p117 = por %p115, %p116
      %p119 = scmp.ne.s32.totalorder %s102, %s118
      %p120 = scmp.eq.s32.totalorder %s19, 0
      %p121 = por %p119, %p120
      %s122 = ssub.s32 %s22, %s31
      %p123 = scmp.eq.s32.totalorder %s122, 0
      %s125 = sadd.s32 %s124, 1
      %s126 = scalar_select %p123, %s124, %s125
      %p129 = pneg %p123
      %p130 = scmp.eq.s32.totalorder %s13, 1
      %p131 = por %p129, %p130
      %p132 = scmp.ne.s32.totalorder %s124, %s127
      %p133 = scmp.eq.s32.totalorder %s13, 0
      %p134 = por %p132, %p133
      %p135 = scmp.ne.s32.totalorder %s124, %s127
      %p136 = scmp.eq.s32.totalorder %s18, 1
      %p137 = por %p135, %p136
      %p138 = scmp.ne.s32.totalorder %s127, %s128
      %p139 = scmp.eq.s32.totalorder %s18, 0
      %p140 = por %p138, %p139
      %p141 = scmp.ne.s32.totalorder %s127, %s128
      %p142 = scmp.eq.s32.totalorder %s19, 1
      %p143 = por %p141, %p142
      %p145 = scmp.ne.s32.totalorder %s128, %s144
      %p146 = scmp.eq.s32.totalorder %s19, 0
      %p147 = por %p145, %p146
      %s148 = ssub.s32 %s20, %s39
      %p149 = scmp.eq.s32.totalorder %s148, 0
      %s151 = sadd.s32 %s150, 1
      %s152 = scalar_select %p149, %s150, %s151
      %p155 = pneg %p149
      %p156 = scmp.eq.s32.totalorder %s13, 1
      %p157 = por %p155, %p156
      %p158 = scmp.ne.s32.totalorder %s150, %s153
      %p159 = scmp.eq.s32.totalorder %s13, 0
      %p160 = por %p158, %p159
      %p161 = scmp.ne.s32.totalorder %s150, %s153
      %p162 = scmp.eq.s32.totalorder %s18, 1
      %p163 = por %p161, %p162
      %p164 = scmp.ne.s32.totalorder %s153, %s154
      %p165 = scmp.eq.s32.totalorder %s18, 0
      %p166 = por %p164, %p165
      %p167 = scmp.ne.s32.totalorder %s153, %s154
      %p168 = scmp.eq.s32.totalorder %s19, 1
      %p169 = por %p167, %p168
      %p171 = scmp.ne.s32.totalorder %s154, %s170
      %p172 = scmp.eq.s32.totalorder %s19, 0
      %p173 = por %p171, %p172
      %p174 = scmp.le.s32.totalorder 1, %s13
      %p175 = scmp.lt.s32.totalorder %s13, 3
      %p176 = pnand %p174, %p175
      %p177 = pneg %p176
      // Predicated region
      $region9: #{tpu_custom_call.1} parent=5 // pred_check
        _
      $region10: #{tpu_custom_call.1} parent=5 // pred_check_branch
        %179 = sbr.rel (%p176) target = $region12
      $region11: #{tpu_custom_call.1} parent=5 // pred_region
        %s180 = ssub.s32 %s13, 1
        // Predicated region
        $region13: #{tpu_custom_call.1} parent=11 // pred_check
          %p181 = pneg %p114
        $region14: #{tpu_custom_call.1} parent=11 // pred_check_branch
          %183 = sbr.rel (%p181) target = $region16
        $region15: #{tpu_custom_call.1} parent=11 // pred_region
          %p184 = scmp.lt.s32.totalorder %s25, 0
          %s185 = scalar_select %p184, %s25, 0
          %s186 = smul.addr %s185, 8
          %s187 = scalar_lea.vmem %s2, %s186
        $region16: #{tpu_custom_call.1} parent=11 // pred_fallthru
          _
        // Predicated region
        $region17: #{tpu_custom_call.1} parent=11 // pred_check
          %p188 = pneg %p140
        $region18: #{tpu_custom_call.1} parent=11 // pred_check_branch
          %190 = sbr.rel (%p188) target = $region20
        $region19: #{tpu_custom_call.1} parent=11 // pred_region
          %p191 = scmp.lt.s32.totalorder %s25, 0
          %s192 = scalar_select %p191, %s25, 0
          %s193 = scalar_lea.vmem %s3, %s192
        $region20: #{tpu_custom_call.1} parent=11 // pred_fallthru
          _
      $region12: #{tpu_custom_call.1} parent=5 // pred_fallthru
        _
      %p194 = scmp.lt.s32.totalorder %s13, 2
      // Predicated region
      $region21: #{tpu_custom_call.1} parent=5 // pred_check
        %p195 = pneg %p194
      $region22: #{tpu_custom_call.1} parent=5 // pred_check_branch
        %197 = sbr.rel (%p195) target = $region24
      $region23: #{tpu_custom_call.1} parent=5 // pred_region
        // Predicated region
        $region25: #{tpu_custom_call.1} parent=23 // pred_check
          %p198 = pneg %p54
        $region26: #{tpu_custom_call.1} parent=23 // pred_check_branch
          %200 = sbr.rel (%p198) target = $region28
        $region27: #{tpu_custom_call.1} parent=23 // pred_region
          %s201 = sadd.s32 %s20, %s21
          %s202 = smul.u32 32, %s201
          %p203 = scmp.lt.s32.totalorder %s202, 63
          %s204 = scalar_select %p203, %s202, 63
          %s205 = smul.addr %s204, 8
          %s206 = scalar_lea.vmem %s0, %s205
          %s207 = sadd.s32 %s20, %s21
          %s208 = smul.u32 32, %s207
        $region28: #{tpu_custom_call.1} parent=23 // pred_fallthru
          _
        // Predicated region
        $region29: #{tpu_custom_call.1} parent=23 // pred_check
          %p209 = pneg %p82
        $region30: #{tpu_custom_call.1} parent=23 // pred_check_branch
          %211 = sbr.rel (%p209) target = $region32
        $region31: #{tpu_custom_call.1} parent=23 // pred_region
          %s212 = sadd.s32 %s20, %s21
          %s213 = smul.u32 32, %s212
          %p214 = scmp.lt.s32.totalorder %s213, 63
          %s215 = scalar_select %p214, %s213, 63
          %s216 = smul.addr %s215, 8
          %s217 = scalar_lea.vmem %s1, %s216
          %s218 = sadd.s32 %s20, %s21
          %s219 = smul.u32 32, %s218
        $region32: #{tpu_custom_call.1} parent=23 // pred_fallthru
          _
      $region24: #{tpu_custom_call.1} parent=5 // pred_fallthru
        _
      %p220 = scmp.le.s32.totalorder 1, %s13
      %p221 = scmp.lt.s32.totalorder %s13, 3
      %p222 = pnand %p220, %p221
      %p223 = pneg %p222
      // Predicated region
      $region33: #{tpu_custom_call.1} parent=5 // pred_check
        _
      $region34: #{tpu_custom_call.1} parent=5 // pred_check_branch
        %225 = sbr.rel (%p222) target = $region36
      $region35: #{tpu_custom_call.1} parent=5 // pred_region
        %s226 = ssub.s32 %s13, 1
        %s227 = sadd.s32 %s23, %s24
        %s228 = smul.u32 32, %s227
        %p229 = scmp.lt.s32.totalorder %s228, 63
        %s230 = scalar_select %p229, %s228, 63
        %s231 = smul.addr %s230, 8
        %s232 = scalar_lea.vmem %s0, %s231
        %p233 = pneg %p60
        %p234 = pneg %p57
        %s235 = sadd.s32 %s23, %s24
        %s236 = smul.u32 32, %s235
        %p237 = scmp.lt.s32.totalorder %s236, 63
        %s238 = scalar_select %p237, %s236, 63
        %s239 = smul.addr %s238, 8
        %s240 = scalar_lea.vmem %s1, %s239
        %p241 = pneg %p88
        %p242 = pneg %p85
        %p243 = scmp.lt.s32.totalorder %s25, 0
        %s244 = scalar_select %p243, %s25, 0
        %s245 = smul.addr %s244, 8
        %s246 = scalar_lea.vmem %s2, %s245
        %p247 = pneg %p114
        %p248 = pneg %p111
        %p249 = scmp.lt.s32.totalorder %s25, 0
        %s250 = scalar_select %p249, %s25, 0
        %s251 = scalar_lea.vmem %s3, %s250
        %p252 = pneg %p140
        %p253 = pneg %p137
        %p254 = pneg %p166
        %p255 = pneg %p163
        %s256 = sand.u32 %s153, 1
        %s257 = scalar_lea.sflag [#allocation4], %s256
        %s258 = sand.u32 %s153, 1
        %s259 = scalar_lea.vmem [#allocation3], %s258
        %s260 = sadd.s32 %s23, %s24
        %s261 = smul.u32 32, %s260
        %p262 = scmp.lt.s32.totalorder %s261, 63
        %s263 = scalar_select %p262, %s261, 63
        %s264 = smul.addr %s263, 8
        %s265 = scalar_lea.vmem %s0, %s264
        %s266 = sadd.s32 %s23, %s24
        %s267 = smul.u32 32, %s266
        %s268 = sadd.s32 %s23, %s24
        %s269 = smul.u32 32, %s268
        %p270 = scmp.lt.s32.totalorder %s269, 63
        %s271 = scalar_select %p270, %s269, 63
        %s272 = smul.addr %s271, 8
        %s273 = scalar_lea.vmem %s1, %s272
        %s274 = sadd.s32 %s23, %s24
        %s275 = smul.u32 32, %s274
        %p276 = scmp.lt.s32.totalorder %s25, 0
        %s277 = scalar_select %p276, %s25, 0
        %s278 = smul.addr %s277, 8
        %s279 = scalar_lea.vmem %s2, %s278
        %p280 = scmp.lt.s32.totalorder %s25, 0
        %s281 = scalar_select %p280, %s25, 0
        %s282 = scalar_lea.vmem %s3, %s281
        %p283 = scmp.eq.s32.totalorder %s24, 0
        %p284 = scmp.eq.s32.totalorder %s25, 0
        %p285 = pnand %p283, %p284
        %p286 = pneg %p285
        // Predicated region
        $region37: #{tpu_custom_call.1} parent=35 // pred_check
          _
        $region38: #{tpu_custom_call.1} parent=35 // pred_check_branch
          %288 = sbr.rel (%p285) target = $region40
        $region39: #{tpu_custom_call.1} parent=35 // pred_region
          %vm289 = vcmask 57344
          %290 = vst.msk [vmem:[#allocation2] sm:$0x1] %vm289, 0.0
        $region40: #{tpu_custom_call.1} parent=35 // pred_fallthru
          _
        %v291 = vld [vmem:[%s265] sm:$0xff]
        %v292 = vld [vmem:[%s265 + $0x8] sm:$0xff]
        %v293 = vld [vmem:[%s265 + $0x10] sm:$0xff]
        %v294 = vld [vmem:[%s265 + $0x18] sm:$0xff]
        %v295 = vld [vmem:[%s265 + $0x20] sm:$0xff]
        %v296 = vld [vmem:[%s265 + $0x28] sm:$0xff]
        %v297 = vld [vmem:[%s265 + $0x30] sm:$0xff]
        %v298 = vld [vmem:[%s265 + $0x38] sm:$0xff]
        %v299 = vld [vmem:[%s265 + $0x40] sm:$0xff]
        %v300 = vld [vmem:[%s265 + $0x48] sm:$0xff]
        %v301 = vld [vmem:[%s265 + $0x50] sm:$0xff]
        %v302 = vld [vmem:[%s265 + $0x58] sm:$0xff]
        %v303 = vld [vmem:[%s265 + $0x60] sm:$0xff]
        %v304 = vld [vmem:[%s265 + $0x68] sm:$0xff]
        %v305 = vld [vmem:[%s265 + $0x70] sm:$0xff]
        %v306 = vld [vmem:[%s265 + $0x78] sm:$0xff]
        %v307 = vld [vmem:[%s265 + $0x80] sm:$0xff]
        %v308 = vld [vmem:[%s265 + $0x88] sm:$0xff]
        %v309 = vld [vmem:[%s265 + $0x90] sm:$0xff]
        %v310 = vld [vmem:[%s265 + $0x98] sm:$0xff]
        %v311 = vld [vmem:[%s265 + $0xa0] sm:$0xff]
        %v312 = vld [vmem:[%s265 + $0xa8] sm:$0xff]
        %v313 = vld [vmem:[%s265 + $0xb0] sm:$0xff]
        %v314 = vld [vmem:[%s265 + $0xb8] sm:$0xff]
        %v315 = vld [vmem:[%s265 + $0xc0] sm:$0xff]
        %v316 = vld [vmem:[%s265 + $0xc8] sm:$0xff]
        %v317 = vld [vmem:[%s265 + $0xd0] sm:$0xff]
        %v318 = vld [vmem:[%s265 + $0xd8] sm:$0xff]
        %v319 = vld [vmem:[%s265 + $0xe0] sm:$0xff]
        %v320 = vld [vmem:[%s265 + $0xe8] sm:$0xff]
        %v321 = vld [vmem:[%s265 + $0xf0] sm:$0xff]
        %v322 = vld [vmem:[%s265 + $0xf8] sm:$0xff]
        %v323 = vld [vmem:[%s279] sm:$0xff]
        %v324 = vld [vmem:[%s282] sm:$0x1]
        %v325 = vld [vmem:[%s273] sm:$0xff]
        %v326 = vld [vmem:[%s273 + $0x8] sm:$0xff]
        %v327 = vld [vmem:[%s273 + $0x10] sm:$0xff]
        %v328 = vld [vmem:[%s273 + $0x18] sm:$0xff]
        %v329 = vld [vmem:[%s273 + $0x20] sm:$0xff]
        %v330 = vld [vmem:[%s273 + $0x28] sm:$0xff]
        %v331 = vld [vmem:[%s273 + $0x30] sm:$0xff]
        %v332 = vld [vmem:[%s273 + $0x38] sm:$0xff]
        %v333 = vld [vmem:[%s273 + $0x40] sm:$0xff]
        %v334 = vld [vmem:[%s273 + $0x48] sm:$0xff]
        %v335 = vld [vmem:[%s273 + $0x50] sm:$0xff]
        %v336 = vld [vmem:[%s273 + $0x58] sm:$0xff]
        %v337 = vld [vmem:[%s273 + $0x60] sm:$0xff]
        %v338 = vld [vmem:[%s273 + $0x68] sm:$0xff]
        %v339 = vld [vmem:[%s273 + $0x70] sm:$0xff]
        %v340 = vld [vmem:[%s273 + $0x78] sm:$0xff]
        %v341 = vld [vmem:[%s273 + $0x80] sm:$0xff]
        %v342 = vld [vmem:[%s273 + $0x88] sm:$0xff]
        %v343 = vld [vmem:[%s273 + $0x90] sm:$0xff]
        %v344 = vld [vmem:[%s273 + $0x98] sm:$0xff]
        %v345 = vld [vmem:[%s273 + $0xa0] sm:$0xff]
        %v346 = vld [vmem:[%s273 + $0xa8] sm:$0xff]
        %v347 = vld [vmem:[%s273 + $0xb0] sm:$0xff]
        %v348 = vld [vmem:[%s273 + $0xb8] sm:$0xff]
        %v349 = vld [vmem:[%s273 + $0xc0] sm:$0xff]
        %v350 = vld [vmem:[%s273 + $0xc8] sm:$0xff]
        %v351 = vld [vmem:[%s273 + $0xd0] sm:$0xff]
        %v352 = vld [vmem:[%s273 + $0xd8] sm:$0xff]
        %v353 = vld [vmem:[%s273 + $0xe0] sm:$0xff]
        %v354 = vld [vmem:[%s273 + $0xe8] sm:$0xff]
        %v355 = vld [vmem:[%s273 + $0xf0] sm:$0xff]
        %v356 = vld [vmem:[%s273 + $0xf8] sm:$0xff]
        %358 = vset.pattern.permute.xlu0 0
        %359 = vperm.xlu0 %358, %v291
        %v360 = vpop.permute.xlu0 %359
        %363 = vset.pattern.permute.xlu0 0
        %364 = vperm.xlu0 %363, %v292
        %v365 = vpop.permute.xlu0 %364
        %368 = vset.pattern.permute.xlu0 0
        %369 = vperm.xlu0 %368, %v293
        %v370 = vpop.permute.xlu0 %369
        %373 = vset.pattern.permute.xlu0 0
        %374 = vperm.xlu0 %373, %v294
        %v375 = vpop.permute.xlu0 %374
        %378 = vset.pattern.permute.xlu0 0
        %379 = vperm.xlu0 %378, %v295
        %v380 = vpop.permute.xlu0 %379
        %383 = vset.pattern.permute.xlu0 0
        %384 = vperm.xlu0 %383, %v296
        %v385 = vpop.permute.xlu0 %384
        %388 = vset.pattern.permute.xlu0 0
        %389 = vperm.xlu0 %388, %v297
        %v390 = vpop.permute.xlu0 %389
        %393 = vset.pattern.permute.xlu0 0
        %394 = vperm.xlu0 %393, %v298
        %v395 = vpop.permute.xlu0 %394
        %398 = vset.pattern.permute.xlu0 0
        %399 = vperm.xlu0 %398, %v299
        %v400 = vpop.permute.xlu0 %399
        %403 = vset.pattern.permute.xlu0 0
        %404 = vperm.xlu0 %403, %v300
        %v405 = vpop.permute.xlu0 %404
        %408 = vset.pattern.permute.xlu0 0
        %409 = vperm.xlu0 %408, %v301
        %v410 = vpop.permute.xlu0 %409
        %413 = vset.pattern.permute.xlu0 0
        %414 = vperm.xlu0 %413, %v302
        %v415 = vpop.permute.xlu0 %414
        %418 = vset.pattern.permute.xlu0 0
        %419 = vperm.xlu0 %418, %v303
        %v420 = vpop.permute.xlu0 %419
        %423 = vset.pattern.permute.xlu0 0
        %424 = vperm.xlu0 %423, %v304
        %v425 = vpop.permute.xlu0 %424
        %428 = vset.pattern.permute.xlu0 0
        %429 = vperm.xlu0 %428, %v305
        %v430 = vpop.permute.xlu0 %429
        %433 = vset.pattern.permute.xlu0 0
        %434 = vperm.xlu0 %433, %v306
        %v435 = vpop.permute.xlu0 %434
        %438 = vset.pattern.permute.xlu0 0
        %439 = vperm.xlu0 %438, %v307
        %v440 = vpop.permute.xlu0 %439
        %443 = vset.pattern.permute.xlu0 0
        %444 = vperm.xlu0 %443, %v308
        %v445 = vpop.permute.xlu0 %444
        %448 = vset.pattern.permute.xlu0 0
        %449 = vperm.xlu0 %448, %v309
        %v450 = vpop.permute.xlu0 %449
        %453 = vset.pattern.permute.xlu0 0
        %454 = vperm.xlu0 %453, %v310
        %v455 = vpop.permute.xlu0 %454
        %458 = vset.pattern.permute.xlu0 0
        %459 = vperm.xlu0 %458, %v311
        %v460 = vpop.permute.xlu0 %459
        %463 = vset.pattern.permute.xlu0 0
        %464 = vperm.xlu0 %463, %v312
        %v465 = vpop.permute.xlu0 %464
        %468 = vset.pattern.permute.xlu0 0
        %469 = vperm.xlu0 %468, %v313
        %v470 = vpop.permute.xlu0 %469
        %473 = vset.pattern.permute.xlu0 0
        %474 = vperm.xlu0 %473, %v314
        %v475 = vpop.permute.xlu0 %474
        %478 = vset.pattern.permute.xlu0 0
        %479 = vperm.xlu0 %478, %v315
        %v480 = vpop.permute.xlu0 %479
        %483 = vset.pattern.permute.xlu0 0
        %484 = vperm.xlu0 %483, %v316
        %v485 = vpop.permute.xlu0 %484
        %488 = vset.pattern.permute.xlu0 0
        %489 = vperm.xlu0 %488, %v317
        %v490 = vpop.permute.xlu0 %489
        %493 = vset.pattern.permute.xlu0 0
        %494 = vperm.xlu0 %493, %v318
        %v495 = vpop.permute.xlu0 %494
        %498 = vset.pattern.permute.xlu0 0
        %499 = vperm.xlu0 %498, %v319
        %v500 = vpop.permute.xlu0 %499
        %503 = vset.pattern.permute.xlu0 0
        %504 = vperm.xlu0 %503, %v320
        %v505 = vpop.permute.xlu0 %504
        %508 = vset.pattern.permute.xlu0 0
        %509 = vperm.xlu0 %508, %v321
        %v510 = vpop.permute.xlu0 %509
        %513 = vset.pattern.permute.xlu0 0
        %514 = vperm.xlu0 %513, %v322
        %v515 = vpop.permute.xlu0 %514
        %v517 = vlaneseq
        %v518 = vshrl.u32 %v517, 7
        %v519 = vsub.s32 0, %v518
        %v520 = vrot.slane %v323, %v519
        %vm521 = vcmp.gt.f32.partialorder %v360, %v520
        %vm522 = vcmp.gt.f32.partialorder %v365, %v520
        %vm523 = vcmp.gt.f32.partialorder %v370, %v520
        %vm524 = vcmp.gt.f32.partialorder %v375, %v520
        %vm525 = vcmp.gt.f32.partialorder %v380, %v520
        %vm526 = vcmp.gt.f32.partialorder %v385, %v520
        %vm527 = vcmp.gt.f32.partialorder %v390, %v520
        %vm528 = vcmp.gt.f32.partialorder %v395, %v520
        %vm529 = vcmp.gt.f32.partialorder %v400, %v520
        %vm530 = vcmp.gt.f32.partialorder %v405, %v520
        %vm531 = vcmp.gt.f32.partialorder %v410, %v520
        %vm532 = vcmp.gt.f32.partialorder %v415, %v520
        %vm533 = vcmp.gt.f32.partialorder %v420, %v520
        %vm534 = vcmp.gt.f32.partialorder %v425, %v520
        %vm535 = vcmp.gt.f32.partialorder %v430, %v520
        %vm536 = vcmp.gt.f32.partialorder %v435, %v520
        %vm537 = vcmp.gt.f32.partialorder %v440, %v520
        %vm538 = vcmp.gt.f32.partialorder %v445, %v520
        %vm539 = vcmp.gt.f32.partialorder %v450, %v520
        %vm540 = vcmp.gt.f32.partialorder %v455, %v520
        %vm541 = vcmp.gt.f32.partialorder %v460, %v520
        %vm542 = vcmp.gt.f32.partialorder %v465, %v520
        %vm543 = vcmp.gt.f32.partialorder %v470, %v520
        %vm544 = vcmp.gt.f32.partialorder %v475, %v520
        %vm545 = vcmp.gt.f32.partialorder %v480, %v520
        %vm546 = vcmp.gt.f32.partialorder %v485, %v520
        %vm547 = vcmp.gt.f32.partialorder %v490, %v520
        %vm548 = vcmp.gt.f32.partialorder %v495, %v520
        %vm549 = vcmp.gt.f32.partialorder %v500, %v520
        %vm550 = vcmp.gt.f32.partialorder %v505, %v520
        %vm551 = vcmp.gt.f32.partialorder %v510, %v520
        %vm552 = vcmp.gt.f32.partialorder %v515, %v520
        %v554 = vlaneseq
        %v555 = vshrl.u32 %v554, 7
        %v556 = vsub.s32 0, %v555
        %v557 = vrot.slane %v324, %v556
        %v559 = vsel %vm521, %v557, 0.0
        %v560 = vsel %vm522, %v557, 0.0
        %v561 = vsel %vm523, %v557, 0.0
        %v562 = vsel %vm524, %v557, 0.0
        %v563 = vsel %vm525, %v557, 0.0
        %v564 = vsel %vm526, %v557, 0.0
        %v565 = vsel %vm527, %v557, 0.0
        %v566 = vsel %vm528, %v557, 0.0
        %v567 = vsel %vm529, %v557, 0.0
        %v568 = vsel %vm530, %v557, 0.0
        %v569 = vsel %vm531, %v557, 0.0
        %v570 = vsel %vm532, %v557, 0.0
        %v571 = vsel %vm533, %v557, 0.0
        %v572 = vsel %vm534, %v557, 0.0
        %v573 = vsel %vm535, %v557, 0.0
        %v574 = vsel %vm536, %v557, 0.0
        %v575 = vsel %vm537, %v557, 0.0
        %v576 = vsel %vm538, %v557, 0.0
        %v577 = vsel %vm539, %v557, 0.0
        %v578 = vsel %vm540, %v557, 0.0
        %v579 = vsel %vm541, %v557, 0.0
        %v580 = vsel %vm542, %v557, 0.0
        %v581 = vsel %vm543, %v557, 0.0
        %v582 = vsel %vm544, %v557, 0.0
        %v583 = vsel %vm545, %v557, 0.0
        %v584 = vsel %vm546, %v557, 0.0
        %v585 = vsel %vm547, %v557, 0.0
        %v586 = vsel %vm548, %v557, 0.0
        %v587 = vsel %vm549, %v557, 0.0
        %v588 = vsel %vm550, %v557, 0.0
        %v589 = vsel %vm551, %v557, 0.0
        %v590 = vsel %vm552, %v557, 0.0
        %vm591 = vcmp.ge.f32.partialorder %v360, %v520
        %vm592 = vcmp.ge.f32.partialorder %v365, %v520
        %vm593 = vcmp.ge.f32.partialorder %v370, %v520
        %vm594 = vcmp.ge.f32.partialorder %v375, %v520
        %vm595 = vcmp.ge.f32.partialorder %v380, %v520
        %vm596 = vcmp.ge.f32.partialorder %v385, %v520
        %vm597 = vcmp.ge.f32.partialorder %v390, %v520
        %vm598 = vcmp.ge.f32.partialorder %v395, %v520
        %vm599 = vcmp.ge.f32.partialorder %v400, %v520
        %vm600 = vcmp.ge.f32.partialorder %v405, %v520
        %vm601 = vcmp.ge.f32.partialorder %v410, %v520
        %vm602 = vcmp.ge.f32.partialorder %v415, %v520
        %vm603 = vcmp.ge.f32.partialorder %v420, %v520
        %vm604 = vcmp.ge.f32.partialorder %v425, %v520
        %vm605 = vcmp.ge.f32.partialorder %v430, %v520
        %vm606 = vcmp.ge.f32.partialorder %v435, %v520
        %vm607 = vcmp.ge.f32.partialorder %v440, %v520
        %vm608 = vcmp.ge.f32.partialorder %v445, %v520
        %vm609 = vcmp.ge.f32.partialorder %v450, %v520
        %vm610 = vcmp.ge.f32.partialorder %v455, %v520
        %vm611 = vcmp.ge.f32.partialorder %v460, %v520
        %vm612 = vcmp.ge.f32.partialorder %v465, %v520
        %vm613 = vcmp.ge.f32.partialorder %v470, %v520
        %vm614 = vcmp.ge.f32.partialorder %v475, %v520
        %vm615 = vcmp.ge.f32.partialorder %v480, %v520
        %vm616 = vcmp.ge.f32.partialorder %v485, %v520
        %vm617 = vcmp.ge.f32.partialorder %v490, %v520
        %vm618 = vcmp.ge.f32.partialorder %v495, %v520
        %vm619 = vcmp.ge.f32.partialorder %v500, %v520
        %vm620 = vcmp.ge.f32.partialorder %v505, %v520
        %vm621 = vcmp.ge.f32.partialorder %v510, %v520
        %vm622 = vcmp.ge.f32.partialorder %v515, %v520
        %v623 = vsel %vm591, %v557, 0.0
        %v624 = vsel %vm592, %v557, 0.0
        %v625 = vsel %vm593, %v557, 0.0
        %v626 = vsel %vm594, %v557, 0.0
        %v627 = vsel %vm595, %v557, 0.0
        %v628 = vsel %vm596, %v557, 0.0
        %v629 = vsel %vm597, %v557, 0.0
        %v630 = vsel %vm598, %v557, 0.0
        %v631 = vsel %vm599, %v557, 0.0
        %v632 = vsel %vm600, %v557, 0.0
        %v633 = vsel %vm601, %v557, 0.0
        %v634 = vsel %vm602, %v557, 0.0
        %v635 = vsel %vm603, %v557, 0.0
        %v636 = vsel %vm604, %v557, 0.0
        %v637 = vsel %vm605, %v557, 0.0
        %v638 = vsel %vm606, %v557, 0.0
        %v639 = vsel %vm607, %v557, 0.0
        %v640 = vsel %vm608, %v557, 0.0
        %v641 = vsel %vm609, %v557, 0.0
        %v642 = vsel %vm610, %v557, 0.0
        %v643 = vsel %vm611, %v557, 0.0
        %v644 = vsel %vm612, %v557, 0.0
        %v645 = vsel %vm613, %v557, 0.0
        %v646 = vsel %vm614, %v557, 0.0
        %v647 = vsel %vm615, %v557, 0.0
        %v648 = vsel %vm616, %v557, 0.0
        %v649 = vsel %vm617, %v557, 0.0
        %v650 = vsel %vm618, %v557, 0.0
        %v651 = vsel %vm619, %v557, 0.0
        %v652 = vsel %vm620, %v557, 0.0
        %v653 = vsel %vm621, %v557, 0.0
        %v654 = vsel %vm622, %v557, 0.0
        %v655 = vadd.f32 %v559, %v623
        %v656 = vadd.f32 %v560, %v624
        %v657 = vadd.f32 %v561, %v625
        %v658 = vadd.f32 %v562, %v626
        %v659 = vadd.f32 %v563, %v627
        %v660 = vadd.f32 %v564, %v628
        %v661 = vadd.f32 %v565, %v629
        %v662 = vadd.f32 %v566, %v630
        %v663 = vadd.f32 %v567, %v631
        %v664 = vadd.f32 %v568, %v632
        %v665 = vadd.f32 %v569, %v633
        %v666 = vadd.f32 %v570, %v634
        %v667 = vadd.f32 %v571, %v635
        %v668 = vadd.f32 %v572, %v636
        %v669 = vadd.f32 %v573, %v637
        %v670 = vadd.f32 %v574, %v638
        %v671 = vadd.f32 %v575, %v639
        %v672 = vadd.f32 %v576, %v640
        %v673 = vadd.f32 %v577, %v641
        %v674 = vadd.f32 %v578, %v642
        %v675 = vadd.f32 %v579, %v643
        %v676 = vadd.f32 %v580, %v644
        %v677 = vadd.f32 %v581, %v645
        %v678 = vadd.f32 %v582, %v646
        %v679 = vadd.f32 %v583, %v647
        %v680 = vadd.f32 %v584, %v648
        %v681 = vadd.f32 %v585, %v649
        %v682 = vadd.f32 %v586, %v650
        %v683 = vadd.f32 %v587, %v651
        %v684 = vadd.f32 %v588, %v652
        %v685 = vadd.f32 %v589, %v653
        %v686 = vadd.f32 %v590, %v654
        %687 = vadd.xlane.f32.xlu0 %v655
        %v688 = vpop.xlane.xlu0 %687
        %689 = vadd.xlane.f32.xlu0 %v656
        %v690 = vpop.xlane.xlu0 %689
        %691 = vadd.xlane.f32.xlu0 %v657
        %v692 = vpop.xlane.xlu0 %691
        %693 = vadd.xlane.f32.xlu0 %v658
        %v694 = vpop.xlane.xlu0 %693
        %695 = vadd.xlane.f32.xlu0 %v659
        %v696 = vpop.xlane.xlu0 %695
        %697 = vadd.xlane.f32.xlu0 %v660
        %v698 = vpop.xlane.xlu0 %697
        %699 = vadd.xlane.f32.xlu0 %v661
        %v700 = vpop.xlane.xlu0 %699
        %701 = vadd.xlane.f32.xlu0 %v662
        %v702 = vpop.xlane.xlu0 %701
        %703 = vadd.xlane.f32.xlu0 %v663
        %v704 = vpop.xlane.xlu0 %703
        %705 = vadd.xlane.f32.xlu0 %v664
        %v706 = vpop.xlane.xlu0 %705
        %707 = vadd.xlane.f32.xlu0 %v665
        %v708 = vpop.xlane.xlu0 %707
        %709 = vadd.xlane.f32.xlu0 %v666
        %v710 = vpop.xlane.xlu0 %709
        %711 = vadd.xlane.f32.xlu0 %v667
        %v712 = vpop.xlane.xlu0 %711
        %713 = vadd.xlane.f32.xlu0 %v668
        %v714 = vpop.xlane.xlu0 %713
        %715 = vadd.xlane.f32.xlu0 %v669
        %v716 = vpop.xlane.xlu0 %715
        %717 = vadd.xlane.f32.xlu0 %v670
        %v718 = vpop.xlane.xlu0 %717
        %719 = vadd.xlane.f32.xlu0 %v671
        %v720 = vpop.xlane.xlu0 %719
        %721 = vadd.xlane.f32.xlu0 %v672
        %v722 = vpop.xlane.xlu0 %721
        %723 = vadd.xlane.f32.xlu0 %v673
        %v724 = vpop.xlane.xlu0 %723
        %725 = vadd.xlane.f32.xlu0 %v674
        %v726 = vpop.xlane.xlu0 %725
        %727 = vadd.xlane.f32.xlu0 %v675
        %v728 = vpop.xlane.xlu0 %727
        %729 = vadd.xlane.f32.xlu0 %v676
        %v730 = vpop.xlane.xlu0 %729
        %731 = vadd.xlane.f32.xlu0 %v677
        %v732 = vpop.xlane.xlu0 %731
        %733 = vadd.xlane.f32.xlu0 %v678
        %v734 = vpop.xlane.xlu0 %733
        %735 = vadd.xlane.f32.xlu0 %v679
        %v736 = vpop.xlane.xlu0 %735
        %737 = vadd.xlane.f32.xlu0 %v680
        %v738 = vpop.xlane.xlu0 %737
        %739 = vadd.xlane.f32.xlu0 %v681
        %v740 = vpop.xlane.xlu0 %739
        %741 = vadd.xlane.f32.xlu0 %v682
        %v742 = vpop.xlane.xlu0 %741
        %743 = vadd.xlane.f32.xlu0 %v683
        %v744 = vpop.xlane.xlu0 %743
        %745 = vadd.xlane.f32.xlu0 %v684
        %v746 = vpop.xlane.xlu0 %745
        %747 = vadd.xlane.f32.xlu0 %v685
        %v748 = vpop.xlane.xlu0 %747
        %749 = vadd.xlane.f32.xlu0 %v686
        %v750 = vpop.xlane.xlu0 %749
        %751 = vset.pattern.permute.xlu0 1
        %752 = vperm.xlu0 %751, %v291
        %v753 = vpop.permute.xlu0 %752
        %755 = vset.pattern.permute.xlu0 1
        %756 = vperm.xlu0 %755, %v292
        %v757 = vpop.permute.xlu0 %756
        %759 = vset.pattern.permute.xlu0 1
        %760 = vperm.xlu0 %759, %v293
        %v761 = vpop.permute.xlu0 %760
        %763 = vset.pattern.permute.xlu0 1
        %764 = vperm.xlu0 %763, %v294
        %v765 = vpop.permute.xlu0 %764
        %767 = vset.pattern.permute.xlu0 1
        %768 = vperm.xlu0 %767, %v295
        %v769 = vpop.permute.xlu0 %768
        %771 = vset.pattern.permute.xlu0 1
        %772 = vperm.xlu0 %771, %v296
        %v773 = vpop.permute.xlu0 %772
        %775 = vset.pattern.permute.xlu0 1
        %776 = vperm.xlu0 %775, %v297
        %v777 = vpop.permute.xlu0 %776
        %779 = vset.pattern.permute.xlu0 1
        %780 = vperm.xlu0 %779, %v298
        %v781 = vpop.permute.xlu0 %780
        %783 = vset.pattern.permute.xlu0 1
        %784 = vperm.xlu0 %783, %v299
        %v785 = vpop.permute.xlu0 %784
        %787 = vset.pattern.permute.xlu0 1
        %788 = vperm.xlu0 %787, %v300
        %v789 = vpop.permute.xlu0 %788
        %791 = vset.pattern.permute.xlu0 1
        %792 = vperm.xlu0 %791, %v301
        %v793 = vpop.permute.xlu0 %792
        %795 = vset.pattern.permute.xlu0 1
        %796 = vperm.xlu0 %795, %v302
        %v797 = vpop.permute.xlu0 %796
        %799 = vset.pattern.permute.xlu0 1
        %800 = vperm.xlu0 %799, %v303
        %v801 = vpop.permute.xlu0 %800
        %803 = vset.pattern.permute.xlu0 1
        %804 = vperm.xlu0 %803, %v304
        %v805 = vpop.permute.xlu0 %804
        %807 = vset.pattern.permute.xlu0 1
        %808 = vperm.xlu0 %807, %v305
        %v809 = vpop.permute.xlu0 %808
        %811 = vset.pattern.permute.xlu0 1
        %812 = vperm.xlu0 %811, %v306
        %v813 = vpop.permute.xlu0 %812
        %815 = vset.pattern.permute.xlu0 1
        %816 = vperm.xlu0 %815, %v307
        %v817 = vpop.permute.xlu0 %816
        %819 = vset.pattern.permute.xlu0 1
        %820 = vperm.xlu0 %819, %v308
        %v821 = vpop.permute.xlu0 %820
        %823 = vset.pattern.permute.xlu0 1
        %824 = vperm.xlu0 %823, %v309
        %v825 = vpop.permute.xlu0 %824
        %827 = vset.pattern.permute.xlu0 1
        %828 = vperm.xlu0 %827, %v310
        %v829 = vpop.permute.xlu0 %828
        %831 = vset.pattern.permute.xlu0 1
        %832 = vperm.xlu0 %831, %v311
        %v833 = vpop.permute.xlu0 %832
        %835 = vset.pattern.permute.xlu0 1
        %836 = vperm.xlu0 %835, %v312
        %v837 = vpop.permute.xlu0 %836
        %839 = vset.pattern.permute.xlu0 1
        %840 = vperm.xlu0 %839, %v313
        %v841 = vpop.permute.xlu0 %840
        %843 = vset.pattern.permute.xlu0 1
        %844 = vperm.xlu0 %843, %v314
        %v845 = vpop.permute.xlu0 %844
        %847 = vset.pattern.permute.xlu0 1
        %848 = vperm.xlu0 %847, %v315
        %v849 = vpop.permute.xlu0 %848
        %851 = vset.pattern.permute.xlu0 1
        %852 = vperm.xlu0 %851, %v316
        %v853 = vpop.permute.xlu0 %852
        %855 = vset.pattern.permute.xlu0 1
        %856 = vperm.xlu0 %855, %v317
        %v857 = vpop.permute.xlu0 %856
        %859 = vset.pattern.permute.xlu0 1
        %860 = vperm.xlu0 %859, %v318
        %v861 = vpop.permute.xlu0 %860
        %863 = vset.pattern.permute.xlu0 1
        %864 = vperm.xlu0 %863, %v319
        %v865 = vpop.permute.xlu0 %864
        %867 = vset.pattern.permute.xlu0 1
        %868 = vperm.xlu0 %867, %v320
        %v869 = vpop.permute.xlu0 %868
        %871 = vset.pattern.permute.xlu0 1
        %872 = vperm.xlu0 %871, %v321
        %v873 = vpop.permute.xlu0 %872
        %875 = vset.pattern.permute.xlu0 1
        %876 = vperm.xlu0 %875, %v322
        %v877 = vpop.permute.xlu0 %876
        %v879 = vlaneseq
        %v880 = vshrl.u32 %v879, 7
        %v881 = vsub.s32 1, %v880
        %v882 = vrot.slane %v323, %v881
        %vm883 = vcmp.gt.f32.partialorder %v753, %v882
        %vm884 = vcmp.gt.f32.partialorder %v757, %v882
        %vm885 = vcmp.gt.f32.partialorder %v761, %v882
        %vm886 = vcmp.gt.f32.partialorder %v765, %v882
        %vm887 = vcmp.gt.f32.partialorder %v769, %v882
        %vm888 = vcmp.gt.f32.partialorder %v773, %v882
        %vm889 = vcmp.gt.f32.partialorder %v777, %v882
        %vm890 = vcmp.gt.f32.partialorder %v781, %v882
        %vm891 = vcmp.gt.f32.partialorder %v785, %v882
        %vm892 = vcmp.gt.f32.partialorder %v789, %v882
        %vm893 = vcmp.gt.f32.partialorder %v793, %v882
        %vm894 = vcmp.gt.f32.partialorder %v797, %v882
        %vm895 = vcmp.gt.f32.partialorder %v801, %v882
        %vm896 = vcmp.gt.f32.partialorder %v805, %v882
        %vm897 = vcmp.gt.f32.partialorder %v809, %v882
        %vm898 = vcmp.gt.f32.partialorder %v813, %v882
        %vm899 = vcmp.gt.f32.partialorder %v817, %v882
        %vm900 = vcmp.gt.f32.partialorder %v821, %v882
        %vm901 = vcmp.gt.f32.partialorder %v825, %v882
        %vm902 = vcmp.gt.f32.partialorder %v829, %v882
        %vm903 = vcmp.gt.f32.partialorder %v833, %v882
        %vm904 = vcmp.gt.f32.partialorder %v837, %v882
        %vm905 = vcmp.gt.f32.partialorder %v841, %v882
        %vm906 = vcmp.gt.f32.partialorder %v845, %v882
        %vm907 = vcmp.gt.f32.partialorder %v849, %v882
        %vm908 = vcmp.gt.f32.partialorder %v853, %v882
        %vm909 = vcmp.gt.f32.partialorder %v857, %v882
        %vm910 = vcmp.gt.f32.partialorder %v861, %v882
        %vm911 = vcmp.gt.f32.partialorder %v865, %v882
        %vm912 = vcmp.gt.f32.partialorder %v869, %v882
        %vm913 = vcmp.gt.f32.partialorder %v873, %v882
        %vm914 = vcmp.gt.f32.partialorder %v877, %v882
        %v915 = vsel %vm883, %v557, 0.0
        %v916 = vsel %vm884, %v557, 0.0
        %v917 = vsel %vm885, %v557, 0.0
        %v918 = vsel %vm886, %v557, 0.0
        %v919 = vsel %vm887, %v557, 0.0
        %v920 = vsel %vm888, %v557, 0.0
        %v921 = vsel %vm889, %v557, 0.0
        %v922 = vsel %vm890, %v557, 0.0
        %v923 = vsel %vm891, %v557, 0.0
        %v924 = vsel %vm892, %v557, 0.0
        %v925 = vsel %vm893, %v557, 0.0
        %v926 = vsel %vm894, %v557, 0.0
        %v927 = vsel %vm895, %v557, 0.0
        %v928 = vsel %vm896, %v557, 0.0
        %v929 = vsel %vm897, %v557, 0.0
        %v930 = vsel %vm898, %v557, 0.0
        %v931 = vsel %vm899, %v557, 0.0
        %v932 = vsel %vm900, %v557, 0.0
        %v933 = vsel %vm901, %v557, 0.0
        %v934 = vsel %vm902, %v557, 0.0
        %v935 = vsel %vm903, %v557, 0.0
        %v936 = vsel %vm904, %v557, 0.0
        %v937 = vsel %vm905, %v557, 0.0
        %v938 = vsel %vm906, %v557, 0.0
        %v939 = vsel %vm907, %v557, 0.0
        %v940 = vsel %vm908, %v557, 0.0
        %v941 = vsel %vm909, %v557, 0.0
        %v942 = vsel %vm910, %v557, 0.0
        %v943 = vsel %vm911, %v557, 0.0
        %v944 = vsel %vm912, %v557, 0.0
        %v945 = vsel %vm913, %v557, 0.0
        %v946 = vsel %vm914, %v557, 0.0
        %vm947 = vcmp.ge.f32.partialorder %v753, %v882
        %vm948 = vcmp.ge.f32.partialorder %v757, %v882
        %vm949 = vcmp.ge.f32.partialorder %v761, %v882
        %vm950 = vcmp.ge.f32.partialorder %v765, %v882
        %vm951 = vcmp.ge.f32.partialorder %v769, %v882
        %vm952 = vcmp.ge.f32.partialorder %v773, %v882
        %vm953 = vcmp.ge.f32.partialorder %v777, %v882
        %vm954 = vcmp.ge.f32.partialorder %v781, %v882
        %vm955 = vcmp.ge.f32.partialorder %v785, %v882
        %vm956 = vcmp.ge.f32.partialorder %v789, %v882
        %vm957 = vcmp.ge.f32.partialorder %v793, %v882
        %vm958 = vcmp.ge.f32.partialorder %v797, %v882
        %vm959 = vcmp.ge.f32.partialorder %v801, %v882
        %vm960 = vcmp.ge.f32.partialorder %v805, %v882
        %vm961 = vcmp.ge.f32.partialorder %v809, %v882
        %vm962 = vcmp.ge.f32.partialorder %v813, %v882
        %vm963 = vcmp.ge.f32.partialorder %v817, %v882
        %vm964 = vcmp.ge.f32.partialorder %v821, %v882
        %vm965 = vcmp.ge.f32.partialorder %v825, %v882
        %vm966 = vcmp.ge.f32.partialorder %v829, %v882
        %vm967 = vcmp.ge.f32.partialorder %v833, %v882
        %vm968 = vcmp.ge.f32.partialorder %v837, %v882
        %vm969 = vcmp.ge.f32.partialorder %v841, %v882
        %vm970 = vcmp.ge.f32.partialorder %v845, %v882
        %vm971 = vcmp.ge.f32.partialorder %v849, %v882
        %vm972 = vcmp.ge.f32.partialorder %v853, %v882
        %vm973 = vcmp.ge.f32.partialorder %v857, %v882
        %vm974 = vcmp.ge.f32.partialorder %v861, %v882
        %vm975 = vcmp.ge.f32.partialorder %v865, %v882
        %vm976 = vcmp.ge.f32.partialorder %v869, %v882
        %vm977 = vcmp.ge.f32.partialorder %v873, %v882
        %vm978 = vcmp.ge.f32.partialorder %v877, %v882
        %v979 = vsel %vm947, %v557, 0.0
        %v980 = vsel %vm948, %v557, 0.0
        %v981 = vsel %vm949, %v557, 0.0
        %v982 = vsel %vm950, %v557, 0.0
        %v983 = vsel %vm951, %v557, 0.0
        %v984 = vsel %vm952, %v557, 0.0
        %v985 = vsel %vm953, %v557, 0.0
        %v986 = vsel %vm954, %v557, 0.0
        %v987 = vsel %vm955, %v557, 0.0
        %v988 = vsel %vm956, %v557, 0.0
        %v989 = vsel %vm957, %v557, 0.0
        %v990 = vsel %vm958, %v557, 0.0
        %v991 = vsel %vm959, %v557, 0.0
        %v992 = vsel %vm960, %v557, 0.0
        %v993 = vsel %vm961, %v557, 0.0
        %v994 = vsel %vm962, %v557, 0.0
        %v995 = vsel %vm963, %v557, 0.0
        %v996 = vsel %vm964, %v557, 0.0
        %v997 = vsel %vm965, %v557, 0.0
        %v998 = vsel %vm966, %v557, 0.0
        %v999 = vsel %vm967, %v557, 0.0
        %v1000 = vsel %vm968, %v557, 0.0
        %v1001 = vsel %vm969, %v557, 0.0
        %v1002 = vsel %vm970, %v557, 0.0
        %v1003 = vsel %vm971, %v557, 0.0
        %v1004 = vsel %vm972, %v557, 0.0
        %v1005 = vsel %vm973, %v557, 0.0
        %v1006 = vsel %vm974, %v557, 0.0
        %v1007 = vsel %vm975, %v557, 0.0
        %v1008 = vsel %vm976, %v557, 0.0
        %v1009 = vsel %vm977, %v557, 0.0
        %v1010 = vsel %vm978, %v557, 0.0
        %v1011 = vadd.f32 %v915, %v979
        %v1012 = vadd.f32 %v916, %v980
        %v1013 = vadd.f32 %v917, %v981
        %v1014 = vadd.f32 %v918, %v982
        %v1015 = vadd.f32 %v919, %v983
        %v1016 = vadd.f32 %v920, %v984
        %v1017 = vadd.f32 %v921, %v985
        %v1018 = vadd.f32 %v922, %v986
        %v1019 = vadd.f32 %v923, %v987
        %v1020 = vadd.f32 %v924, %v988
        %v1021 = vadd.f32 %v925, %v989
        %v1022 = vadd.f32 %v926, %v990
        %v1023 = vadd.f32 %v927, %v991
        %v1024 = vadd.f32 %v928, %v992
        %v1025 = vadd.f32 %v929, %v993
        %v1026 = vadd.f32 %v930, %v994
        %v1027 = vadd.f32 %v931, %v995
        %v1028 = vadd.f32 %v932, %v996
        %v1029 = vadd.f32 %v933, %v997
        %v1030 = vadd.f32 %v934, %v998
        %v1031 = vadd.f32 %v935, %v999
        %v1032 = vadd.f32 %v936, %v1000
        %v1033 = vadd.f32 %v937, %v1001
        %v1034 = vadd.f32 %v938, %v1002
        %v1035 = vadd.f32 %v939, %v1003
        %v1036 = vadd.f32 %v940, %v1004
        %v1037 = vadd.f32 %v941, %v1005
        %v1038 = vadd.f32 %v942, %v1006
        %v1039 = vadd.f32 %v943, %v1007
        %v1040 = vadd.f32 %v944, %v1008
        %v1041 = vadd.f32 %v945, %v1009
        %v1042 = vadd.f32 %v946, %v1010
        %1043 = vadd.xlane.f32.xlu0 %v1011
        %v1044 = vpop.xlane.xlu0 %1043
        %1045 = vadd.xlane.f32.xlu0 %v1012
        %v1046 = vpop.xlane.xlu0 %1045
        %1047 = vadd.xlane.f32.xlu0 %v1013
        %v1048 = vpop.xlane.xlu0 %1047
        %1049 = vadd.xlane.f32.xlu0 %v1014
        %v1050 = vpop.xlane.xlu0 %1049
        %1051 = vadd.xlane.f32.xlu0 %v1015
        %v1052 = vpop.xlane.xlu0 %1051
        %1053 = vadd.xlane.f32.xlu0 %v1016
        %v1054 = vpop.xlane.xlu0 %1053
        %1055 = vadd.xlane.f32.xlu0 %v1017
        %v1056 = vpop.xlane.xlu0 %1055
        %1057 = vadd.xlane.f32.xlu0 %v1018
        %v1058 = vpop.xlane.xlu0 %1057
        %1059 = vadd.xlane.f32.xlu0 %v1019
        %v1060 = vpop.xlane.xlu0 %1059
        %1061 = vadd.xlane.f32.xlu0 %v1020
        %v1062 = vpop.xlane.xlu0 %1061
        %1063 = vadd.xlane.f32.xlu0 %v1021
        %v1064 = vpop.xlane.xlu0 %1063
        %1065 = vadd.xlane.f32.xlu0 %v1022
        %v1066 = vpop.xlane.xlu0 %1065
        %1067 = vadd.xlane.f32.xlu0 %v1023
        %v1068 = vpop.xlane.xlu0 %1067
        %1069 = vadd.xlane.f32.xlu0 %v1024
        %v1070 = vpop.xlane.xlu0 %1069
        %1071 = vadd.xlane.f32.xlu0 %v1025
        %v1072 = vpop.xlane.xlu0 %1071
        %1073 = vadd.xlane.f32.xlu0 %v1026
        %v1074 = vpop.xlane.xlu0 %1073
        %1075 = vadd.xlane.f32.xlu0 %v1027
        %v1076 = vpop.xlane.xlu0 %1075
        %1077 = vadd.xlane.f32.xlu0 %v1028
        %v1078 = vpop.xlane.xlu0 %1077
        %1079 = vadd.xlane.f32.xlu0 %v1029
        %v1080 = vpop.xlane.xlu0 %1079
        %1081 = vadd.xlane.f32.xlu0 %v1030
        %v1082 = vpop.xlane.xlu0 %1081
        %1083 = vadd.xlane.f32.xlu0 %v1031
        %v1084 = vpop.xlane.xlu0 %1083
        %1085 = vadd.xlane.f32.xlu0 %v1032
        %v1086 = vpop.xlane.xlu0 %1085
        %1087 = vadd.xlane.f32.xlu0 %v1033
        %v1088 = vpop.xlane.xlu0 %1087
        %1089 = vadd.xlane.f32.xlu0 %v1034
        %v1090 = vpop.xlane.xlu0 %1089
        %1091 = vadd.xlane.f32.xlu0 %v1035
        %v1092 = vpop.xlane.xlu0 %1091
        %1093 = vadd.xlane.f32.xlu0 %v1036
        %v1094 = vpop.xlane.xlu0 %1093
        %1095 = vadd.xlane.f32.xlu0 %v1037
        %v1096 = vpop.xlane.xlu0 %1095
        %1097 = vadd.xlane.f32.xlu0 %v1038
        %v1098 = vpop.xlane.xlu0 %1097
        %1099 = vadd.xlane.f32.xlu0 %v1039
        %v1100 = vpop.xlane.xlu0 %1099
        %1101 = vadd.xlane.f32.xlu0 %v1040
        %v1102 = vpop.xlane.xlu0 %1101
        %1103 = vadd.xlane.f32.xlu0 %v1041
        %v1104 = vpop.xlane.xlu0 %1103
        %1105 = vadd.xlane.f32.xlu0 %v1042
        %v1106 = vpop.xlane.xlu0 %1105
        %1107 = vset.pattern.permute.xlu0 2
        %1108 = vperm.xlu0 %1107, %v291
        %v1109 = vpop.permute.xlu0 %1108
        %1111 = vset.pattern.permute.xlu0 2
        %1112 = vperm.xlu0 %1111, %v292
        %v1113 = vpop.permute.xlu0 %1112
        %1115 = vset.pattern.permute.xlu0 2
        %1116 = vperm.xlu0 %1115, %v293
        %v1117 = vpop.permute.xlu0 %1116
        %1119 = vset.pattern.permute.xlu0 2
        %1120 = vperm.xlu0 %1119, %v294
        %v1121 = vpop.permute.xlu0 %1120
        %1123 = vset.pattern.permute.xlu0 2
        %1124 = vperm.xlu0 %1123, %v295
        %v1125 = vpop.permute.xlu0 %1124
        %1127 = vset.pattern.permute.xlu0 2
        %1128 = vperm.xlu0 %1127, %v296
        %v1129 = vpop.permute.xlu0 %1128
        %1131 = vset.pattern.permute.xlu0 2
        %1132 = vperm.xlu0 %1131, %v297
        %v1133 = vpop.permute.xlu0 %1132
        %1135 = vset.pattern.permute.xlu0 2
        %1136 = vperm.xlu0 %1135, %v298
        %v1137 = vpop.permute.xlu0 %1136
        %1139 = vset.pattern.permute.xlu0 2
        %1140 = vperm.xlu0 %1139, %v299
        %v1141 = vpop.permute.xlu0 %1140
        %1143 = vset.pattern.permute.xlu0 2
        %1144 = vperm.xlu0 %1143, %v300
        %v1145 = vpop.permute.xlu0 %1144
        %1147 = vset.pattern.permute.xlu0 2
        %1148 = vperm.xlu0 %1147, %v301
        %v1149 = vpop.permute.xlu0 %1148
        %1151 = vset.pattern.permute.xlu0 2
        %1152 = vperm.xlu0 %1151, %v302
        %v1153 = vpop.permute.xlu0 %1152
        %1155 = vset.pattern.permute.xlu0 2
        %1156 = vperm.xlu0 %1155, %v303
        %v1157 = vpop.permute.xlu0 %1156
        %1159 = vset.pattern.permute.xlu0 2
        %1160 = vperm.xlu0 %1159, %v304
        %v1161 = vpop.permute.xlu0 %1160
        %1163 = vset.pattern.permute.xlu0 2
        %1164 = vperm.xlu0 %1163, %v305
        %v1165 = vpop.permute.xlu0 %1164
        %1167 = vset.pattern.permute.xlu0 2
        %1168 = vperm.xlu0 %1167, %v306
        %v1169 = vpop.permute.xlu0 %1168
        %1171 = vset.pattern.permute.xlu0 2
        %1172 = vperm.xlu0 %1171, %v307
        %v1173 = vpop.permute.xlu0 %1172
        %1175 = vset.pattern.permute.xlu0 2
        %1176 = vperm.xlu0 %1175, %v308
        %v1177 = vpop.permute.xlu0 %1176
        %1179 = vset.pattern.permute.xlu0 2
        %1180 = vperm.xlu0 %1179, %v309
        %v1181 = vpop.permute.xlu0 %1180
        %1183 = vset.pattern.permute.xlu0 2
        %1184 = vperm.xlu0 %1183, %v310
        %v1185 = vpop.permute.xlu0 %1184
        %1187 = vset.pattern.permute.xlu0 2
        %1188 = vperm.xlu0 %1187, %v311
        %v1189 = vpop.permute.xlu0 %1188
        %1191 = vset.pattern.permute.xlu0 2
        %1192 = vperm.xlu0 %1191, %v312
        %v1193 = vpop.permute.xlu0 %1192
        %1195 = vset.pattern.permute.xlu0 2
        %1196 = vperm.xlu0 %1195, %v313
        %v1197 = vpop.permute.xlu0 %1196
        %1199 = vset.pattern.permute.xlu0 2
        %1200 = vperm.xlu0 %1199, %v314
        %v1201 = vpop.permute.xlu0 %1200
        %1203 = vset.pattern.permute.xlu0 2
        %1204 = vperm.xlu0 %1203, %v315
        %v1205 = vpop.permute.xlu0 %1204
        %1207 = vset.pattern.permute.xlu0 2
        %1208 = vperm.xlu0 %1207, %v316
        %v1209 = vpop.permute.xlu0 %1208
        %1211 = vset.pattern.permute.xlu0 2
        %1212 = vperm.xlu0 %1211, %v317
        %v1213 = vpop.permute.xlu0 %1212
        %1215 = vset.pattern.permute.xlu0 2
        %1216 = vperm.xlu0 %1215, %v318
        %v1217 = vpop.permute.xlu0 %1216
        %1219 = vset.pattern.permute.xlu0 2
        %1220 = vperm.xlu0 %1219, %v319
        %v1221 = vpop.permute.xlu0 %1220
        %1223 = vset.pattern.permute.xlu0 2
        %1224 = vperm.xlu0 %1223, %v320
        %v1225 = vpop.permute.xlu0 %1224
        %1227 = vset.pattern.permute.xlu0 2
        %1228 = vperm.xlu0 %1227, %v321
        %v1229 = vpop.permute.xlu0 %1228
        %1231 = vset.pattern.permute.xlu0 2
        %1232 = vperm.xlu0 %1231, %v322
        %v1233 = vpop.permute.xlu0 %1232
        %v1235 = vlaneseq
        %v1236 = vshrl.u32 %v1235, 7
        %v1237 = vsub.s32 2, %v1236
        %v1238 = vrot.slane %v323, %v1237
        %vm1239 = vcmp.gt.f32.partialorder %v1109, %v1238
        %vm1240 = vcmp.gt.f32.partialorder %v1113, %v1238
        %vm1241 = vcmp.gt.f32.partialorder %v1117, %v1238
        %vm1242 = vcmp.gt.f32.partialorder %v1121, %v1238
        %vm1243 = vcmp.gt.f32.partialorder %v1125, %v1238
        %vm1244 = vcmp.gt.f32.partialorder %v1129, %v1238
        %vm1245 = vcmp.gt.f32.partialorder %v1133, %v1238
        %vm1246 = vcmp.gt.f32.partialorder %v1137, %v1238
        %vm1247 = vcmp.gt.f32.partialorder %v1141, %v1238
        %vm1248 = vcmp.gt.f32.partialorder %v1145, %v1238
        %vm1249 = vcmp.gt.f32.partialorder %v1149, %v1238
        %vm1250 = vcmp.gt.f32.partialorder %v1153, %v1238
        %vm1251 = vcmp.gt.f32.partialorder %v1157, %v1238
        %vm1252 = vcmp.gt.f32.partialorder %v1161, %v1238
        %vm1253 = vcmp.gt.f32.partialorder %v1165, %v1238
        %vm1254 = vcmp.gt.f32.partialorder %v1169, %v1238
        %vm1255 = vcmp.gt.f32.partialorder %v1173, %v1238
        %vm1256 = vcmp.gt.f32.partialorder %v1177, %v1238
        %vm1257 = vcmp.gt.f32.partialorder %v1181, %v1238
        %vm1258 = vcmp.gt.f32.partialorder %v1185, %v1238
        %vm1259 = vcmp.gt.f32.partialorder %v1189, %v1238
        %vm1260 = vcmp.gt.f32.partialorder %v1193, %v1238
        %vm1261 = vcmp.gt.f32.partialorder %v1197, %v1238
        %vm1262 = vcmp.gt.f32.partialorder %v1201, %v1238
        %vm1263 = vcmp.gt.f32.partialorder %v1205, %v1238
        %vm1264 = vcmp.gt.f32.partialorder %v1209, %v1238
        %vm1265 = vcmp.gt.f32.partialorder %v1213, %v1238
        %vm1266 = vcmp.gt.f32.partialorder %v1217, %v1238
        %vm1267 = vcmp.gt.f32.partialorder %v1221, %v1238
        %vm1268 = vcmp.gt.f32.partialorder %v1225, %v1238
        %vm1269 = vcmp.gt.f32.partialorder %v1229, %v1238
        %vm1270 = vcmp.gt.f32.partialorder %v1233, %v1238
        %v1271 = vsel %vm1239, %v557, 0.0
        %v1272 = vsel %vm1240, %v557, 0.0
        %v1273 = vsel %vm1241, %v557, 0.0
        %v1274 = vsel %vm1242, %v557, 0.0
        %v1275 = vsel %vm1243, %v557, 0.0
        %v1276 = vsel %vm1244, %v557, 0.0
        %v1277 = vsel %vm1245, %v557, 0.0
        %v1278 = vsel %vm1246, %v557, 0.0
        %v1279 = vsel %vm1247, %v557, 0.0
        %v1280 = vsel %vm1248, %v557, 0.0
        %v1281 = vsel %vm1249, %v557, 0.0
        %v1282 = vsel %vm1250, %v557, 0.0
        %v1283 = vsel %vm1251, %v557, 0.0
        %v1284 = vsel %vm1252, %v557, 0.0
        %v1285 = vsel %vm1253, %v557, 0.0
        %v1286 = vsel %vm1254, %v557, 0.0
        %v1287 = vsel %vm1255, %v557, 0.0
        %v1288 = vsel %vm1256, %v557, 0.0
        %v1289 = vsel %vm1257, %v557, 0.0
        %v1290 = vsel %vm1258, %v557, 0.0
        %v1291 = vsel %vm1259, %v557, 0.0
        %v1292 = vsel %vm1260, %v557, 0.0
        %v1293 = vsel %vm1261, %v557, 0.0
        %v1294 = vsel %vm1262, %v557, 0.0
        %v1295 = vsel %vm1263, %v557, 0.0
        %v1296 = vsel %vm1264, %v557, 0.0
        %v1297 = vsel %vm1265, %v557, 0.0
        %v1298 = vsel %vm1266, %v557, 0.0
        %v1299 = vsel %vm1267, %v557, 0.0
        %v1300 = vsel %vm1268, %v557, 0.0
        %v1301 = vsel %vm1269, %v557, 0.0
        %v1302 = vsel %vm1270, %v557, 0.0
        %vm1303 = vcmp.ge.f32.partialorder %v1109, %v1238
        %vm1304 = vcmp.ge.f32.partialorder %v1113, %v1238
        %vm1305 = vcmp.ge.f32.partialorder %v1117, %v1238
        %vm1306 = vcmp.ge.f32.partialorder %v1121, %v1238
        %vm1307 = vcmp.ge.f32.partialorder %v1125, %v1238
        %vm1308 = vcmp.ge.f32.partialorder %v1129, %v1238
        %vm1309 = vcmp.ge.f32.partialorder %v1133, %v1238
        %vm1310 = vcmp.ge.f32.partialorder %v1137, %v1238
        %vm1311 = vcmp.ge.f32.partialorder %v1141, %v1238
        %vm1312 = vcmp.ge.f32.partialorder %v1145, %v1238
        %vm1313 = vcmp.ge.f32.partialorder %v1149, %v1238
        %vm1314 = vcmp.ge.f32.partialorder %v1153, %v1238
        %vm1315 = vcmp.ge.f32.partialorder %v1157, %v1238
        %vm1316 = vcmp.ge.f32.partialorder %v1161, %v1238
        %vm1317 = vcmp.ge.f32.partialorder %v1165, %v1238
        %vm1318 = vcmp.ge.f32.partialorder %v1169, %v1238
        %vm1319 = vcmp.ge.f32.partialorder %v1173, %v1238
        %vm1320 = vcmp.ge.f32.partialorder %v1177, %v1238
        %vm1321 = vcmp.ge.f32.partialorder %v1181, %v1238
        %vm1322 = vcmp.ge.f32.partialorder %v1185, %v1238
        %vm1323 = vcmp.ge.f32.partialorder %v1189, %v1238
        %vm1324 = vcmp.ge.f32.partialorder %v1193, %v1238
        %vm1325 = vcmp.ge.f32.partialorder %v1197, %v1238
        %vm1326 = vcmp.ge.f32.partialorder %v1201, %v1238
        %vm1327 = vcmp.ge.f32.partialorder %v1205, %v1238
        %vm1328 = vcmp.ge.f32.partialorder %v1209, %v1238
        %vm1329 = vcmp.ge.f32.partialorder %v1213, %v1238
        %vm1330 = vcmp.ge.f32.partialorder %v1217, %v1238
        %vm1331 = vcmp.ge.f32.partialorder %v1221, %v1238
        %vm1332 = vcmp.ge.f32.partialorder %v1225, %v1238
        %vm1333 = vcmp.ge.f32.partialorder %v1229, %v1238
        %vm1334 = vcmp.ge.f32.partialorder %v1233, %v1238
        %v1335 = vsel %vm1303, %v557, 0.0
        %v1336 = vsel %vm1304, %v557, 0.0
        %v1337 = vsel %vm1305, %v557, 0.0
        %v1338 = vsel %vm1306, %v557, 0.0
        %v1339 = vsel %vm1307, %v557, 0.0
        %v1340 = vsel %vm1308, %v557, 0.0
        %v1341 = vsel %vm1309, %v557, 0.0
        %v1342 = vsel %vm1310, %v557, 0.0
        %v1343 = vsel %vm1311, %v557, 0.0
        %v1344 = vsel %vm1312, %v557, 0.0
        %v1345 = vsel %vm1313, %v557, 0.0
        %v1346 = vsel %vm1314, %v557, 0.0
        %v1347 = vsel %vm1315, %v557, 0.0
        %v1348 = vsel %vm1316, %v557, 0.0
        %v1349 = vsel %vm1317, %v557, 0.0
        %v1350 = vsel %vm1318, %v557, 0.0
        %v1351 = vsel %vm1319, %v557, 0.0
        %v1352 = vsel %vm1320, %v557, 0.0
        %v1353 = vsel %vm1321, %v557, 0.0
        %v1354 = vsel %vm1322, %v557, 0.0
        %v1355 = vsel %vm1323, %v557, 0.0
        %v1356 = vsel %vm1324, %v557, 0.0
        %v1357 = vsel %vm1325, %v557, 0.0
        %v1358 = vsel %vm1326, %v557, 0.0
        %v1359 = vsel %vm1327, %v557, 0.0
        %v1360 = vsel %vm1328, %v557, 0.0
        %v1361 = vsel %vm1329, %v557, 0.0
        %v1362 = vsel %vm1330, %v557, 0.0
        %v1363 = vsel %vm1331, %v557, 0.0
        %v1364 = vsel %vm1332, %v557, 0.0
        %v1365 = vsel %vm1333, %v557, 0.0
        %v1366 = vsel %vm1334, %v557, 0.0
        %v1367 = vadd.f32 %v1271, %v1335
        %v1368 = vadd.f32 %v1272, %v1336
        %v1369 = vadd.f32 %v1273, %v1337
        %v1370 = vadd.f32 %v1274, %v1338
        %v1371 = vadd.f32 %v1275, %v1339
        %v1372 = vadd.f32 %v1276, %v1340
        %v1373 = vadd.f32 %v1277, %v1341
        %v1374 = vadd.f32 %v1278, %v1342
        %v1375 = vadd.f32 %v1279, %v1343
        %v1376 = vadd.f32 %v1280, %v1344
        %v1377 = vadd.f32 %v1281, %v1345
        %v1378 = vadd.f32 %v1282, %v1346
        %v1379 = vadd.f32 %v1283, %v1347
        %v1380 = vadd.f32 %v1284, %v1348
        %v1381 = vadd.f32 %v1285, %v1349
        %v1382 = vadd.f32 %v1286, %v1350
        %v1383 = vadd.f32 %v1287, %v1351
        %v1384 = vadd.f32 %v1288, %v1352
        %v1385 = vadd.f32 %v1289, %v1353
        %v1386 = vadd.f32 %v1290, %v1354
        %v1387 = vadd.f32 %v1291, %v1355
        %v1388 = vadd.f32 %v1292, %v1356
        %v1389 = vadd.f32 %v1293, %v1357
        %v1390 = vadd.f32 %v1294, %v1358
        %v1391 = vadd.f32 %v1295, %v1359
        %v1392 = vadd.f32 %v1296, %v1360
        %v1393 = vadd.f32 %v1297, %v1361
        %v1394 = vadd.f32 %v1298, %v1362
        %v1395 = vadd.f32 %v1299, %v1363
        %v1396 = vadd.f32 %v1300, %v1364
        %v1397 = vadd.f32 %v1301, %v1365
        %v1398 = vadd.f32 %v1302, %v1366
        %1399 = vadd.xlane.f32.xlu0 %v1367
        %v1400 = vpop.xlane.xlu0 %1399
        %1401 = vadd.xlane.f32.xlu0 %v1368
        %v1402 = vpop.xlane.xlu0 %1401
        %1403 = vadd.xlane.f32.xlu0 %v1369
        %v1404 = vpop.xlane.xlu0 %1403
        %1405 = vadd.xlane.f32.xlu0 %v1370
        %v1406 = vpop.xlane.xlu0 %1405
        %1407 = vadd.xlane.f32.xlu0 %v1371
        %v1408 = vpop.xlane.xlu0 %1407
        %1409 = vadd.xlane.f32.xlu0 %v1372
        %v1410 = vpop.xlane.xlu0 %1409
        %1411 = vadd.xlane.f32.xlu0 %v1373
        %v1412 = vpop.xlane.xlu0 %1411
        %1413 = vadd.xlane.f32.xlu0 %v1374
        %v1414 = vpop.xlane.xlu0 %1413
        %1415 = vadd.xlane.f32.xlu0 %v1375
        %v1416 = vpop.xlane.xlu0 %1415
        %1417 = vadd.xlane.f32.xlu0 %v1376
        %v1418 = vpop.xlane.xlu0 %1417
        %1419 = vadd.xlane.f32.xlu0 %v1377
        %v1420 = vpop.xlane.xlu0 %1419
        %1421 = vadd.xlane.f32.xlu0 %v1378
        %v1422 = vpop.xlane.xlu0 %1421
        %1423 = vadd.xlane.f32.xlu0 %v1379
        %v1424 = vpop.xlane.xlu0 %1423
        %1425 = vadd.xlane.f32.xlu0 %v1380
        %v1426 = vpop.xlane.xlu0 %1425
        %1427 = vadd.xlane.f32.xlu0 %v1381
        %v1428 = vpop.xlane.xlu0 %1427
        %1429 = vadd.xlane.f32.xlu0 %v1382
        %v1430 = vpop.xlane.xlu0 %1429
        %1431 = vadd.xlane.f32.xlu0 %v1383
        %v1432 = vpop.xlane.xlu0 %1431
        %1433 = vadd.xlane.f32.xlu0 %v1384
        %v1434 = vpop.xlane.xlu0 %1433
        %1435 = vadd.xlane.f32.xlu0 %v1385
        %v1436 = vpop.xlane.xlu0 %1435
        %1437 = vadd.xlane.f32.xlu0 %v1386
        %v1438 = vpop.xlane.xlu0 %1437
        %1439 = vadd.xlane.f32.xlu0 %v1387
        %v1440 = vpop.xlane.xlu0 %1439
        %1441 = vadd.xlane.f32.xlu0 %v1388
        %v1442 = vpop.xlane.xlu0 %1441
        %1443 = vadd.xlane.f32.xlu0 %v1389
        %v1444 = vpop.xlane.xlu0 %1443
        %1445 = vadd.xlane.f32.xlu0 %v1390
        %v1446 = vpop.xlane.xlu0 %1445
        %1447 = vadd.xlane.f32.xlu0 %v1391
        %v1448 = vpop.xlane.xlu0 %1447
        %1449 = vadd.xlane.f32.xlu0 %v1392
        %v1450 = vpop.xlane.xlu0 %1449
        %1451 = vadd.xlane.f32.xlu0 %v1393
        %v1452 = vpop.xlane.xlu0 %1451
        %1453 = vadd.xlane.f32.xlu0 %v1394
        %v1454 = vpop.xlane.xlu0 %1453
        %1455 = vadd.xlane.f32.xlu0 %v1395
        %v1456 = vpop.xlane.xlu0 %1455
        %1457 = vadd.xlane.f32.xlu0 %v1396
        %v1458 = vpop.xlane.xlu0 %1457
        %1459 = vadd.xlane.f32.xlu0 %v1397
        %v1460 = vpop.xlane.xlu0 %1459
        %1461 = vadd.xlane.f32.xlu0 %v1398
        %v1462 = vpop.xlane.xlu0 %1461
        %1463 = vset.pattern.permute.xlu0 3
        %1464 = vperm.xlu0 %1463, %v291
        %v1465 = vpop.permute.xlu0 %1464
        %1467 = vset.pattern.permute.xlu0 3
        %1468 = vperm.xlu0 %1467, %v292
        %v1469 = vpop.permute.xlu0 %1468
        %1471 = vset.pattern.permute.xlu0 3
        %1472 = vperm.xlu0 %1471, %v293
        %v1473 = vpop.permute.xlu0 %1472
        %1475 = vset.pattern.permute.xlu0 3
        %1476 = vperm.xlu0 %1475, %v294
        %v1477 = vpop.permute.xlu0 %1476
        %1479 = vset.pattern.permute.xlu0 3
        %1480 = vperm.xlu0 %1479, %v295
        %v1481 = vpop.permute.xlu0 %1480
        %1483 = vset.pattern.permute.xlu0 3
        %1484 = vperm.xlu0 %1483, %v296
        %v1485 = vpop.permute.xlu0 %1484
        %1487 = vset.pattern.permute.xlu0 3
        %1488 = vperm.xlu0 %1487, %v297
        %v1489 = vpop.permute.xlu0 %1488
        %1491 = vset.pattern.permute.xlu0 3
        %1492 = vperm.xlu0 %1491, %v298
        %v1493 = vpop.permute.xlu0 %1492
        %1495 = vset.pattern.permute.xlu0 3
        %1496 = vperm.xlu0 %1495, %v299
        %v1497 = vpop.permute.xlu0 %1496
        %1499 = vset.pattern.permute.xlu0 3
        %1500 = vperm.xlu0 %1499, %v300
        %v1501 = vpop.permute.xlu0 %1500
        %1503 = vset.pattern.permute.xlu0 3
        %1504 = vperm.xlu0 %1503, %v301
        %v1505 = vpop.permute.xlu0 %1504
        %1507 = vset.pattern.permute.xlu0 3
        %1508 = vperm.xlu0 %1507, %v302
        %v1509 = vpop.permute.xlu0 %1508
        %1511 = vset.pattern.permute.xlu0 3
        %1512 = vperm.xlu0 %1511, %v303
        %v1513 = vpop.permute.xlu0 %1512
        %1515 = vset.pattern.permute.xlu0 3
        %1516 = vperm.xlu0 %1515, %v304
        %v1517 = vpop.permute.xlu0 %1516
        %1519 = vset.pattern.permute.xlu0 3
        %1520 = vperm.xlu0 %1519, %v305
        %v1521 = vpop.permute.xlu0 %1520
        %1523 = vset.pattern.permute.xlu0 3
        %1524 = vperm.xlu0 %1523, %v306
        %v1525 = vpop.permute.xlu0 %1524
        %1527 = vset.pattern.permute.xlu0 3
        %1528 = vperm.xlu0 %1527, %v307
        %v1529 = vpop.permute.xlu0 %1528
        %1531 = vset.pattern.permute.xlu0 3
        %1532 = vperm.xlu0 %1531, %v308
        %v1533 = vpop.permute.xlu0 %1532
        %1535 = vset.pattern.permute.xlu0 3
        %1536 = vperm.xlu0 %1535, %v309
        %v1537 = vpop.permute.xlu0 %1536
        %1539 = vset.pattern.permute.xlu0 3
        %1540 = vperm.xlu0 %1539, %v310
        %v1541 = vpop.permute.xlu0 %1540
        %1543 = vset.pattern.permute.xlu0 3
        %1544 = vperm.xlu0 %1543, %v311
        %v1545 = vpop.permute.xlu0 %1544
        %1547 = vset.pattern.permute.xlu0 3
        %1548 = vperm.xlu0 %1547, %v312
        %v1549 = vpop.permute.xlu0 %1548
        %1551 = vset.pattern.permute.xlu0 3
        %1552 = vperm.xlu0 %1551, %v313
        %v1553 = vpop.permute.xlu0 %1552
        %1555 = vset.pattern.permute.xlu0 3
        %1556 = vperm.xlu0 %1555, %v314
        %v1557 = vpop.permute.xlu0 %1556
        %1559 = vset.pattern.permute.xlu0 3
        %1560 = vperm.xlu0 %1559, %v315
        %v1561 = vpop.permute.xlu0 %1560
        %1563 = vset.pattern.permute.xlu0 3
        %1564 = vperm.xlu0 %1563, %v316
        %v1565 = vpop.permute.xlu0 %1564
        %1567 = vset.pattern.permute.xlu0 3
        %1568 = vperm.xlu0 %1567, %v317
        %v1569 = vpop.permute.xlu0 %1568
        %1571 = vset.pattern.permute.xlu0 3
        %1572 = vperm.xlu0 %1571, %v318
        %v1573 = vpop.permute.xlu0 %1572
        %1575 = vset.pattern.permute.xlu0 3
        %1576 = vperm.xlu0 %1575, %v319
        %v1577 = vpop.permute.xlu0 %1576
        %1579 = vset.pattern.permute.xlu0 3
        %1580 = vperm.xlu0 %1579, %v320
        %v1581 = vpop.permute.xlu0 %1580
        %1583 = vset.pattern.permute.xlu0 3
        %1584 = vperm.xlu0 %1583, %v321
        %v1585 = vpop.permute.xlu0 %1584
        %1587 = vset.pattern.permute.xlu0 3
        %1588 = vperm.xlu0 %1587, %v322
        %v1589 = vpop.permute.xlu0 %1588
        %v1591 = vlaneseq
        %v1592 = vshrl.u32 %v1591, 7
        %v1593 = vsub.s32 3, %v1592
        %v1594 = vrot.slane %v323, %v1593
        %vm1595 = vcmp.gt.f32.partialorder %v1465, %v1594
        %vm1596 = vcmp.gt.f32.partialorder %v1469, %v1594
        %vm1597 = vcmp.gt.f32.partialorder %v1473, %v1594
        %vm1598 = vcmp.gt.f32.partialorder %v1477, %v1594
        %vm1599 = vcmp.gt.f32.partialorder %v1481, %v1594
        %vm1600 = vcmp.gt.f32.partialorder %v1485, %v1594
        %vm1601 = vcmp.gt.f32.partialorder %v1489, %v1594
        %vm1602 = vcmp.gt.f32.partialorder %v1493, %v1594
        %vm1603 = vcmp.gt.f32.partialorder %v1497, %v1594
        %vm1604 = vcmp.gt.f32.partialorder %v1501, %v1594
        %vm1605 = vcmp.gt.f32.partialorder %v1505, %v1594
        %vm1606 = vcmp.gt.f32.partialorder %v1509, %v1594
        %vm1607 = vcmp.gt.f32.partialorder %v1513, %v1594
        %vm1608 = vcmp.gt.f32.partialorder %v1517, %v1594
        %vm1609 = vcmp.gt.f32.partialorder %v1521, %v1594
        %vm1610 = vcmp.gt.f32.partialorder %v1525, %v1594
        %vm1611 = vcmp.gt.f32.partialorder %v1529, %v1594
        %vm1612 = vcmp.gt.f32.partialorder %v1533, %v1594
        %vm1613 = vcmp.gt.f32.partialorder %v1537, %v1594
        %vm1614 = vcmp.gt.f32.partialorder %v1541, %v1594
        %vm1615 = vcmp.gt.f32.partialorder %v1545, %v1594
        %vm1616 = vcmp.gt.f32.partialorder %v1549, %v1594
        %vm1617 = vcmp.gt.f32.partialorder %v1553, %v1594
        %vm1618 = vcmp.gt.f32.partialorder %v1557, %v1594
        %vm1619 = vcmp.gt.f32.partialorder %v1561, %v1594
        %vm1620 = vcmp.gt.f32.partialorder %v1565, %v1594
        %vm1621 = vcmp.gt.f32.partialorder %v1569, %v1594
        %vm1622 = vcmp.gt.f32.partialorder %v1573, %v1594
        %vm1623 = vcmp.gt.f32.partialorder %v1577, %v1594
        %vm1624 = vcmp.gt.f32.partialorder %v1581, %v1594
        %vm1625 = vcmp.gt.f32.partialorder %v1585, %v1594
        %vm1626 = vcmp.gt.f32.partialorder %v1589, %v1594
        %v1627 = vsel %vm1595, %v557, 0.0
        %v1628 = vsel %vm1596, %v557, 0.0
        %v1629 = vsel %vm1597, %v557, 0.0
        %v1630 = vsel %vm1598, %v557, 0.0
        %v1631 = vsel %vm1599, %v557, 0.0
        %v1632 = vsel %vm1600, %v557, 0.0
        %v1633 = vsel %vm1601, %v557, 0.0
        %v1634 = vsel %vm1602, %v557, 0.0
        %v1635 = vsel %vm1603, %v557, 0.0
        %v1636 = vsel %vm1604, %v557, 0.0
        %v1637 = vsel %vm1605, %v557, 0.0
        %v1638 = vsel %vm1606, %v557, 0.0
        %v1639 = vsel %vm1607, %v557, 0.0
        %v1640 = vsel %vm1608, %v557, 0.0
        %v1641 = vsel %vm1609, %v557, 0.0
        %v1642 = vsel %vm1610, %v557, 0.0
        %v1643 = vsel %vm1611, %v557, 0.0
        %v1644 = vsel %vm1612, %v557, 0.0
        %v1645 = vsel %vm1613, %v557, 0.0
        %v1646 = vsel %vm1614, %v557, 0.0
        %v1647 = vsel %vm1615, %v557, 0.0
        %v1648 = vsel %vm1616, %v557, 0.0
        %v1649 = vsel %vm1617, %v557, 0.0
        %v1650 = vsel %vm1618, %v557, 0.0
        %v1651 = vsel %vm1619, %v557, 0.0
        %v1652 = vsel %vm1620, %v557, 0.0
        %v1653 = vsel %vm1621, %v557, 0.0
        %v1654 = vsel %vm1622, %v557, 0.0
        %v1655 = vsel %vm1623, %v557, 0.0
        %v1656 = vsel %vm1624, %v557, 0.0
        %v1657 = vsel %vm1625, %v557, 0.0
        %v1658 = vsel %vm1626, %v557, 0.0
        %vm1659 = vcmp.ge.f32.partialorder %v1465, %v1594
        %vm1660 = vcmp.ge.f32.partialorder %v1469, %v1594
        %vm1661 = vcmp.ge.f32.partialorder %v1473, %v1594
        %vm1662 = vcmp.ge.f32.partialorder %v1477, %v1594
        %vm1663 = vcmp.ge.f32.partialorder %v1481, %v1594
        %vm1664 = vcmp.ge.f32.partialorder %v1485, %v1594
        %vm1665 = vcmp.ge.f32.partialorder %v1489, %v1594
        %vm1666 = vcmp.ge.f32.partialorder %v1493, %v1594
        %vm1667 = vcmp.ge.f32.partialorder %v1497, %v1594
        %vm1668 = vcmp.ge.f32.partialorder %v1501, %v1594
        %vm1669 = vcmp.ge.f32.partialorder %v1505, %v1594
        %vm1670 = vcmp.ge.f32.partialorder %v1509, %v1594
        %vm1671 = vcmp.ge.f32.partialorder %v1513, %v1594
        %vm1672 = vcmp.ge.f32.partialorder %v1517, %v1594
        %vm1673 = vcmp.ge.f32.partialorder %v1521, %v1594
        %vm1674 = vcmp.ge.f32.partialorder %v1525, %v1594
        %vm1675 = vcmp.ge.f32.partialorder %v1529, %v1594
        %vm1676 = vcmp.ge.f32.partialorder %v1533, %v1594
        %vm1677 = vcmp.ge.f32.partialorder %v1537, %v1594
        %vm1678 = vcmp.ge.f32.partialorder %v1541, %v1594
        %vm1679 = vcmp.ge.f32.partialorder %v1545, %v1594
        %vm1680 = vcmp.ge.f32.partialorder %v1549, %v1594
        %vm1681 = vcmp.ge.f32.partialorder %v1553, %v1594
        %vm1682 = vcmp.ge.f32.partialorder %v1557, %v1594
        %vm1683 = vcmp.ge.f32.partialorder %v1561, %v1594
        %vm1684 = vcmp.ge.f32.partialorder %v1565, %v1594
        %vm1685 = vcmp.ge.f32.partialorder %v1569, %v1594
        %vm1686 = vcmp.ge.f32.partialorder %v1573, %v1594
        %vm1687 = vcmp.ge.f32.partialorder %v1577, %v1594
        %vm1688 = vcmp.ge.f32.partialorder %v1581, %v1594
        %vm1689 = vcmp.ge.f32.partialorder %v1585, %v1594
        %vm1690 = vcmp.ge.f32.partialorder %v1589, %v1594
        %v1691 = vsel %vm1659, %v557, 0.0
        %v1692 = vsel %vm1660, %v557, 0.0
        %v1693 = vsel %vm1661, %v557, 0.0
        %v1694 = vsel %vm1662, %v557, 0.0
        %v1695 = vsel %vm1663, %v557, 0.0
        %v1696 = vsel %vm1664, %v557, 0.0
        %v1697 = vsel %vm1665, %v557, 0.0
        %v1698 = vsel %vm1666, %v557, 0.0
        %v1699 = vsel %vm1667, %v557, 0.0
        %v1700 = vsel %vm1668, %v557, 0.0
        %v1701 = vsel %vm1669, %v557, 0.0
        %v1702 = vsel %vm1670, %v557, 0.0
        %v1703 = vsel %vm1671, %v557, 0.0
        %v1704 = vsel %vm1672, %v557, 0.0
        %v1705 = vsel %vm1673, %v557, 0.0
        %v1706 = vsel %vm1674, %v557, 0.0
        %v1707 = vsel %vm1675, %v557, 0.0
        %v1708 = vsel %vm1676, %v557, 0.0
        %v1709 = vsel %vm1677, %v557, 0.0
        %v1710 = vsel %vm1678, %v557, 0.0
        %v1711 = vsel %vm1679, %v557, 0.0
        %v1712 = vsel %vm1680, %v557, 0.0
        %v1713 = vsel %vm1681, %v557, 0.0
        %v1714 = vsel %vm1682, %v557, 0.0
        %v1715 = vsel %vm1683, %v557, 0.0
        %v1716 = vsel %vm1684, %v557, 0.0
        %v1717 = vsel %vm1685, %v557, 0.0
        %v1718 = vsel %vm1686, %v557, 0.0
        %v1719 = vsel %vm1687, %v557, 0.0
        %v1720 = vsel %vm1688, %v557, 0.0
        %v1721 = vsel %vm1689, %v557, 0.0
        %v1722 = vsel %vm1690, %v557, 0.0
        %v1723 = vadd.f32 %v1627, %v1691
        %v1724 = vadd.f32 %v1628, %v1692
        %v1725 = vadd.f32 %v1629, %v1693
        %v1726 = vadd.f32 %v1630, %v1694
        %v1727 = vadd.f32 %v1631, %v1695
        %v1728 = vadd.f32 %v1632, %v1696
        %v1729 = vadd.f32 %v1633, %v1697
        %v1730 = vadd.f32 %v1634, %v1698
        %v1731 = vadd.f32 %v1635, %v1699
        %v1732 = vadd.f32 %v1636, %v1700
        %v1733 = vadd.f32 %v1637, %v1701
        %v1734 = vadd.f32 %v1638, %v1702
        %v1735 = vadd.f32 %v1639, %v1703
        %v1736 = vadd.f32 %v1640, %v1704
        %v1737 = vadd.f32 %v1641, %v1705
        %v1738 = vadd.f32 %v1642, %v1706
        %v1739 = vadd.f32 %v1643, %v1707
        %v1740 = vadd.f32 %v1644, %v1708
        %v1741 = vadd.f32 %v1645, %v1709
        %v1742 = vadd.f32 %v1646, %v1710
        %v1743 = vadd.f32 %v1647, %v1711
        %v1744 = vadd.f32 %v1648, %v1712
        %v1745 = vadd.f32 %v1649, %v1713
        %v1746 = vadd.f32 %v1650, %v1714
        %v1747 = vadd.f32 %v1651, %v1715
        %v1748 = vadd.f32 %v1652, %v1716
        %v1749 = vadd.f32 %v1653, %v1717
        %v1750 = vadd.f32 %v1654, %v1718
        %v1751 = vadd.f32 %v1655, %v1719
        %v1752 = vadd.f32 %v1656, %v1720
        %v1753 = vadd.f32 %v1657, %v1721
        %v1754 = vadd.f32 %v1658, %v1722
        %1755 = vadd.xlane.f32.xlu0 %v1723
        %v1756 = vpop.xlane.xlu0 %1755
        %1757 = vadd.xlane.f32.xlu0 %v1724
        %v1758 = vpop.xlane.xlu0 %1757
        %1759 = vadd.xlane.f32.xlu0 %v1725
        %v1760 = vpop.xlane.xlu0 %1759
        %1761 = vadd.xlane.f32.xlu0 %v1726
        %v1762 = vpop.xlane.xlu0 %1761
        %1763 = vadd.xlane.f32.xlu0 %v1727
        %v1764 = vpop.xlane.xlu0 %1763
        %1765 = vadd.xlane.f32.xlu0 %v1728
        %v1766 = vpop.xlane.xlu0 %1765
        %1767 = vadd.xlane.f32.xlu0 %v1729
        %v1768 = vpop.xlane.xlu0 %1767
        %1769 = vadd.xlane.f32.xlu0 %v1730
        %v1770 = vpop.xlane.xlu0 %1769
        %1771 = vadd.xlane.f32.xlu0 %v1731
        %v1772 = vpop.xlane.xlu0 %1771
        %1773 = vadd.xlane.f32.xlu0 %v1732
        %v1774 = vpop.xlane.xlu0 %1773
        %1775 = vadd.xlane.f32.xlu0 %v1733
        %v1776 = vpop.xlane.xlu0 %1775
        %1777 = vadd.xlane.f32.xlu0 %v1734
        %v1778 = vpop.xlane.xlu0 %1777
        %1779 = vadd.xlane.f32.xlu0 %v1735
        %v1780 = vpop.xlane.xlu0 %1779
        %1781 = vadd.xlane.f32.xlu0 %v1736
        %v1782 = vpop.xlane.xlu0 %1781
        %1783 = vadd.xlane.f32.xlu0 %v1737
        %v1784 = vpop.xlane.xlu0 %1783
        %1785 = vadd.xlane.f32.xlu0 %v1738
        %v1786 = vpop.xlane.xlu0 %1785
        %1787 = vadd.xlane.f32.xlu0 %v1739
        %v1788 = vpop.xlane.xlu0 %1787
        %1789 = vadd.xlane.f32.xlu0 %v1740
        %v1790 = vpop.xlane.xlu0 %1789
        %1791 = vadd.xlane.f32.xlu0 %v1741
        %v1792 = vpop.xlane.xlu0 %1791
        %1793 = vadd.xlane.f32.xlu0 %v1742
        %v1794 = vpop.xlane.xlu0 %1793
        %1795 = vadd.xlane.f32.xlu0 %v1743
        %v1796 = vpop.xlane.xlu0 %1795
        %1797 = vadd.xlane.f32.xlu0 %v1744
        %v1798 = vpop.xlane.xlu0 %1797
        %1799 = vadd.xlane.f32.xlu0 %v1745
        %v1800 = vpop.xlane.xlu0 %1799
        %1801 = vadd.xlane.f32.xlu0 %v1746
        %v1802 = vpop.xlane.xlu0 %1801
        %1803 = vadd.xlane.f32.xlu0 %v1747
        %v1804 = vpop.xlane.xlu0 %1803
        %1805 = vadd.xlane.f32.xlu0 %v1748
        %v1806 = vpop.xlane.xlu0 %1805
        %1807 = vadd.xlane.f32.xlu0 %v1749
        %v1808 = vpop.xlane.xlu0 %1807
        %1809 = vadd.xlane.f32.xlu0 %v1750
        %v1810 = vpop.xlane.xlu0 %1809
        %1811 = vadd.xlane.f32.xlu0 %v1751
        %v1812 = vpop.xlane.xlu0 %1811
        %1813 = vadd.xlane.f32.xlu0 %v1752
        %v1814 = vpop.xlane.xlu0 %1813
        %1815 = vadd.xlane.f32.xlu0 %v1753
        %v1816 = vpop.xlane.xlu0 %1815
        %1817 = vadd.xlane.f32.xlu0 %v1754
        %v1818 = vpop.xlane.xlu0 %1817
        %1819 = vset.pattern.permute.xlu0 4
        %1820 = vperm.xlu0 %1819, %v291
        %v1821 = vpop.permute.xlu0 %1820
        %1823 = vset.pattern.permute.xlu0 4
        %1824 = vperm.xlu0 %1823, %v292
        %v1825 = vpop.permute.xlu0 %1824
        %1827 = vset.pattern.permute.xlu0 4
        %1828 = vperm.xlu0 %1827, %v293
        %v1829 = vpop.permute.xlu0 %1828
        %1831 = vset.pattern.permute.xlu0 4
        %1832 = vperm.xlu0 %1831, %v294
        %v1833 = vpop.permute.xlu0 %1832
        %1835 = vset.pattern.permute.xlu0 4
        %1836 = vperm.xlu0 %1835, %v295
        %v1837 = vpop.permute.xlu0 %1836
        %1839 = vset.pattern.permute.xlu0 4
        %1840 = vperm.xlu0 %1839, %v296
        %v1841 = vpop.permute.xlu0 %1840
        %1843 = vset.pattern.permute.xlu0 4
        %1844 = vperm.xlu0 %1843, %v297
        %v1845 = vpop.permute.xlu0 %1844
        %1847 = vset.pattern.permute.xlu0 4
        %1848 = vperm.xlu0 %1847, %v298
        %v1849 = vpop.permute.xlu0 %1848
        %1851 = vset.pattern.permute.xlu0 4
        %1852 = vperm.xlu0 %1851, %v299
        %v1853 = vpop.permute.xlu0 %1852
        %1855 = vset.pattern.permute.xlu0 4
        %1856 = vperm.xlu0 %1855, %v300
        %v1857 = vpop.permute.xlu0 %1856
        %1859 = vset.pattern.permute.xlu0 4
        %1860 = vperm.xlu0 %1859, %v301
        %v1861 = vpop.permute.xlu0 %1860
        %1863 = vset.pattern.permute.xlu0 4
        %1864 = vperm.xlu0 %1863, %v302
        %v1865 = vpop.permute.xlu0 %1864
        %1867 = vset.pattern.permute.xlu0 4
        %1868 = vperm.xlu0 %1867, %v303
        %v1869 = vpop.permute.xlu0 %1868
        %1871 = vset.pattern.permute.xlu0 4
        %1872 = vperm.xlu0 %1871, %v304
        %v1873 = vpop.permute.xlu0 %1872
        %1875 = vset.pattern.permute.xlu0 4
        %1876 = vperm.xlu0 %1875, %v305
        %v1877 = vpop.permute.xlu0 %1876
        %1879 = vset.pattern.permute.xlu0 4
        %1880 = vperm.xlu0 %1879, %v306
        %v1881 = vpop.permute.xlu0 %1880
        %1883 = vset.pattern.permute.xlu0 4
        %1884 = vperm.xlu0 %1883, %v307
        %v1885 = vpop.permute.xlu0 %1884
        %1887 = vset.pattern.permute.xlu0 4
        %1888 = vperm.xlu0 %1887, %v308
        %v1889 = vpop.permute.xlu0 %1888
        %1891 = vset.pattern.permute.xlu0 4
        %1892 = vperm.xlu0 %1891, %v309
        %v1893 = vpop.permute.xlu0 %1892
        %1895 = vset.pattern.permute.xlu0 4
        %1896 = vperm.xlu0 %1895, %v310
        %v1897 = vpop.permute.xlu0 %1896
        %1899 = vset.pattern.permute.xlu0 4
        %1900 = vperm.xlu0 %1899, %v311
        %v1901 = vpop.permute.xlu0 %1900
        %1903 = vset.pattern.permute.xlu0 4
        %1904 = vperm.xlu0 %1903, %v312
        %v1905 = vpop.permute.xlu0 %1904
        %1907 = vset.pattern.permute.xlu0 4
        %1908 = vperm.xlu0 %1907, %v313
        %v1909 = vpop.permute.xlu0 %1908
        %1911 = vset.pattern.permute.xlu0 4
        %1912 = vperm.xlu0 %1911, %v314
        %v1913 = vpop.permute.xlu0 %1912
        %1915 = vset.pattern.permute.xlu0 4
        %1916 = vperm.xlu0 %1915, %v315
        %v1917 = vpop.permute.xlu0 %1916
        %1919 = vset.pattern.permute.xlu0 4
        %1920 = vperm.xlu0 %1919, %v316
        %v1921 = vpop.permute.xlu0 %1920
        %1923 = vset.pattern.permute.xlu0 4
        %1924 = vperm.xlu0 %1923, %v317
        %v1925 = vpop.permute.xlu0 %1924
        %1927 = vset.pattern.permute.xlu0 4
        %1928 = vperm.xlu0 %1927, %v318
        %v1929 = vpop.permute.xlu0 %1928
        %1931 = vset.pattern.permute.xlu0 4
        %1932 = vperm.xlu0 %1931, %v319
        %v1933 = vpop.permute.xlu0 %1932
        %1935 = vset.pattern.permute.xlu0 4
        %1936 = vperm.xlu0 %1935, %v320
        %v1937 = vpop.permute.xlu0 %1936
        %1939 = vset.pattern.permute.xlu0 4
        %1940 = vperm.xlu0 %1939, %v321
        %v1941 = vpop.permute.xlu0 %1940
        %1943 = vset.pattern.permute.xlu0 4
        %1944 = vperm.xlu0 %1943, %v322
        %v1945 = vpop.permute.xlu0 %1944
        %v1947 = vlaneseq
        %v1948 = vshrl.u32 %v1947, 7
        %v1949 = vsub.s32 4, %v1948
        %v1950 = vrot.slane %v323, %v1949
        %vm1951 = vcmp.gt.f32.partialorder %v1821, %v1950
        %vm1952 = vcmp.gt.f32.partialorder %v1825, %v1950
        %vm1953 = vcmp.gt.f32.partialorder %v1829, %v1950
        %vm1954 = vcmp.gt.f32.partialorder %v1833, %v1950
        %vm1955 = vcmp.gt.f32.partialorder %v1837, %v1950
        %vm1956 = vcmp.gt.f32.partialorder %v1841, %v1950
        %vm1957 = vcmp.gt.f32.partialorder %v1845, %v1950
        %vm1958 = vcmp.gt.f32.partialorder %v1849, %v1950
        %vm1959 = vcmp.gt.f32.partialorder %v1853, %v1950
        %vm1960 = vcmp.gt.f32.partialorder %v1857, %v1950
        %vm1961 = vcmp.gt.f32.partialorder %v1861, %v1950
        %vm1962 = vcmp.gt.f32.partialorder %v1865, %v1950
        %vm1963 = vcmp.gt.f32.partialorder %v1869, %v1950
        %vm1964 = vcmp.gt.f32.partialorder %v1873, %v1950
        %vm1965 = vcmp.gt.f32.partialorder %v1877, %v1950
        %vm1966 = vcmp.gt.f32.partialorder %v1881, %v1950
        %vm1967 = vcmp.gt.f32.partialorder %v1885, %v1950
        %vm1968 = vcmp.gt.f32.partialorder %v1889, %v1950
        %vm1969 = vcmp.gt.f32.partialorder %v1893, %v1950
        %vm1970 = vcmp.gt.f32.partialorder %v1897, %v1950
        %vm1971 = vcmp.gt.f32.partialorder %v1901, %v1950
        %vm1972 = vcmp.gt.f32.partialorder %v1905, %v1950
        %vm1973 = vcmp.gt.f32.partialorder %v1909, %v1950
        %vm1974 = vcmp.gt.f32.partialorder %v1913, %v1950
        %vm1975 = vcmp.gt.f32.partialorder %v1917, %v1950
        %vm1976 = vcmp.gt.f32.partialorder %v1921, %v1950
        %vm1977 = vcmp.gt.f32.partialorder %v1925, %v1950
        %vm1978 = vcmp.gt.f32.partialorder %v1929, %v1950
        %vm1979 = vcmp.gt.f32.partialorder %v1933, %v1950
        %vm1980 = vcmp.gt.f32.partialorder %v1937, %v1950
        %vm1981 = vcmp.gt.f32.partialorder %v1941, %v1950
        %vm1982 = vcmp.gt.f32.partialorder %v1945, %v1950
        %v1983 = vsel %vm1951, %v557, 0.0
        %v1984 = vsel %vm1952, %v557, 0.0
        %v1985 = vsel %vm1953, %v557, 0.0
        %v1986 = vsel %vm1954, %v557, 0.0
        %v1987 = vsel %vm1955, %v557, 0.0
        %v1988 = vsel %vm1956, %v557, 0.0
        %v1989 = vsel %vm1957, %v557, 0.0
        %v1990 = vsel %vm1958, %v557, 0.0
        %v1991 = vsel %vm1959, %v557, 0.0
        %v1992 = vsel %vm1960, %v557, 0.0
        %v1993 = vsel %vm1961, %v557, 0.0
        %v1994 = vsel %vm1962, %v557, 0.0
        %v1995 = vsel %vm1963, %v557, 0.0
        %v1996 = vsel %vm1964, %v557, 0.0
        %v1997 = vsel %vm1965, %v557, 0.0
        %v1998 = vsel %vm1966, %v557, 0.0
        %v1999 = vsel %vm1967, %v557, 0.0
        %v2000 = vsel %vm1968, %v557, 0.0
        %v2001 = vsel %vm1969, %v557, 0.0
        %v2002 = vsel %vm1970, %v557, 0.0
        %v2003 = vsel %vm1971, %v557, 0.0
        %v2004 = vsel %vm1972, %v557, 0.0
        %v2005 = vsel %vm1973, %v557, 0.0
        %v2006 = vsel %vm1974, %v557, 0.0
        %v2007 = vsel %vm1975, %v557, 0.0
        %v2008 = vsel %vm1976, %v557, 0.0
        %v2009 = vsel %vm1977, %v557, 0.0
        %v2010 = vsel %vm1978, %v557, 0.0
        %v2011 = vsel %vm1979, %v557, 0.0
        %v2012 = vsel %vm1980, %v557, 0.0
        %v2013 = vsel %vm1981, %v557, 0.0
        %v2014 = vsel %vm1982, %v557, 0.0
        %vm2015 = vcmp.ge.f32.partialorder %v1821, %v1950
        %vm2016 = vcmp.ge.f32.partialorder %v1825, %v1950
        %vm2017 = vcmp.ge.f32.partialorder %v1829, %v1950
        %vm2018 = vcmp.ge.f32.partialorder %v1833, %v1950
        %vm2019 = vcmp.ge.f32.partialorder %v1837, %v1950
        %vm2020 = vcmp.ge.f32.partialorder %v1841, %v1950
        %vm2021 = vcmp.ge.f32.partialorder %v1845, %v1950
        %vm2022 = vcmp.ge.f32.partialorder %v1849, %v1950
        %vm2023 = vcmp.ge.f32.partialorder %v1853, %v1950
        %vm2024 = vcmp.ge.f32.partialorder %v1857, %v1950
        %vm2025 = vcmp.ge.f32.partialorder %v1861, %v1950
        %vm2026 = vcmp.ge.f32.partialorder %v1865, %v1950
        %vm2027 = vcmp.ge.f32.partialorder %v1869, %v1950
        %vm2028 = vcmp.ge.f32.partialorder %v1873, %v1950
        %vm2029 = vcmp.ge.f32.partialorder %v1877, %v1950
        %vm2030 = vcmp.ge.f32.partialorder %v1881, %v1950
        %vm2031 = vcmp.ge.f32.partialorder %v1885, %v1950
        %vm2032 = vcmp.ge.f32.partialorder %v1889, %v1950
        %vm2033 = vcmp.ge.f32.partialorder %v1893, %v1950
        %vm2034 = vcmp.ge.f32.partialorder %v1897, %v1950
        %vm2035 = vcmp.ge.f32.partialorder %v1901, %v1950
        %vm2036 = vcmp.ge.f32.partialorder %v1905, %v1950
        %vm2037 = vcmp.ge.f32.partialorder %v1909, %v1950
        %vm2038 = vcmp.ge.f32.partialorder %v1913, %v1950
        %vm2039 = vcmp.ge.f32.partialorder %v1917, %v1950
        %vm2040 = vcmp.ge.f32.partialorder %v1921, %v1950
        %vm2041 = vcmp.ge.f32.partialorder %v1925, %v1950
        %vm2042 = vcmp.ge.f32.partialorder %v1929, %v1950
        %vm2043 = vcmp.ge.f32.partialorder %v1933, %v1950
        %vm2044 = vcmp.ge.f32.partialorder %v1937, %v1950
        %vm2045 = vcmp.ge.f32.partialorder %v1941, %v1950
        %vm2046 = vcmp.ge.f32.partialorder %v1945, %v1950
        %v2047 = vsel %vm2015, %v557, 0.0
        %v2048 = vsel %vm2016, %v557, 0.0
        %v2049 = vsel %vm2017, %v557, 0.0
        %v2050 = vsel %vm2018, %v557, 0.0
        %v2051 = vsel %vm2019, %v557, 0.0
        %v2052 = vsel %vm2020, %v557, 0.0
        %v2053 = vsel %vm2021, %v557, 0.0
        %v2054 = vsel %vm2022, %v557, 0.0
        %v2055 = vsel %vm2023, %v557, 0.0
        %v2056 = vsel %vm2024, %v557, 0.0
        %v2057 = vsel %vm2025, %v557, 0.0
        %v2058 = vsel %vm2026, %v557, 0.0
        %v2059 = vsel %vm2027, %v557, 0.0
        %v2060 = vsel %vm2028, %v557, 0.0
        %v2061 = vsel %vm2029, %v557, 0.0
        %v2062 = vsel %vm2030, %v557, 0.0
        %v2063 = vsel %vm2031, %v557, 0.0
        %v2064 = vsel %vm2032, %v557, 0.0
        %v2065 = vsel %vm2033, %v557, 0.0
        %v2066 = vsel %vm2034, %v557, 0.0
        %v2067 = vsel %vm2035, %v557, 0.0
        %v2068 = vsel %vm2036, %v557, 0.0
        %v2069 = vsel %vm2037, %v557, 0.0
        %v2070 = vsel %vm2038, %v557, 0.0
        %v2071 = vsel %vm2039, %v557, 0.0
        %v2072 = vsel %vm2040, %v557, 0.0
        %v2073 = vsel %vm2041, %v557, 0.0
        %v2074 = vsel %vm2042, %v557, 0.0
        %v2075 = vsel %vm2043, %v557, 0.0
        %v2076 = vsel %vm2044, %v557, 0.0
        %v2077 = vsel %vm2045, %v557, 0.0
        %v2078 = vsel %vm2046, %v557, 0.0
        %v2079 = vadd.f32 %v1983, %v2047
        %v2080 = vadd.f32 %v1984, %v2048
        %v2081 = vadd.f32 %v1985, %v2049
        %v2082 = vadd.f32 %v1986, %v2050
        %v2083 = vadd.f32 %v1987, %v2051
        %v2084 = vadd.f32 %v1988, %v2052
        %v2085 = vadd.f32 %v1989, %v2053
        %v2086 = vadd.f32 %v1990, %v2054
        %v2087 = vadd.f32 %v1991, %v2055
        %v2088 = vadd.f32 %v1992, %v2056
        %v2089 = vadd.f32 %v1993, %v2057
        %v2090 = vadd.f32 %v1994, %v2058
        %v2091 = vadd.f32 %v1995, %v2059
        %v2092 = vadd.f32 %v1996, %v2060
        %v2093 = vadd.f32 %v1997, %v2061
        %v2094 = vadd.f32 %v1998, %v2062
        %v2095 = vadd.f32 %v1999, %v2063
        %v2096 = vadd.f32 %v2000, %v2064
        %v2097 = vadd.f32 %v2001, %v2065
        %v2098 = vadd.f32 %v2002, %v2066
        %v2099 = vadd.f32 %v2003, %v2067
        %v2100 = vadd.f32 %v2004, %v2068
        %v2101 = vadd.f32 %v2005, %v2069
        %v2102 = vadd.f32 %v2006, %v2070
        %v2103 = vadd.f32 %v2007, %v2071
        %v2104 = vadd.f32 %v2008, %v2072
        %v2105 = vadd.f32 %v2009, %v2073
        %v2106 = vadd.f32 %v2010, %v2074
        %v2107 = vadd.f32 %v2011, %v2075
        %v2108 = vadd.f32 %v2012, %v2076
        %v2109 = vadd.f32 %v2013, %v2077
        %v2110 = vadd.f32 %v2014, %v2078
        %2111 = vadd.xlane.f32.xlu0 %v2079
        %v2112 = vpop.xlane.xlu0 %2111
        %2113 = vadd.xlane.f32.xlu0 %v2080
        %v2114 = vpop.xlane.xlu0 %2113
        %2115 = vadd.xlane.f32.xlu0 %v2081
        %v2116 = vpop.xlane.xlu0 %2115
        %2117 = vadd.xlane.f32.xlu0 %v2082
        %v2118 = vpop.xlane.xlu0 %2117
        %2119 = vadd.xlane.f32.xlu0 %v2083
        %v2120 = vpop.xlane.xlu0 %2119
        %2121 = vadd.xlane.f32.xlu0 %v2084
        %v2122 = vpop.xlane.xlu0 %2121
        %2123 = vadd.xlane.f32.xlu0 %v2085
        %v2124 = vpop.xlane.xlu0 %2123
        %2125 = vadd.xlane.f32.xlu0 %v2086
        %v2126 = vpop.xlane.xlu0 %2125
        %2127 = vadd.xlane.f32.xlu0 %v2087
        %v2128 = vpop.xlane.xlu0 %2127
        %2129 = vadd.xlane.f32.xlu0 %v2088
        %v2130 = vpop.xlane.xlu0 %2129
        %2131 = vadd.xlane.f32.xlu0 %v2089
        %v2132 = vpop.xlane.xlu0 %2131
        %2133 = vadd.xlane.f32.xlu0 %v2090
        %v2134 = vpop.xlane.xlu0 %2133
        %2135 = vadd.xlane.f32.xlu0 %v2091
        %v2136 = vpop.xlane.xlu0 %2135
        %2137 = vadd.xlane.f32.xlu0 %v2092
        %v2138 = vpop.xlane.xlu0 %2137
        %2139 = vadd.xlane.f32.xlu0 %v2093
        %v2140 = vpop.xlane.xlu0 %2139
        %2141 = vadd.xlane.f32.xlu0 %v2094
        %v2142 = vpop.xlane.xlu0 %2141
        %2143 = vadd.xlane.f32.xlu0 %v2095
        %v2144 = vpop.xlane.xlu0 %2143
        %2145 = vadd.xlane.f32.xlu0 %v2096
        %v2146 = vpop.xlane.xlu0 %2145
        %2147 = vadd.xlane.f32.xlu0 %v2097
        %v2148 = vpop.xlane.xlu0 %2147
        %2149 = vadd.xlane.f32.xlu0 %v2098
        %v2150 = vpop.xlane.xlu0 %2149
        %2151 = vadd.xlane.f32.xlu0 %v2099
        %v2152 = vpop.xlane.xlu0 %2151
        %2153 = vadd.xlane.f32.xlu0 %v2100
        %v2154 = vpop.xlane.xlu0 %2153
        %2155 = vadd.xlane.f32.xlu0 %v2101
        %v2156 = vpop.xlane.xlu0 %2155
        %2157 = vadd.xlane.f32.xlu0 %v2102
        %v2158 = vpop.xlane.xlu0 %2157
        %2159 = vadd.xlane.f32.xlu0 %v2103
        %v2160 = vpop.xlane.xlu0 %2159
        %2161 = vadd.xlane.f32.xlu0 %v2104
        %v2162 = vpop.xlane.xlu0 %2161
        %2163 = vadd.xlane.f32.xlu0 %v2105
        %v2164 = vpop.xlane.xlu0 %2163
        %2165 = vadd.xlane.f32.xlu0 %v2106
        %v2166 = vpop.xlane.xlu0 %2165
        %2167 = vadd.xlane.f32.xlu0 %v2107
        %v2168 = vpop.xlane.xlu0 %2167
        %2169 = vadd.xlane.f32.xlu0 %v2108
        %v2170 = vpop.xlane.xlu0 %2169
        %2171 = vadd.xlane.f32.xlu0 %v2109
        %v2172 = vpop.xlane.xlu0 %2171
        %2173 = vadd.xlane.f32.xlu0 %v2110
        %v2174 = vpop.xlane.xlu0 %2173
        %2175 = vset.pattern.permute.xlu0 5
        %2176 = vperm.xlu0 %2175, %v291
        %v2177 = vpop.permute.xlu0 %2176
        %2179 = vset.pattern.permute.xlu0 5
        %2180 = vperm.xlu0 %2179, %v292
        %v2181 = vpop.permute.xlu0 %2180
        %2183 = vset.pattern.permute.xlu0 5
        %2184 = vperm.xlu0 %2183, %v293
        %v2185 = vpop.permute.xlu0 %2184
        %2187 = vset.pattern.permute.xlu0 5
        %2188 = vperm.xlu0 %2187, %v294
        %v2189 = vpop.permute.xlu0 %2188
        %2191 = vset.pattern.permute.xlu0 5
        %2192 = vperm.xlu0 %2191, %v295
        %v2193 = vpop.permute.xlu0 %2192
        %2195 = vset.pattern.permute.xlu0 5
        %2196 = vperm.xlu0 %2195, %v296
        %v2197 = vpop.permute.xlu0 %2196
        %2199 = vset.pattern.permute.xlu0 5
        %2200 = vperm.xlu0 %2199, %v297
        %v2201 = vpop.permute.xlu0 %2200
        %2203 = vset.pattern.permute.xlu0 5
        %2204 = vperm.xlu0 %2203, %v298
        %v2205 = vpop.permute.xlu0 %2204
        %2207 = vset.pattern.permute.xlu0 5
        %2208 = vperm.xlu0 %2207, %v299
        %v2209 = vpop.permute.xlu0 %2208
        %2211 = vset.pattern.permute.xlu0 5
        %2212 = vperm.xlu0 %2211, %v300
        %v2213 = vpop.permute.xlu0 %2212
        %2215 = vset.pattern.permute.xlu0 5
        %2216 = vperm.xlu0 %2215, %v301
        %v2217 = vpop.permute.xlu0 %2216
        %2219 = vset.pattern.permute.xlu0 5
        %2220 = vperm.xlu0 %2219, %v302
        %v2221 = vpop.permute.xlu0 %2220
        %2223 = vset.pattern.permute.xlu0 5
        %2224 = vperm.xlu0 %2223, %v303
        %v2225 = vpop.permute.xlu0 %2224
        %2227 = vset.pattern.permute.xlu0 5
        %2228 = vperm.xlu0 %2227, %v304
        %v2229 = vpop.permute.xlu0 %2228
        %2231 = vset.pattern.permute.xlu0 5
        %2232 = vperm.xlu0 %2231, %v305
        %v2233 = vpop.permute.xlu0 %2232
        %2235 = vset.pattern.permute.xlu0 5
        %2236 = vperm.xlu0 %2235, %v306
        %v2237 = vpop.permute.xlu0 %2236
        %2239 = vset.pattern.permute.xlu0 5
        %2240 = vperm.xlu0 %2239, %v307
        %v2241 = vpop.permute.xlu0 %2240
        %2243 = vset.pattern.permute.xlu0 5
        %2244 = vperm.xlu0 %2243, %v308
        %v2245 = vpop.permute.xlu0 %2244
        %2247 = vset.pattern.permute.xlu0 5
        %2248 = vperm.xlu0 %2247, %v309
        %v2249 = vpop.permute.xlu0 %2248
        %2251 = vset.pattern.permute.xlu0 5
        %2252 = vperm.xlu0 %2251, %v310
        %v2253 = vpop.permute.xlu0 %2252
        %2255 = vset.pattern.permute.xlu0 5
        %2256 = vperm.xlu0 %2255, %v311
        %v2257 = vpop.permute.xlu0 %2256
        %2259 = vset.pattern.permute.xlu0 5
        %2260 = vperm.xlu0 %2259, %v312
        %v2261 = vpop.permute.xlu0 %2260
        %2263 = vset.pattern.permute.xlu0 5
        %2264 = vperm.xlu0 %2263, %v313
        %v2265 = vpop.permute.xlu0 %2264
        %2267 = vset.pattern.permute.xlu0 5
        %2268 = vperm.xlu0 %2267, %v314
        %v2269 = vpop.permute.xlu0 %2268
        %2271 = vset.pattern.permute.xlu0 5
        %2272 = vperm.xlu0 %2271, %v315
        %v2273 = vpop.permute.xlu0 %2272
        %2275 = vset.pattern.permute.xlu0 5
        %2276 = vperm.xlu0 %2275, %v316
        %v2277 = vpop.permute.xlu0 %2276
        %2279 = vset.pattern.permute.xlu0 5
        %2280 = vperm.xlu0 %2279, %v317
        %v2281 = vpop.permute.xlu0 %2280
        %2283 = vset.pattern.permute.xlu0 5
        %2284 = vperm.xlu0 %2283, %v318
        %v2285 = vpop.permute.xlu0 %2284
        %2287 = vset.pattern.permute.xlu0 5
        %2288 = vperm.xlu0 %2287, %v319
        %v2289 = vpop.permute.xlu0 %2288
        %2291 = vset.pattern.permute.xlu0 5
        %2292 = vperm.xlu0 %2291, %v320
        %v2293 = vpop.permute.xlu0 %2292
        %2295 = vset.pattern.permute.xlu0 5
        %2296 = vperm.xlu0 %2295, %v321
        %v2297 = vpop.permute.xlu0 %2296
        %2299 = vset.pattern.permute.xlu0 5
        %2300 = vperm.xlu0 %2299, %v322
        %v2301 = vpop.permute.xlu0 %2300
        %v2303 = vlaneseq
        %v2304 = vshrl.u32 %v2303, 7
        %v2305 = vsub.s32 5, %v2304
        %v2306 = vrot.slane %v323, %v2305
        %vm2307 = vcmp.gt.f32.partialorder %v2177, %v2306
        %vm2308 = vcmp.gt.f32.partialorder %v2181, %v2306
        %vm2309 = vcmp.gt.f32.partialorder %v2185, %v2306
        %vm2310 = vcmp.gt.f32.partialorder %v2189, %v2306
        %vm2311 = vcmp.gt.f32.partialorder %v2193, %v2306
        %vm2312 = vcmp.gt.f32.partialorder %v2197, %v2306
        %vm2313 = vcmp.gt.f32.partialorder %v2201, %v2306
        %vm2314 = vcmp.gt.f32.partialorder %v2205, %v2306
        %vm2315 = vcmp.gt.f32.partialorder %v2209, %v2306
        %vm2316 = vcmp.gt.f32.partialorder %v2213, %v2306
        %vm2317 = vcmp.gt.f32.partialorder %v2217, %v2306
        %vm2318 = vcmp.gt.f32.partialorder %v2221, %v2306
        %vm2319 = vcmp.gt.f32.partialorder %v2225, %v2306
        %vm2320 = vcmp.gt.f32.partialorder %v2229, %v2306
        %vm2321 = vcmp.gt.f32.partialorder %v2233, %v2306
        %vm2322 = vcmp.gt.f32.partialorder %v2237, %v2306
        %vm2323 = vcmp.gt.f32.partialorder %v2241, %v2306
        %vm2324 = vcmp.gt.f32.partialorder %v2245, %v2306
        %vm2325 = vcmp.gt.f32.partialorder %v2249, %v2306
        %vm2326 = vcmp.gt.f32.partialorder %v2253, %v2306
        %vm2327 = vcmp.gt.f32.partialorder %v2257, %v2306
        %vm2328 = vcmp.gt.f32.partialorder %v2261, %v2306
        %vm2329 = vcmp.gt.f32.partialorder %v2265, %v2306
        %vm2330 = vcmp.gt.f32.partialorder %v2269, %v2306
        %vm2331 = vcmp.gt.f32.partialorder %v2273, %v2306
        %vm2332 = vcmp.gt.f32.partialorder %v2277, %v2306
        %vm2333 = vcmp.gt.f32.partialorder %v2281, %v2306
        %vm2334 = vcmp.gt.f32.partialorder %v2285, %v2306
        %vm2335 = vcmp.gt.f32.partialorder %v2289, %v2306
        %vm2336 = vcmp.gt.f32.partialorder %v2293, %v2306
        %vm2337 = vcmp.gt.f32.partialorder %v2297, %v2306
        %vm2338 = vcmp.gt.f32.partialorder %v2301, %v2306
        %v2339 = vsel %vm2307, %v557, 0.0
        %v2340 = vsel %vm2308, %v557, 0.0
        %v2341 = vsel %vm2309, %v557, 0.0
        %v2342 = vsel %vm2310, %v557, 0.0
        %v2343 = vsel %vm2311, %v557, 0.0
        %v2344 = vsel %vm2312, %v557, 0.0
        %v2345 = vsel %vm2313, %v557, 0.0
        %v2346 = vsel %vm2314, %v557, 0.0
        %v2347 = vsel %vm2315, %v557, 0.0
        %v2348 = vsel %vm2316, %v557, 0.0
        %v2349 = vsel %vm2317, %v557, 0.0
        %v2350 = vsel %vm2318, %v557, 0.0
        %v2351 = vsel %vm2319, %v557, 0.0
        %v2352 = vsel %vm2320, %v557, 0.0
        %v2353 = vsel %vm2321, %v557, 0.0
        %v2354 = vsel %vm2322, %v557, 0.0
        %v2355 = vsel %vm2323, %v557, 0.0
        %v2356 = vsel %vm2324, %v557, 0.0
        %v2357 = vsel %vm2325, %v557, 0.0
        %v2358 = vsel %vm2326, %v557, 0.0
        %v2359 = vsel %vm2327, %v557, 0.0
        %v2360 = vsel %vm2328, %v557, 0.0
        %v2361 = vsel %vm2329, %v557, 0.0
        %v2362 = vsel %vm2330, %v557, 0.0
        %v2363 = vsel %vm2331, %v557, 0.0
        %v2364 = vsel %vm2332, %v557, 0.0
        %v2365 = vsel %vm2333, %v557, 0.0
        %v2366 = vsel %vm2334, %v557, 0.0
        %v2367 = vsel %vm2335, %v557, 0.0
        %v2368 = vsel %vm2336, %v557, 0.0
        %v2369 = vsel %vm2337, %v557, 0.0
        %v2370 = vsel %vm2338, %v557, 0.0
        %vm2371 = vcmp.ge.f32.partialorder %v2177, %v2306
        %vm2372 = vcmp.ge.f32.partialorder %v2181, %v2306
        %vm2373 = vcmp.ge.f32.partialorder %v2185, %v2306
        %vm2374 = vcmp.ge.f32.partialorder %v2189, %v2306
        %vm2375 = vcmp.ge.f32.partialorder %v2193, %v2306
        %vm2376 = vcmp.ge.f32.partialorder %v2197, %v2306
        %vm2377 = vcmp.ge.f32.partialorder %v2201, %v2306
        %vm2378 = vcmp.ge.f32.partialorder %v2205, %v2306
        %vm2379 = vcmp.ge.f32.partialorder %v2209, %v2306
        %vm2380 = vcmp.ge.f32.partialorder %v2213, %v2306
        %vm2381 = vcmp.ge.f32.partialorder %v2217, %v2306
        %vm2382 = vcmp.ge.f32.partialorder %v2221, %v2306
        %vm2383 = vcmp.ge.f32.partialorder %v2225, %v2306
        %vm2384 = vcmp.ge.f32.partialorder %v2229, %v2306
        %vm2385 = vcmp.ge.f32.partialorder %v2233, %v2306
        %vm2386 = vcmp.ge.f32.partialorder %v2237, %v2306
        %vm2387 = vcmp.ge.f32.partialorder %v2241, %v2306
        %vm2388 = vcmp.ge.f32.partialorder %v2245, %v2306
        %vm2389 = vcmp.ge.f32.partialorder %v2249, %v2306
        %vm2390 = vcmp.ge.f32.partialorder %v2253, %v2306
        %vm2391 = vcmp.ge.f32.partialorder %v2257, %v2306
        %vm2392 = vcmp.ge.f32.partialorder %v2261, %v2306
        %vm2393 = vcmp.ge.f32.partialorder %v2265, %v2306
        %vm2394 = vcmp.ge.f32.partialorder %v2269, %v2306
        %vm2395 = vcmp.ge.f32.partialorder %v2273, %v2306
        %vm2396 = vcmp.ge.f32.partialorder %v2277, %v2306
        %vm2397 = vcmp.ge.f32.partialorder %v2281, %v2306
        %vm2398 = vcmp.ge.f32.partialorder %v2285, %v2306
        %vm2399 = vcmp.ge.f32.partialorder %v2289, %v2306
        %vm2400 = vcmp.ge.f32.partialorder %v2293, %v2306
        %vm2401 = vcmp.ge.f32.partialorder %v2297, %v2306
        %vm2402 = vcmp.ge.f32.partialorder %v2301, %v2306
        %v2403 = vsel %vm2371, %v557, 0.0
        %v2404 = vsel %vm2372, %v557, 0.0
        %v2405 = vsel %vm2373, %v557, 0.0
        %v2406 = vsel %vm2374, %v557, 0.0
        %v2407 = vsel %vm2375, %v557, 0.0
        %v2408 = vsel %vm2376, %v557, 0.0
        %v2409 = vsel %vm2377, %v557, 0.0
        %v2410 = vsel %vm2378, %v557, 0.0
        %v2411 = vsel %vm2379, %v557, 0.0
        %v2412 = vsel %vm2380, %v557, 0.0
        %v2413 = vsel %vm2381, %v557, 0.0
        %v2414 = vsel %vm2382, %v557, 0.0
        %v2415 = vsel %vm2383, %v557, 0.0
        %v2416 = vsel %vm2384, %v557, 0.0
        %v2417 = vsel %vm2385, %v557, 0.0
        %v2418 = vsel %vm2386, %v557, 0.0
        %v2419 = vsel %vm2387, %v557, 0.0
        %v2420 = vsel %vm2388, %v557, 0.0
        %v2421 = vsel %vm2389, %v557, 0.0
        %v2422 = vsel %vm2390, %v557, 0.0
        %v2423 = vsel %vm2391, %v557, 0.0
        %v2424 = vsel %vm2392, %v557, 0.0
        %v2425 = vsel %vm2393, %v557, 0.0
        %v2426 = vsel %vm2394, %v557, 0.0
        %v2427 = vsel %vm2395, %v557, 0.0
        %v2428 = vsel %vm2396, %v557, 0.0
        %v2429 = vsel %vm2397, %v557, 0.0
        %v2430 = vsel %vm2398, %v557, 0.0
        %v2431 = vsel %vm2399, %v557, 0.0
        %v2432 = vsel %vm2400, %v557, 0.0
        %v2433 = vsel %vm2401, %v557, 0.0
        %v2434 = vsel %vm2402, %v557, 0.0
        %v2435 = vadd.f32 %v2339, %v2403
        %v2436 = vadd.f32 %v2340, %v2404
        %v2437 = vadd.f32 %v2341, %v2405
        %v2438 = vadd.f32 %v2342, %v2406
        %v2439 = vadd.f32 %v2343, %v2407
        %v2440 = vadd.f32 %v2344, %v2408
        %v2441 = vadd.f32 %v2345, %v2409
        %v2442 = vadd.f32 %v2346, %v2410
        %v2443 = vadd.f32 %v2347, %v2411
        %v2444 = vadd.f32 %v2348, %v2412
        %v2445 = vadd.f32 %v2349, %v2413
        %v2446 = vadd.f32 %v2350, %v2414
        %v2447 = vadd.f32 %v2351, %v2415
        %v2448 = vadd.f32 %v2352, %v2416
        %v2449 = vadd.f32 %v2353, %v2417
        %v2450 = vadd.f32 %v2354, %v2418
        %v2451 = vadd.f32 %v2355, %v2419
        %v2452 = vadd.f32 %v2356, %v2420
        %v2453 = vadd.f32 %v2357, %v2421
        %v2454 = vadd.f32 %v2358, %v2422
        %v2455 = vadd.f32 %v2359, %v2423
        %v2456 = vadd.f32 %v2360, %v2424
        %v2457 = vadd.f32 %v2361, %v2425
        %v2458 = vadd.f32 %v2362, %v2426
        %v2459 = vadd.f32 %v2363, %v2427
        %v2460 = vadd.f32 %v2364, %v2428
        %v2461 = vadd.f32 %v2365, %v2429
        %v2462 = vadd.f32 %v2366, %v2430
        %v2463 = vadd.f32 %v2367, %v2431
        %v2464 = vadd.f32 %v2368, %v2432
        %v2465 = vadd.f32 %v2369, %v2433
        %v2466 = vadd.f32 %v2370, %v2434
        %2467 = vadd.xlane.f32.xlu0 %v2435
        %v2468 = vpop.xlane.xlu0 %2467
        %2469 = vadd.xlane.f32.xlu0 %v2436
        %v2470 = vpop.xlane.xlu0 %2469
        %2471 = vadd.xlane.f32.xlu0 %v2437
        %v2472 = vpop.xlane.xlu0 %2471
        %2473 = vadd.xlane.f32.xlu0 %v2438
        %v2474 = vpop.xlane.xlu0 %2473
        %2475 = vadd.xlane.f32.xlu0 %v2439
        %v2476 = vpop.xlane.xlu0 %2475
        %2477 = vadd.xlane.f32.xlu0 %v2440
        %v2478 = vpop.xlane.xlu0 %2477
        %2479 = vadd.xlane.f32.xlu0 %v2441
        %v2480 = vpop.xlane.xlu0 %2479
        %2481 = vadd.xlane.f32.xlu0 %v2442
        %v2482 = vpop.xlane.xlu0 %2481
        %2483 = vadd.xlane.f32.xlu0 %v2443
        %v2484 = vpop.xlane.xlu0 %2483
        %2485 = vadd.xlane.f32.xlu0 %v2444
        %v2486 = vpop.xlane.xlu0 %2485
        %2487 = vadd.xlane.f32.xlu0 %v2445
        %v2488 = vpop.xlane.xlu0 %2487
        %2489 = vadd.xlane.f32.xlu0 %v2446
        %v2490 = vpop.xlane.xlu0 %2489
        %2491 = vadd.xlane.f32.xlu0 %v2447
        %v2492 = vpop.xlane.xlu0 %2491
        %2493 = vadd.xlane.f32.xlu0 %v2448
        %v2494 = vpop.xlane.xlu0 %2493
        %2495 = vadd.xlane.f32.xlu0 %v2449
        %v2496 = vpop.xlane.xlu0 %2495
        %2497 = vadd.xlane.f32.xlu0 %v2450
        %v2498 = vpop.xlane.xlu0 %2497
        %2499 = vadd.xlane.f32.xlu0 %v2451
        %v2500 = vpop.xlane.xlu0 %2499
        %2501 = vadd.xlane.f32.xlu0 %v2452
        %v2502 = vpop.xlane.xlu0 %2501
        %2503 = vadd.xlane.f32.xlu0 %v2453
        %v2504 = vpop.xlane.xlu0 %2503
        %2505 = vadd.xlane.f32.xlu0 %v2454
        %v2506 = vpop.xlane.xlu0 %2505
        %2507 = vadd.xlane.f32.xlu0 %v2455
        %v2508 = vpop.xlane.xlu0 %2507
        %2509 = vadd.xlane.f32.xlu0 %v2456
        %v2510 = vpop.xlane.xlu0 %2509
        %2511 = vadd.xlane.f32.xlu0 %v2457
        %v2512 = vpop.xlane.xlu0 %2511
        %2513 = vadd.xlane.f32.xlu0 %v2458
        %v2514 = vpop.xlane.xlu0 %2513
        %2515 = vadd.xlane.f32.xlu0 %v2459
        %v2516 = vpop.xlane.xlu0 %2515
        %2517 = vadd.xlane.f32.xlu0 %v2460
        %v2518 = vpop.xlane.xlu0 %2517
        %2519 = vadd.xlane.f32.xlu0 %v2461
        %v2520 = vpop.xlane.xlu0 %2519
        %2521 = vadd.xlane.f32.xlu0 %v2462
        %v2522 = vpop.xlane.xlu0 %2521
        %2523 = vadd.xlane.f32.xlu0 %v2463
        %v2524 = vpop.xlane.xlu0 %2523
        %2525 = vadd.xlane.f32.xlu0 %v2464
        %v2526 = vpop.xlane.xlu0 %2525
        %2527 = vadd.xlane.f32.xlu0 %v2465
        %v2528 = vpop.xlane.xlu0 %2527
        %2529 = vadd.xlane.f32.xlu0 %v2466
        %v2530 = vpop.xlane.xlu0 %2529
        %2531 = vset.pattern.permute.xlu0 6
        %2532 = vperm.xlu0 %2531, %v291
        %v2533 = vpop.permute.xlu0 %2532
        %2535 = vset.pattern.permute.xlu0 6
        %2536 = vperm.xlu0 %2535, %v292
        %v2537 = vpop.permute.xlu0 %2536
        %2539 = vset.pattern.permute.xlu0 6
        %2540 = vperm.xlu0 %2539, %v293
        %v2541 = vpop.permute.xlu0 %2540
        %2543 = vset.pattern.permute.xlu0 6
        %2544 = vperm.xlu0 %2543, %v294
        %v2545 = vpop.permute.xlu0 %2544
        %2547 = vset.pattern.permute.xlu0 6
        %2548 = vperm.xlu0 %2547, %v295
        %v2549 = vpop.permute.xlu0 %2548
        %2551 = vset.pattern.permute.xlu0 6
        %2552 = vperm.xlu0 %2551, %v296
        %v2553 = vpop.permute.xlu0 %2552
        %2555 = vset.pattern.permute.xlu0 6
        %2556 = vperm.xlu0 %2555, %v297
        %v2557 = vpop.permute.xlu0 %2556
        %2559 = vset.pattern.permute.xlu0 6
        %2560 = vperm.xlu0 %2559, %v298
        %v2561 = vpop.permute.xlu0 %2560
        %2563 = vset.pattern.permute.xlu0 6
        %2564 = vperm.xlu0 %2563, %v299
        %v2565 = vpop.permute.xlu0 %2564
        %2567 = vset.pattern.permute.xlu0 6
        %2568 = vperm.xlu0 %2567, %v300
        %v2569 = vpop.permute.xlu0 %2568
        %2571 = vset.pattern.permute.xlu0 6
        %2572 = vperm.xlu0 %2571, %v301
        %v2573 = vpop.permute.xlu0 %2572
        %2575 = vset.pattern.permute.xlu0 6
        %2576 = vperm.xlu0 %2575, %v302
        %v2577 = vpop.permute.xlu0 %2576
        %2579 = vset.pattern.permute.xlu0 6
        %2580 = vperm.xlu0 %2579, %v303
        %v2581 = vpop.permute.xlu0 %2580
        %2583 = vset.pattern.permute.xlu0 6
        %2584 = vperm.xlu0 %2583, %v304
        %v2585 = vpop.permute.xlu0 %2584
        %2587 = vset.pattern.permute.xlu0 6
        %2588 = vperm.xlu0 %2587, %v305
        %v2589 = vpop.permute.xlu0 %2588
        %2591 = vset.pattern.permute.xlu0 6
        %2592 = vperm.xlu0 %2591, %v306
        %v2593 = vpop.permute.xlu0 %2592
        %2595 = vset.pattern.permute.xlu0 6
        %2596 = vperm.xlu0 %2595, %v307
        %v2597 = vpop.permute.xlu0 %2596
        %2599 = vset.pattern.permute.xlu0 6
        %2600 = vperm.xlu0 %2599, %v308
        %v2601 = vpop.permute.xlu0 %2600
        %2603 = vset.pattern.permute.xlu0 6
        %2604 = vperm.xlu0 %2603, %v309
        %v2605 = vpop.permute.xlu0 %2604
        %2607 = vset.pattern.permute.xlu0 6
        %2608 = vperm.xlu0 %2607, %v310
        %v2609 = vpop.permute.xlu0 %2608
        %2611 = vset.pattern.permute.xlu0 6
        %2612 = vperm.xlu0 %2611, %v311
        %v2613 = vpop.permute.xlu0 %2612
        %2615 = vset.pattern.permute.xlu0 6
        %2616 = vperm.xlu0 %2615, %v312
        %v2617 = vpop.permute.xlu0 %2616
        %2619 = vset.pattern.permute.xlu0 6
        %2620 = vperm.xlu0 %2619, %v313
        %v2621 = vpop.permute.xlu0 %2620
        %2623 = vset.pattern.permute.xlu0 6
        %2624 = vperm.xlu0 %2623, %v314
        %v2625 = vpop.permute.xlu0 %2624
        %2627 = vset.pattern.permute.xlu0 6
        %2628 = vperm.xlu0 %2627, %v315
        %v2629 = vpop.permute.xlu0 %2628
        %2631 = vset.pattern.permute.xlu0 6
        %2632 = vperm.xlu0 %2631, %v316
        %v2633 = vpop.permute.xlu0 %2632
        %2635 = vset.pattern.permute.xlu0 6
        %2636 = vperm.xlu0 %2635, %v317
        %v2637 = vpop.permute.xlu0 %2636
        %2639 = vset.pattern.permute.xlu0 6
        %2640 = vperm.xlu0 %2639, %v318
        %v2641 = vpop.permute.xlu0 %2640
        %2643 = vset.pattern.permute.xlu0 6
        %2644 = vperm.xlu0 %2643, %v319
        %v2645 = vpop.permute.xlu0 %2644
        %2647 = vset.pattern.permute.xlu0 6
        %2648 = vperm.xlu0 %2647, %v320
        %v2649 = vpop.permute.xlu0 %2648
        %2651 = vset.pattern.permute.xlu0 6
        %2652 = vperm.xlu0 %2651, %v321
        %v2653 = vpop.permute.xlu0 %2652
        %2655 = vset.pattern.permute.xlu0 6
        %2656 = vperm.xlu0 %2655, %v322
        %v2657 = vpop.permute.xlu0 %2656
        %v2659 = vlaneseq
        %v2660 = vshrl.u32 %v2659, 7
        %v2661 = vsub.s32 6, %v2660
        %v2662 = vrot.slane %v323, %v2661
        %vm2663 = vcmp.gt.f32.partialorder %v2533, %v2662
        %vm2664 = vcmp.gt.f32.partialorder %v2537, %v2662
        %vm2665 = vcmp.gt.f32.partialorder %v2541, %v2662
        %vm2666 = vcmp.gt.f32.partialorder %v2545, %v2662
        %vm2667 = vcmp.gt.f32.partialorder %v2549, %v2662
        %vm2668 = vcmp.gt.f32.partialorder %v2553, %v2662
        %vm2669 = vcmp.gt.f32.partialorder %v2557, %v2662
        %vm2670 = vcmp.gt.f32.partialorder %v2561, %v2662
        %vm2671 = vcmp.gt.f32.partialorder %v2565, %v2662
        %vm2672 = vcmp.gt.f32.partialorder %v2569, %v2662
        %vm2673 = vcmp.gt.f32.partialorder %v2573, %v2662
        %vm2674 = vcmp.gt.f32.partialorder %v2577, %v2662
        %vm2675 = vcmp.gt.f32.partialorder %v2581, %v2662
        %vm2676 = vcmp.gt.f32.partialorder %v2585, %v2662
        %vm2677 = vcmp.gt.f32.partialorder %v2589, %v2662
        %vm2678 = vcmp.gt.f32.partialorder %v2593, %v2662
        %vm2679 = vcmp.gt.f32.partialorder %v2597, %v2662
        %vm2680 = vcmp.gt.f32.partialorder %v2601, %v2662
        %vm2681 = vcmp.gt.f32.partialorder %v2605, %v2662
        %vm2682 = vcmp.gt.f32.partialorder %v2609, %v2662
        %vm2683 = vcmp.gt.f32.partialorder %v2613, %v2662
        %vm2684 = vcmp.gt.f32.partialorder %v2617, %v2662
        %vm2685 = vcmp.gt.f32.partialorder %v2621, %v2662
        %vm2686 = vcmp.gt.f32.partialorder %v2625, %v2662
        %vm2687 = vcmp.gt.f32.partialorder %v2629, %v2662
        %vm2688 = vcmp.gt.f32.partialorder %v2633, %v2662
        %vm2689 = vcmp.gt.f32.partialorder %v2637, %v2662
        %vm2690 = vcmp.gt.f32.partialorder %v2641, %v2662
        %vm2691 = vcmp.gt.f32.partialorder %v2645, %v2662
        %vm2692 = vcmp.gt.f32.partialorder %v2649, %v2662
        %vm2693 = vcmp.gt.f32.partialorder %v2653, %v2662
        %vm2694 = vcmp.gt.f32.partialorder %v2657, %v2662
        %v2695 = vsel %vm2663, %v557, 0.0
        %v2696 = vsel %vm2664, %v557, 0.0
        %v2697 = vsel %vm2665, %v557, 0.0
        %v2698 = vsel %vm2666, %v557, 0.0
        %v2699 = vsel %vm2667, %v557, 0.0
        %v2700 = vsel %vm2668, %v557, 0.0
        %v2701 = vsel %vm2669, %v557, 0.0
        %v2702 = vsel %vm2670, %v557, 0.0
        %v2703 = vsel %vm2671, %v557, 0.0
        %v2704 = vsel %vm2672, %v557, 0.0
        %v2705 = vsel %vm2673, %v557, 0.0
        %v2706 = vsel %vm2674, %v557, 0.0
        %v2707 = vsel %vm2675, %v557, 0.0
        %v2708 = vsel %vm2676, %v557, 0.0
        %v2709 = vsel %vm2677, %v557, 0.0
        %v2710 = vsel %vm2678, %v557, 0.0
        %v2711 = vsel %vm2679, %v557, 0.0
        %v2712 = vsel %vm2680, %v557, 0.0
        %v2713 = vsel %vm2681, %v557, 0.0
        %v2714 = vsel %vm2682, %v557, 0.0
        %v2715 = vsel %vm2683, %v557, 0.0
        %v2716 = vsel %vm2684, %v557, 0.0
        %v2717 = vsel %vm2685, %v557, 0.0
        %v2718 = vsel %vm2686, %v557, 0.0
        %v2719 = vsel %vm2687, %v557, 0.0
        %v2720 = vsel %vm2688, %v557, 0.0
        %v2721 = vsel %vm2689, %v557, 0.0
        %v2722 = vsel %vm2690, %v557, 0.0
        %v2723 = vsel %vm2691, %v557, 0.0
        %v2724 = vsel %vm2692, %v557, 0.0
        %v2725 = vsel %vm2693, %v557, 0.0
        %v2726 = vsel %vm2694, %v557, 0.0
        %vm2727 = vcmp.ge.f32.partialorder %v2533, %v2662
        %vm2728 = vcmp.ge.f32.partialorder %v2537, %v2662
        %vm2729 = vcmp.ge.f32.partialorder %v2541, %v2662
        %vm2730 = vcmp.ge.f32.partialorder %v2545, %v2662
        %vm2731 = vcmp.ge.f32.partialorder %v2549, %v2662
        %vm2732 = vcmp.ge.f32.partialorder %v2553, %v2662
        %vm2733 = vcmp.ge.f32.partialorder %v2557, %v2662
        %vm2734 = vcmp.ge.f32.partialorder %v2561, %v2662
        %vm2735 = vcmp.ge.f32.partialorder %v2565, %v2662
        %vm2736 = vcmp.ge.f32.partialorder %v2569, %v2662
        %vm2737 = vcmp.ge.f32.partialorder %v2573, %v2662
        %vm2738 = vcmp.ge.f32.partialorder %v2577, %v2662
        %vm2739 = vcmp.ge.f32.partialorder %v2581, %v2662
        %vm2740 = vcmp.ge.f32.partialorder %v2585, %v2662
        %vm2741 = vcmp.ge.f32.partialorder %v2589, %v2662
        %vm2742 = vcmp.ge.f32.partialorder %v2593, %v2662
        %vm2743 = vcmp.ge.f32.partialorder %v2597, %v2662
        %vm2744 = vcmp.ge.f32.partialorder %v2601, %v2662
        %vm2745 = vcmp.ge.f32.partialorder %v2605, %v2662
        %vm2746 = vcmp.ge.f32.partialorder %v2609, %v2662
        %vm2747 = vcmp.ge.f32.partialorder %v2613, %v2662
        %vm2748 = vcmp.ge.f32.partialorder %v2617, %v2662
        %vm2749 = vcmp.ge.f32.partialorder %v2621, %v2662
        %vm2750 = vcmp.ge.f32.partialorder %v2625, %v2662
        %vm2751 = vcmp.ge.f32.partialorder %v2629, %v2662
        %vm2752 = vcmp.ge.f32.partialorder %v2633, %v2662
        %vm2753 = vcmp.ge.f32.partialorder %v2637, %v2662
        %vm2754 = vcmp.ge.f32.partialorder %v2641, %v2662
        %vm2755 = vcmp.ge.f32.partialorder %v2645, %v2662
        %vm2756 = vcmp.ge.f32.partialorder %v2649, %v2662
        %vm2757 = vcmp.ge.f32.partialorder %v2653, %v2662
        %vm2758 = vcmp.ge.f32.partialorder %v2657, %v2662
        %v2759 = vsel %vm2727, %v557, 0.0
        %v2760 = vsel %vm2728, %v557, 0.0
        %v2761 = vsel %vm2729, %v557, 0.0
        %v2762 = vsel %vm2730, %v557, 0.0
        %v2763 = vsel %vm2731, %v557, 0.0
        %v2764 = vsel %vm2732, %v557, 0.0
        %v2765 = vsel %vm2733, %v557, 0.0
        %v2766 = vsel %vm2734, %v557, 0.0
        %v2767 = vsel %vm2735, %v557, 0.0
        %v2768 = vsel %vm2736, %v557, 0.0
        %v2769 = vsel %vm2737, %v557, 0.0
        %v2770 = vsel %vm2738, %v557, 0.0
        %v2771 = vsel %vm2739, %v557, 0.0
        %v2772 = vsel %vm2740, %v557, 0.0
        %v2773 = vsel %vm2741, %v557, 0.0
        %v2774 = vsel %vm2742, %v557, 0.0
        %v2775 = vsel %vm2743, %v557, 0.0
        %v2776 = vsel %vm2744, %v557, 0.0
        %v2777 = vsel %vm2745, %v557, 0.0
        %v2778 = vsel %vm2746, %v557, 0.0
        %v2779 = vsel %vm2747, %v557, 0.0
        %v2780 = vsel %vm2748, %v557, 0.0
        %v2781 = vsel %vm2749, %v557, 0.0
        %v2782 = vsel %vm2750, %v557, 0.0
        %v2783 = vsel %vm2751, %v557, 0.0
        %v2784 = vsel %vm2752, %v557, 0.0
        %v2785 = vsel %vm2753, %v557, 0.0
        %v2786 = vsel %vm2754, %v557, 0.0
        %v2787 = vsel %vm2755, %v557, 0.0
        %v2788 = vsel %vm2756, %v557, 0.0
        %v2789 = vsel %vm2757, %v557, 0.0
        %v2790 = vsel %vm2758, %v557, 0.0
        %v2791 = vadd.f32 %v2695, %v2759
        %v2792 = vadd.f32 %v2696, %v2760
        %v2793 = vadd.f32 %v2697, %v2761
        %v2794 = vadd.f32 %v2698, %v2762
        %v2795 = vadd.f32 %v2699, %v2763
        %v2796 = vadd.f32 %v2700, %v2764
        %v2797 = vadd.f32 %v2701, %v2765
        %v2798 = vadd.f32 %v2702, %v2766
        %v2799 = vadd.f32 %v2703, %v2767
        %v2800 = vadd.f32 %v2704, %v2768
        %v2801 = vadd.f32 %v2705, %v2769
        %v2802 = vadd.f32 %v2706, %v2770
        %v2803 = vadd.f32 %v2707, %v2771
        %v2804 = vadd.f32 %v2708, %v2772
        %v2805 = vadd.f32 %v2709, %v2773
        %v2806 = vadd.f32 %v2710, %v2774
        %v2807 = vadd.f32 %v2711, %v2775
        %v2808 = vadd.f32 %v2712, %v2776
        %v2809 = vadd.f32 %v2713, %v2777
        %v2810 = vadd.f32 %v2714, %v2778
        %v2811 = vadd.f32 %v2715, %v2779
        %v2812 = vadd.f32 %v2716, %v2780
        %v2813 = vadd.f32 %v2717, %v2781
        %v2814 = vadd.f32 %v2718, %v2782
        %v2815 = vadd.f32 %v2719, %v2783
        %v2816 = vadd.f32 %v2720, %v2784
        %v2817 = vadd.f32 %v2721, %v2785
        %v2818 = vadd.f32 %v2722, %v2786
        %v2819 = vadd.f32 %v2723, %v2787
        %v2820 = vadd.f32 %v2724, %v2788
        %v2821 = vadd.f32 %v2725, %v2789
        %v2822 = vadd.f32 %v2726, %v2790
        %2823 = vadd.xlane.f32.xlu0 %v2791
        %v2824 = vpop.xlane.xlu0 %2823
        %2825 = vadd.xlane.f32.xlu0 %v2792
        %v2826 = vpop.xlane.xlu0 %2825
        %2827 = vadd.xlane.f32.xlu0 %v2793
        %v2828 = vpop.xlane.xlu0 %2827
        %2829 = vadd.xlane.f32.xlu0 %v2794
        %v2830 = vpop.xlane.xlu0 %2829
        %2831 = vadd.xlane.f32.xlu0 %v2795
        %v2832 = vpop.xlane.xlu0 %2831
        %2833 = vadd.xlane.f32.xlu0 %v2796
        %v2834 = vpop.xlane.xlu0 %2833
        %2835 = vadd.xlane.f32.xlu0 %v2797
        %v2836 = vpop.xlane.xlu0 %2835
        %2837 = vadd.xlane.f32.xlu0 %v2798
        %v2838 = vpop.xlane.xlu0 %2837
        %2839 = vadd.xlane.f32.xlu0 %v2799
        %v2840 = vpop.xlane.xlu0 %2839
        %2841 = vadd.xlane.f32.xlu0 %v2800
        %v2842 = vpop.xlane.xlu0 %2841
        %2843 = vadd.xlane.f32.xlu0 %v2801
        %v2844 = vpop.xlane.xlu0 %2843
        %2845 = vadd.xlane.f32.xlu0 %v2802
        %v2846 = vpop.xlane.xlu0 %2845
        %2847 = vadd.xlane.f32.xlu0 %v2803
        %v2848 = vpop.xlane.xlu0 %2847
        %2849 = vadd.xlane.f32.xlu0 %v2804
        %v2850 = vpop.xlane.xlu0 %2849
        %2851 = vadd.xlane.f32.xlu0 %v2805
        %v2852 = vpop.xlane.xlu0 %2851
        %2853 = vadd.xlane.f32.xlu0 %v2806
        %v2854 = vpop.xlane.xlu0 %2853
        %2855 = vadd.xlane.f32.xlu0 %v2807
        %v2856 = vpop.xlane.xlu0 %2855
        %2857 = vadd.xlane.f32.xlu0 %v2808
        %v2858 = vpop.xlane.xlu0 %2857
        %2859 = vadd.xlane.f32.xlu0 %v2809
        %v2860 = vpop.xlane.xlu0 %2859
        %2861 = vadd.xlane.f32.xlu0 %v2810
        %v2862 = vpop.xlane.xlu0 %2861
        %2863 = vadd.xlane.f32.xlu0 %v2811
        %v2864 = vpop.xlane.xlu0 %2863
        %2865 = vadd.xlane.f32.xlu0 %v2812
        %v2866 = vpop.xlane.xlu0 %2865
        %2867 = vadd.xlane.f32.xlu0 %v2813
        %v2868 = vpop.xlane.xlu0 %2867
        %2869 = vadd.xlane.f32.xlu0 %v2814
        %v2870 = vpop.xlane.xlu0 %2869
        %2871 = vadd.xlane.f32.xlu0 %v2815
        %v2872 = vpop.xlane.xlu0 %2871
        %2873 = vadd.xlane.f32.xlu0 %v2816
        %v2874 = vpop.xlane.xlu0 %2873
        %2875 = vadd.xlane.f32.xlu0 %v2817
        %v2876 = vpop.xlane.xlu0 %2875
        %2877 = vadd.xlane.f32.xlu0 %v2818
        %v2878 = vpop.xlane.xlu0 %2877
        %2879 = vadd.xlane.f32.xlu0 %v2819
        %v2880 = vpop.xlane.xlu0 %2879
        %2881 = vadd.xlane.f32.xlu0 %v2820
        %v2882 = vpop.xlane.xlu0 %2881
        %2883 = vadd.xlane.f32.xlu0 %v2821
        %v2884 = vpop.xlane.xlu0 %2883
        %2885 = vadd.xlane.f32.xlu0 %v2822
        %v2886 = vpop.xlane.xlu0 %2885
        %2887 = vset.pattern.permute.xlu0 7
        %2888 = vperm.xlu0 %2887, %v291
        %v2889 = vpop.permute.xlu0 %2888
        %2891 = vset.pattern.permute.xlu0 7
        %2892 = vperm.xlu0 %2891, %v292
        %v2893 = vpop.permute.xlu0 %2892
        %2895 = vset.pattern.permute.xlu0 7
        %2896 = vperm.xlu0 %2895, %v293
        %v2897 = vpop.permute.xlu0 %2896
        %2899 = vset.pattern.permute.xlu0 7
        %2900 = vperm.xlu0 %2899, %v294
        %v2901 = vpop.permute.xlu0 %2900
        %2903 = vset.pattern.permute.xlu0 7
        %2904 = vperm.xlu0 %2903, %v295
        %v2905 = vpop.permute.xlu0 %2904
        %2907 = vset.pattern.permute.xlu0 7
        %2908 = vperm.xlu0 %2907, %v296
        %v2909 = vpop.permute.xlu0 %2908
        %2911 = vset.pattern.permute.xlu0 7
        %2912 = vperm.xlu0 %2911, %v297
        %v2913 = vpop.permute.xlu0 %2912
        %2915 = vset.pattern.permute.xlu0 7
        %2916 = vperm.xlu0 %2915, %v298
        %v2917 = vpop.permute.xlu0 %2916
        %2919 = vset.pattern.permute.xlu0 7
        %2920 = vperm.xlu0 %2919, %v299
        %v2921 = vpop.permute.xlu0 %2920
        %2923 = vset.pattern.permute.xlu0 7
        %2924 = vperm.xlu0 %2923, %v300
        %v2925 = vpop.permute.xlu0 %2924
        %2927 = vset.pattern.permute.xlu0 7
        %2928 = vperm.xlu0 %2927, %v301
        %v2929 = vpop.permute.xlu0 %2928
        %2931 = vset.pattern.permute.xlu0 7
        %2932 = vperm.xlu0 %2931, %v302
        %v2933 = vpop.permute.xlu0 %2932
        %2935 = vset.pattern.permute.xlu0 7
        %2936 = vperm.xlu0 %2935, %v303
        %v2937 = vpop.permute.xlu0 %2936
        %2939 = vset.pattern.permute.xlu0 7
        %2940 = vperm.xlu0 %2939, %v304
        %v2941 = vpop.permute.xlu0 %2940
        %2943 = vset.pattern.permute.xlu0 7
        %2944 = vperm.xlu0 %2943, %v305
        %v2945 = vpop.permute.xlu0 %2944
        %2947 = vset.pattern.permute.xlu0 7
        %2948 = vperm.xlu0 %2947, %v306
        %v2949 = vpop.permute.xlu0 %2948
        %2951 = vset.pattern.permute.xlu0 7
        %2952 = vperm.xlu0 %2951, %v307
        %v2953 = vpop.permute.xlu0 %2952
        %2955 = vset.pattern.permute.xlu0 7
        %2956 = vperm.xlu0 %2955, %v308
        %v2957 = vpop.permute.xlu0 %2956
        %2959 = vset.pattern.permute.xlu0 7
        %2960 = vperm.xlu0 %2959, %v309
        %v2961 = vpop.permute.xlu0 %2960
        %2963 = vset.pattern.permute.xlu0 7
        %2964 = vperm.xlu0 %2963, %v310
        %v2965 = vpop.permute.xlu0 %2964
        %2967 = vset.pattern.permute.xlu0 7
        %2968 = vperm.xlu0 %2967, %v311
        %v2969 = vpop.permute.xlu0 %2968
        %2971 = vset.pattern.permute.xlu0 7
        %2972 = vperm.xlu0 %2971, %v312
        %v2973 = vpop.permute.xlu0 %2972
        %2975 = vset.pattern.permute.xlu0 7
        %2976 = vperm.xlu0 %2975, %v313
        %v2977 = vpop.permute.xlu0 %2976
        %2979 = vset.pattern.permute.xlu0 7
        %2980 = vperm.xlu0 %2979, %v314
        %v2981 = vpop.permute.xlu0 %2980
        %2983 = vset.pattern.permute.xlu0 7
        %2984 = vperm.xlu0 %2983, %v315
        %v2985 = vpop.permute.xlu0 %2984
        %2987 = vset.pattern.permute.xlu0 7
        %2988 = vperm.xlu0 %2987, %v316
        %v2989 = vpop.permute.xlu0 %2988
        %2991 = vset.pattern.permute.xlu0 7
        %2992 = vperm.xlu0 %2991, %v317
        %v2993 = vpop.permute.xlu0 %2992
        %2995 = vset.pattern.permute.xlu0 7
        %2996 = vperm.xlu0 %2995, %v318
        %v2997 = vpop.permute.xlu0 %2996
        %2999 = vset.pattern.permute.xlu0 7
        %3000 = vperm.xlu0 %2999, %v319
        %v3001 = vpop.permute.xlu0 %3000
        %3003 = vset.pattern.permute.xlu0 7
        %3004 = vperm.xlu0 %3003, %v320
        %v3005 = vpop.permute.xlu0 %3004
        %3007 = vset.pattern.permute.xlu0 7
        %3008 = vperm.xlu0 %3007, %v321
        %v3009 = vpop.permute.xlu0 %3008
        %3011 = vset.pattern.permute.xlu0 7
        %3012 = vperm.xlu0 %3011, %v322
        %v3013 = vpop.permute.xlu0 %3012
        %v3015 = vlaneseq
        %v3016 = vshrl.u32 %v3015, 7
        %v3017 = vsub.s32 7, %v3016
        %v3018 = vrot.slane %v323, %v3017
        %vm3019 = vcmp.gt.f32.partialorder %v2889, %v3018
        %vm3020 = vcmp.gt.f32.partialorder %v2893, %v3018
        %vm3021 = vcmp.gt.f32.partialorder %v2897, %v3018
        %vm3022 = vcmp.gt.f32.partialorder %v2901, %v3018
        %vm3023 = vcmp.gt.f32.partialorder %v2905, %v3018
        %vm3024 = vcmp.gt.f32.partialorder %v2909, %v3018
        %vm3025 = vcmp.gt.f32.partialorder %v2913, %v3018
        %vm3026 = vcmp.gt.f32.partialorder %v2917, %v3018
        %vm3027 = vcmp.gt.f32.partialorder %v2921, %v3018
        %vm3028 = vcmp.gt.f32.partialorder %v2925, %v3018
        %vm3029 = vcmp.gt.f32.partialorder %v2929, %v3018
        %vm3030 = vcmp.gt.f32.partialorder %v2933, %v3018
        %vm3031 = vcmp.gt.f32.partialorder %v2937, %v3018
        %vm3032 = vcmp.gt.f32.partialorder %v2941, %v3018
        %vm3033 = vcmp.gt.f32.partialorder %v2945, %v3018
        %vm3034 = vcmp.gt.f32.partialorder %v2949, %v3018
        %vm3035 = vcmp.gt.f32.partialorder %v2953, %v3018
        %vm3036 = vcmp.gt.f32.partialorder %v2957, %v3018
        %vm3037 = vcmp.gt.f32.partialorder %v2961, %v3018
        %vm3038 = vcmp.gt.f32.partialorder %v2965, %v3018
        %vm3039 = vcmp.gt.f32.partialorder %v2969, %v3018
        %vm3040 = vcmp.gt.f32.partialorder %v2973, %v3018
        %vm3041 = vcmp.gt.f32.partialorder %v2977, %v3018
        %vm3042 = vcmp.gt.f32.partialorder %v2981, %v3018
        %vm3043 = vcmp.gt.f32.partialorder %v2985, %v3018
        %vm3044 = vcmp.gt.f32.partialorder %v2989, %v3018
        %vm3045 = vcmp.gt.f32.partialorder %v2993, %v3018
        %vm3046 = vcmp.gt.f32.partialorder %v2997, %v3018
        %vm3047 = vcmp.gt.f32.partialorder %v3001, %v3018
        %vm3048 = vcmp.gt.f32.partialorder %v3005, %v3018
        %vm3049 = vcmp.gt.f32.partialorder %v3009, %v3018
        %vm3050 = vcmp.gt.f32.partialorder %v3013, %v3018
        %v3051 = vsel %vm3019, %v557, 0.0
        %v3052 = vsel %vm3020, %v557, 0.0
        %v3053 = vsel %vm3021, %v557, 0.0
        %v3054 = vsel %vm3022, %v557, 0.0
        %v3055 = vsel %vm3023, %v557, 0.0
        %v3056 = vsel %vm3024, %v557, 0.0
        %v3057 = vsel %vm3025, %v557, 0.0
        %v3058 = vsel %vm3026, %v557, 0.0
        %v3059 = vsel %vm3027, %v557, 0.0
        %v3060 = vsel %vm3028, %v557, 0.0
        %v3061 = vsel %vm3029, %v557, 0.0
        %v3062 = vsel %vm3030, %v557, 0.0
        %v3063 = vsel %vm3031, %v557, 0.0
        %v3064 = vsel %vm3032, %v557, 0.0
        %v3065 = vsel %vm3033, %v557, 0.0
        %v3066 = vsel %vm3034, %v557, 0.0
        %v3067 = vsel %vm3035, %v557, 0.0
        %v3068 = vsel %vm3036, %v557, 0.0
        %v3069 = vsel %vm3037, %v557, 0.0
        %v3070 = vsel %vm3038, %v557, 0.0
        %v3071 = vsel %vm3039, %v557, 0.0
        %v3072 = vsel %vm3040, %v557, 0.0
        %v3073 = vsel %vm3041, %v557, 0.0
        %v3074 = vsel %vm3042, %v557, 0.0
        %v3075 = vsel %vm3043, %v557, 0.0
        %v3076 = vsel %vm3044, %v557, 0.0
        %v3077 = vsel %vm3045, %v557, 0.0
        %v3078 = vsel %vm3046, %v557, 0.0
        %v3079 = vsel %vm3047, %v557, 0.0
        %v3080 = vsel %vm3048, %v557, 0.0
        %v3081 = vsel %vm3049, %v557, 0.0
        %v3082 = vsel %vm3050, %v557, 0.0
        %vm3083 = vcmp.ge.f32.partialorder %v2889, %v3018
        %vm3084 = vcmp.ge.f32.partialorder %v2893, %v3018
        %vm3085 = vcmp.ge.f32.partialorder %v2897, %v3018
        %vm3086 = vcmp.ge.f32.partialorder %v2901, %v3018
        %vm3087 = vcmp.ge.f32.partialorder %v2905, %v3018
        %vm3088 = vcmp.ge.f32.partialorder %v2909, %v3018
        %vm3089 = vcmp.ge.f32.partialorder %v2913, %v3018
        %vm3090 = vcmp.ge.f32.partialorder %v2917, %v3018
        %vm3091 = vcmp.ge.f32.partialorder %v2921, %v3018
        %vm3092 = vcmp.ge.f32.partialorder %v2925, %v3018
        %vm3093 = vcmp.ge.f32.partialorder %v2929, %v3018
        %vm3094 = vcmp.ge.f32.partialorder %v2933, %v3018
        %vm3095 = vcmp.ge.f32.partialorder %v2937, %v3018
        %vm3096 = vcmp.ge.f32.partialorder %v2941, %v3018
        %vm3097 = vcmp.ge.f32.partialorder %v2945, %v3018
        %vm3098 = vcmp.ge.f32.partialorder %v2949, %v3018
        %vm3099 = vcmp.ge.f32.partialorder %v2953, %v3018
        %vm3100 = vcmp.ge.f32.partialorder %v2957, %v3018
        %vm3101 = vcmp.ge.f32.partialorder %v2961, %v3018
        %vm3102 = vcmp.ge.f32.partialorder %v2965, %v3018
        %vm3103 = vcmp.ge.f32.partialorder %v2969, %v3018
        %vm3104 = vcmp.ge.f32.partialorder %v2973, %v3018
        %vm3105 = vcmp.ge.f32.partialorder %v2977, %v3018
        %vm3106 = vcmp.ge.f32.partialorder %v2981, %v3018
        %vm3107 = vcmp.ge.f32.partialorder %v2985, %v3018
        %vm3108 = vcmp.ge.f32.partialorder %v2989, %v3018
        %vm3109 = vcmp.ge.f32.partialorder %v2993, %v3018
        %vm3110 = vcmp.ge.f32.partialorder %v2997, %v3018
        %vm3111 = vcmp.ge.f32.partialorder %v3001, %v3018
        %vm3112 = vcmp.ge.f32.partialorder %v3005, %v3018
        %vm3113 = vcmp.ge.f32.partialorder %v3009, %v3018
        %vm3114 = vcmp.ge.f32.partialorder %v3013, %v3018
        %v3115 = vsel %vm3083, %v557, 0.0
        %v3116 = vsel %vm3084, %v557, 0.0
        %v3117 = vsel %vm3085, %v557, 0.0
        %v3118 = vsel %vm3086, %v557, 0.0
        %v3119 = vsel %vm3087, %v557, 0.0
        %v3120 = vsel %vm3088, %v557, 0.0
        %v3121 = vsel %vm3089, %v557, 0.0
        %v3122 = vsel %vm3090, %v557, 0.0
        %v3123 = vsel %vm3091, %v557, 0.0
        %v3124 = vsel %vm3092, %v557, 0.0
        %v3125 = vsel %vm3093, %v557, 0.0
        %v3126 = vsel %vm3094, %v557, 0.0
        %v3127 = vsel %vm3095, %v557, 0.0
        %v3128 = vsel %vm3096, %v557, 0.0
        %v3129 = vsel %vm3097, %v557, 0.0
        %v3130 = vsel %vm3098, %v557, 0.0
        %v3131 = vsel %vm3099, %v557, 0.0
        %v3132 = vsel %vm3100, %v557, 0.0
        %v3133 = vsel %vm3101, %v557, 0.0
        %v3134 = vsel %vm3102, %v557, 0.0
        %v3135 = vsel %vm3103, %v557, 0.0
        %v3136 = vsel %vm3104, %v557, 0.0
        %v3137 = vsel %vm3105, %v557, 0.0
        %v3138 = vsel %vm3106, %v557, 0.0
        %v3139 = vsel %vm3107, %v557, 0.0
        %v3140 = vsel %vm3108, %v557, 0.0
        %v3141 = vsel %vm3109, %v557, 0.0
        %v3142 = vsel %vm3110, %v557, 0.0
        %v3143 = vsel %vm3111, %v557, 0.0
        %v3144 = vsel %vm3112, %v557, 0.0
        %v3145 = vsel %vm3113, %v557, 0.0
        %v3146 = vsel %vm3114, %v557, 0.0
        %v3147 = vadd.f32 %v3051, %v3115
        %v3148 = vadd.f32 %v3052, %v3116
        %v3149 = vadd.f32 %v3053, %v3117
        %v3150 = vadd.f32 %v3054, %v3118
        %v3151 = vadd.f32 %v3055, %v3119
        %v3152 = vadd.f32 %v3056, %v3120
        %v3153 = vadd.f32 %v3057, %v3121
        %v3154 = vadd.f32 %v3058, %v3122
        %v3155 = vadd.f32 %v3059, %v3123
        %v3156 = vadd.f32 %v3060, %v3124
        %v3157 = vadd.f32 %v3061, %v3125
        %v3158 = vadd.f32 %v3062, %v3126
        %v3159 = vadd.f32 %v3063, %v3127
        %v3160 = vadd.f32 %v3064, %v3128
        %v3161 = vadd.f32 %v3065, %v3129
        %v3162 = vadd.f32 %v3066, %v3130
        %v3163 = vadd.f32 %v3067, %v3131
        %v3164 = vadd.f32 %v3068, %v3132
        %v3165 = vadd.f32 %v3069, %v3133
        %v3166 = vadd.f32 %v3070, %v3134
        %v3167 = vadd.f32 %v3071, %v3135
        %v3168 = vadd.f32 %v3072, %v3136
        %v3169 = vadd.f32 %v3073, %v3137
        %v3170 = vadd.f32 %v3074, %v3138
        %v3171 = vadd.f32 %v3075, %v3139
        %v3172 = vadd.f32 %v3076, %v3140
        %v3173 = vadd.f32 %v3077, %v3141
        %v3174 = vadd.f32 %v3078, %v3142
        %v3175 = vadd.f32 %v3079, %v3143
        %v3176 = vadd.f32 %v3080, %v3144
        %v3177 = vadd.f32 %v3081, %v3145
        %v3178 = vadd.f32 %v3082, %v3146
        %3179 = vadd.xlane.f32.xlu0 %v3147
        %v3180 = vpop.xlane.xlu0 %3179
        %3181 = vadd.xlane.f32.xlu0 %v3148
        %v3182 = vpop.xlane.xlu0 %3181
        %3183 = vadd.xlane.f32.xlu0 %v3149
        %v3184 = vpop.xlane.xlu0 %3183
        %3185 = vadd.xlane.f32.xlu0 %v3150
        %v3186 = vpop.xlane.xlu0 %3185
        %3187 = vadd.xlane.f32.xlu0 %v3151
        %v3188 = vpop.xlane.xlu0 %3187
        %3189 = vadd.xlane.f32.xlu0 %v3152
        %v3190 = vpop.xlane.xlu0 %3189
        %3191 = vadd.xlane.f32.xlu0 %v3153
        %v3192 = vpop.xlane.xlu0 %3191
        %3193 = vadd.xlane.f32.xlu0 %v3154
        %v3194 = vpop.xlane.xlu0 %3193
        %3195 = vadd.xlane.f32.xlu0 %v3155
        %v3196 = vpop.xlane.xlu0 %3195
        %3197 = vadd.xlane.f32.xlu0 %v3156
        %v3198 = vpop.xlane.xlu0 %3197
        %3199 = vadd.xlane.f32.xlu0 %v3157
        %v3200 = vpop.xlane.xlu0 %3199
        %3201 = vadd.xlane.f32.xlu0 %v3158
        %v3202 = vpop.xlane.xlu0 %3201
        %3203 = vadd.xlane.f32.xlu0 %v3159
        %v3204 = vpop.xlane.xlu0 %3203
        %3205 = vadd.xlane.f32.xlu0 %v3160
        %v3206 = vpop.xlane.xlu0 %3205
        %3207 = vadd.xlane.f32.xlu0 %v3161
        %v3208 = vpop.xlane.xlu0 %3207
        %3209 = vadd.xlane.f32.xlu0 %v3162
        %v3210 = vpop.xlane.xlu0 %3209
        %3211 = vadd.xlane.f32.xlu0 %v3163
        %v3212 = vpop.xlane.xlu0 %3211
        %3213 = vadd.xlane.f32.xlu0 %v3164
        %v3214 = vpop.xlane.xlu0 %3213
        %3215 = vadd.xlane.f32.xlu0 %v3165
        %v3216 = vpop.xlane.xlu0 %3215
        %3217 = vadd.xlane.f32.xlu0 %v3166
        %v3218 = vpop.xlane.xlu0 %3217
        %3219 = vadd.xlane.f32.xlu0 %v3167
        %v3220 = vpop.xlane.xlu0 %3219
        %3221 = vadd.xlane.f32.xlu0 %v3168
        %v3222 = vpop.xlane.xlu0 %3221
        %3223 = vadd.xlane.f32.xlu0 %v3169
        %v3224 = vpop.xlane.xlu0 %3223
        %3225 = vadd.xlane.f32.xlu0 %v3170
        %v3226 = vpop.xlane.xlu0 %3225
        %3227 = vadd.xlane.f32.xlu0 %v3171
        %v3228 = vpop.xlane.xlu0 %3227
        %3229 = vadd.xlane.f32.xlu0 %v3172
        %v3230 = vpop.xlane.xlu0 %3229
        %3231 = vadd.xlane.f32.xlu0 %v3173
        %v3232 = vpop.xlane.xlu0 %3231
        %3233 = vadd.xlane.f32.xlu0 %v3174
        %v3234 = vpop.xlane.xlu0 %3233
        %3235 = vadd.xlane.f32.xlu0 %v3175
        %v3236 = vpop.xlane.xlu0 %3235
        %3237 = vadd.xlane.f32.xlu0 %v3176
        %v3238 = vpop.xlane.xlu0 %3237
        %3239 = vadd.xlane.f32.xlu0 %v3177
        %v3240 = vpop.xlane.xlu0 %3239
        %3241 = vadd.xlane.f32.xlu0 %v3178
        %v3242 = vpop.xlane.xlu0 %3241
        %vm3243 = vcmask 7168
        %v3244 = vsel %vm3243, %v688, %v1044
        %v3245 = vsel %vm3243, %v690, %v1046
        %v3246 = vsel %vm3243, %v692, %v1048
        %v3247 = vsel %vm3243, %v694, %v1050
        %v3248 = vsel %vm3243, %v696, %v1052
        %v3249 = vsel %vm3243, %v698, %v1054
        %v3250 = vsel %vm3243, %v700, %v1056
        %v3251 = vsel %vm3243, %v702, %v1058
        %v3252 = vsel %vm3243, %v704, %v1060
        %v3253 = vsel %vm3243, %v706, %v1062
        %v3254 = vsel %vm3243, %v708, %v1064
        %v3255 = vsel %vm3243, %v710, %v1066
        %v3256 = vsel %vm3243, %v712, %v1068
        %v3257 = vsel %vm3243, %v714, %v1070
        %v3258 = vsel %vm3243, %v716, %v1072
        %v3259 = vsel %vm3243, %v718, %v1074
        %v3260 = vsel %vm3243, %v720, %v1076
        %v3261 = vsel %vm3243, %v722, %v1078
        %v3262 = vsel %vm3243, %v724, %v1080
        %v3263 = vsel %vm3243, %v726, %v1082
        %v3264 = vsel %vm3243, %v728, %v1084
        %v3265 = vsel %vm3243, %v730, %v1086
        %v3266 = vsel %vm3243, %v732, %v1088
        %v3267 = vsel %vm3243, %v734, %v1090
        %v3268 = vsel %vm3243, %v736, %v1092
        %v3269 = vsel %vm3243, %v738, %v1094
        %v3270 = vsel %vm3243, %v740, %v1096
        %v3271 = vsel %vm3243, %v742, %v1098
        %v3272 = vsel %vm3243, %v744, %v1100
        %v3273 = vsel %vm3243, %v746, %v1102
        %v3274 = vsel %vm3243, %v748, %v1104
        %v3275 = vsel %vm3243, %v750, %v1106
        %vm3276 = vcmask 15360
        %v3277 = vsel %vm3276, %v3244, %v1400
        %v3278 = vsel %vm3276, %v3245, %v1402
        %v3279 = vsel %vm3276, %v3246, %v1404
        %v3280 = vsel %vm3276, %v3247, %v1406
        %v3281 = vsel %vm3276, %v3248, %v1408
        %v3282 = vsel %vm3276, %v3249, %v1410
        %v3283 = vsel %vm3276, %v3250, %v1412
        %v3284 = vsel %vm3276, %v3251, %v1414
        %v3285 = vsel %vm3276, %v3252, %v1416
        %v3286 = vsel %vm3276, %v3253, %v1418
        %v3287 = vsel %vm3276, %v3254, %v1420
        %v3288 = vsel %vm3276, %v3255, %v1422
        %v3289 = vsel %vm3276, %v3256, %v1424
        %v3290 = vsel %vm3276, %v3257, %v1426
        %v3291 = vsel %vm3276, %v3258, %v1428
        %v3292 = vsel %vm3276, %v3259, %v1430
        %v3293 = vsel %vm3276, %v3260, %v1432
        %v3294 = vsel %vm3276, %v3261, %v1434
        %v3295 = vsel %vm3276, %v3262, %v1436
        %v3296 = vsel %vm3276, %v3263, %v1438
        %v3297 = vsel %vm3276, %v3264, %v1440
        %v3298 = vsel %vm3276, %v3265, %v1442
        %v3299 = vsel %vm3276, %v3266, %v1444
        %v3300 = vsel %vm3276, %v3267, %v1446
        %v3301 = vsel %vm3276, %v3268, %v1448
        %v3302 = vsel %vm3276, %v3269, %v1450
        %v3303 = vsel %vm3276, %v3270, %v1452
        %v3304 = vsel %vm3276, %v3271, %v1454
        %v3305 = vsel %vm3276, %v3272, %v1456
        %v3306 = vsel %vm3276, %v3273, %v1458
        %v3307 = vsel %vm3276, %v3274, %v1460
        %v3308 = vsel %vm3276, %v3275, %v1462
        %vm3309 = vcmask 23552
        %v3310 = vsel %vm3309, %v3277, %v1756
        %v3311 = vsel %vm3309, %v3278, %v1758
        %v3312 = vsel %vm3309, %v3279, %v1760
        %v3313 = vsel %vm3309, %v3280, %v1762
        %v3314 = vsel %vm3309, %v3281, %v1764
        %v3315 = vsel %vm3309, %v3282, %v1766
        %v3316 = vsel %vm3309, %v3283, %v1768
        %v3317 = vsel %vm3309, %v3284, %v1770
        %v3318 = vsel %vm3309, %v3285, %v1772
        %v3319 = vsel %vm3309, %v3286, %v1774
        %v3320 = vsel %vm3309, %v3287, %v1776
        %v3321 = vsel %vm3309, %v3288, %v1778
        %v3322 = vsel %vm3309, %v3289, %v1780
        %v3323 = vsel %vm3309, %v3290, %v1782
        %v3324 = vsel %vm3309, %v3291, %v1784
        %v3325 = vsel %vm3309, %v3292, %v1786
        %v3326 = vsel %vm3309, %v3293, %v1788
        %v3327 = vsel %vm3309, %v3294, %v1790
        %v3328 = vsel %vm3309, %v3295, %v1792
        %v3329 = vsel %vm3309, %v3296, %v1794
        %v3330 = vsel %vm3309, %v3297, %v1796
        %v3331 = vsel %vm3309, %v3298, %v1798
        %v3332 = vsel %vm3309, %v3299, %v1800
        %v3333 = vsel %vm3309, %v3300, %v1802
        %v3334 = vsel %vm3309, %v3301, %v1804
        %v3335 = vsel %vm3309, %v3302, %v1806
        %v3336 = vsel %vm3309, %v3303, %v1808
        %v3337 = vsel %vm3309, %v3304, %v1810
        %v3338 = vsel %vm3309, %v3305, %v1812
        %v3339 = vsel %vm3309, %v3306, %v1814
        %v3340 = vsel %vm3309, %v3307, %v1816
        %v3341 = vsel %vm3309, %v3308, %v1818
        %vm3342 = vcmask 31744
        %v3343 = vsel %vm3342, %v3310, %v2112
        %v3344 = vsel %vm3342, %v3311, %v2114
        %v3345 = vsel %vm3342, %v3312, %v2116
        %v3346 = vsel %vm3342, %v3313, %v2118
        %v3347 = vsel %vm3342, %v3314, %v2120
        %v3348 = vsel %vm3342, %v3315, %v2122
        %v3349 = vsel %vm3342, %v3316, %v2124
        %v3350 = vsel %vm3342, %v3317, %v2126
        %v3351 = vsel %vm3342, %v3318, %v2128
        %v3352 = vsel %vm3342, %v3319, %v2130
        %v3353 = vsel %vm3342, %v3320, %v2132
        %v3354 = vsel %vm3342, %v3321, %v2134
        %v3355 = vsel %vm3342, %v3322, %v2136
        %v3356 = vsel %vm3342, %v3323, %v2138
        %v3357 = vsel %vm3342, %v3324, %v2140
        %v3358 = vsel %vm3342, %v3325, %v2142
        %v3359 = vsel %vm3342, %v3326, %v2144
        %v3360 = vsel %vm3342, %v3327, %v2146
        %v3361 = vsel %vm3342, %v3328, %v2148
        %v3362 = vsel %vm3342, %v3329, %v2150
        %v3363 = vsel %vm3342, %v3330, %v2152
        %v3364 = vsel %vm3342, %v3331, %v2154
        %v3365 = vsel %vm3342, %v3332, %v2156
        %v3366 = vsel %vm3342, %v3333, %v2158
        %v3367 = vsel %vm3342, %v3334, %v2160
        %v3368 = vsel %vm3342, %v3335, %v2162
        %v3369 = vsel %vm3342, %v3336, %v2164
        %v3370 = vsel %vm3342, %v3337, %v2166
        %v3371 = vsel %vm3342, %v3338, %v2168
        %v3372 = vsel %vm3342, %v3339, %v2170
        %v3373 = vsel %vm3342, %v3340, %v2172
        %v3374 = vsel %vm3342, %v3341, %v2174
        %vm3375 = vcmask 39936
        %v3376 = vsel %vm3375, %v3343, %v2468
        %v3377 = vsel %vm3375, %v3344, %v2470
        %v3378 = vsel %vm3375, %v3345, %v2472
        %v3379 = vsel %vm3375, %v3346, %v2474
        %v3380 = vsel %vm3375, %v3347, %v2476
        %v3381 = vsel %vm3375, %v3348, %v2478
        %v3382 = vsel %vm3375, %v3349, %v2480
        %v3383 = vsel %vm3375, %v3350, %v2482
        %v3384 = vsel %vm3375, %v3351, %v2484
        %v3385 = vsel %vm3375, %v3352, %v2486
        %v3386 = vsel %vm3375, %v3353, %v2488
        %v3387 = vsel %vm3375, %v3354, %v2490
        %v3388 = vsel %vm3375, %v3355, %v2492
        %v3389 = vsel %vm3375, %v3356, %v2494
        %v3390 = vsel %vm3375, %v3357, %v2496
        %v3391 = vsel %vm3375, %v3358, %v2498
        %v3392 = vsel %vm3375, %v3359, %v2500
        %v3393 = vsel %vm3375, %v3360, %v2502
        %v3394 = vsel %vm3375, %v3361, %v2504
        %v3395 = vsel %vm3375, %v3362, %v2506
        %v3396 = vsel %vm3375, %v3363, %v2508
        %v3397 = vsel %vm3375, %v3364, %v2510
        %v3398 = vsel %vm3375, %v3365, %v2512
        %v3399 = vsel %vm3375, %v3366, %v2514
        %v3400 = vsel %vm3375, %v3367, %v2516
        %v3401 = vsel %vm3375, %v3368, %v2518
        %v3402 = vsel %vm3375, %v3369, %v2520
        %v3403 = vsel %vm3375, %v3370, %v2522
        %v3404 = vsel %vm3375, %v3371, %v2524
        %v3405 = vsel %vm3375, %v3372, %v2526
        %v3406 = vsel %vm3375, %v3373, %v2528
        %v3407 = vsel %vm3375, %v3374, %v2530
        %vm3408 = vcmask 48128
        %v3409 = vsel %vm3408, %v3376, %v2824
        %v3410 = vsel %vm3408, %v3377, %v2826
        %v3411 = vsel %vm3408, %v3378, %v2828
        %v3412 = vsel %vm3408, %v3379, %v2830
        %v3413 = vsel %vm3408, %v3380, %v2832
        %v3414 = vsel %vm3408, %v3381, %v2834
        %v3415 = vsel %vm3408, %v3382, %v2836
        %v3416 = vsel %vm3408, %v3383, %v2838
        %v3417 = vsel %vm3408, %v3384, %v2840
        %v3418 = vsel %vm3408, %v3385, %v2842
        %v3419 = vsel %vm3408, %v3386, %v2844
        %v3420 = vsel %vm3408, %v3387, %v2846
        %v3421 = vsel %vm3408, %v3388, %v2848
        %v3422 = vsel %vm3408, %v3389, %v2850
        %v3423 = vsel %vm3408, %v3390, %v2852
        %v3424 = vsel %vm3408, %v3391, %v2854
        %v3425 = vsel %vm3408, %v3392, %v2856
        %v3426 = vsel %vm3408, %v3393, %v2858
        %v3427 = vsel %vm3408, %v3394, %v2860
        %v3428 = vsel %vm3408, %v3395, %v2862
        %v3429 = vsel %vm3408, %v3396, %v2864
        %v3430 = vsel %vm3408, %v3397, %v2866
        %v3431 = vsel %vm3408, %v3398, %v2868
        %v3432 = vsel %vm3408, %v3399, %v2870
        %v3433 = vsel %vm3408, %v3400, %v2872
        %v3434 = vsel %vm3408, %v3401, %v2874
        %v3435 = vsel %vm3408, %v3402, %v2876
        %v3436 = vsel %vm3408, %v3403, %v2878
        %v3437 = vsel %vm3408, %v3404, %v2880
        %v3438 = vsel %vm3408, %v3405, %v2882
        %v3439 = vsel %vm3408, %v3406, %v2884
        %v3440 = vsel %vm3408, %v3407, %v2886
        %vm3441 = vcmask 56320
        %v3442 = vsel %vm3441, %v3409, %v3180
        %v3443 = vsel %vm3441, %v3410, %v3182
        %v3444 = vsel %vm3441, %v3411, %v3184
        %v3445 = vsel %vm3441, %v3412, %v3186
        %v3446 = vsel %vm3441, %v3413, %v3188
        %v3447 = vsel %vm3441, %v3414, %v3190
        %v3448 = vsel %vm3441, %v3415, %v3192
        %v3449 = vsel %vm3441, %v3416, %v3194
        %v3450 = vsel %vm3441, %v3417, %v3196
        %v3451 = vsel %vm3441, %v3418, %v3198
        %v3452 = vsel %vm3441, %v3419, %v3200
        %v3453 = vsel %vm3441, %v3420, %v3202
        %v3454 = vsel %vm3441, %v3421, %v3204
        %v3455 = vsel %vm3441, %v3422, %v3206
        %v3456 = vsel %vm3441, %v3423, %v3208
        %v3457 = vsel %vm3441, %v3424, %v3210
        %v3458 = vsel %vm3441, %v3425, %v3212
        %v3459 = vsel %vm3441, %v3426, %v3214
        %v3460 = vsel %vm3441, %v3427, %v3216
        %v3461 = vsel %vm3441, %v3428, %v3218
        %v3462 = vsel %vm3441, %v3429, %v3220
        %v3463 = vsel %vm3441, %v3430, %v3222
        %v3464 = vsel %vm3441, %v3431, %v3224
        %v3465 = vsel %vm3441, %v3432, %v3226
        %v3466 = vsel %vm3441, %v3433, %v3228
        %v3467 = vsel %vm3441, %v3434, %v3230
        %v3468 = vsel %vm3441, %v3435, %v3232
        %v3469 = vsel %vm3441, %v3436, %v3234
        %v3470 = vsel %vm3441, %v3437, %v3236
        %v3471 = vsel %vm3441, %v3438, %v3238
        %v3472 = vsel %vm3441, %v3439, %v3240
        %v3473 = vsel %vm3441, %v3440, %v3242
        %v3474 = vld [vmem:[#allocation2] sm:$0x1]
        %3476 = vset.pattern.permute.xlu0 0
        %3477 = vperm.xlu0 %3476, %v325
        %v3478 = vpop.permute.xlu0 %3477
        %3481 = vset.pattern.permute.xlu0 0
        %3482 = vperm.xlu0 %3481, %v326
        %v3483 = vpop.permute.xlu0 %3482
        %3486 = vset.pattern.permute.xlu0 0
        %3487 = vperm.xlu0 %3486, %v327
        %v3488 = vpop.permute.xlu0 %3487
        %3491 = vset.pattern.permute.xlu0 0
        %3492 = vperm.xlu0 %3491, %v328
        %v3493 = vpop.permute.xlu0 %3492
        %3496 = vset.pattern.permute.xlu0 0
        %3497 = vperm.xlu0 %3496, %v329
        %v3498 = vpop.permute.xlu0 %3497
        %3501 = vset.pattern.permute.xlu0 0
        %3502 = vperm.xlu0 %3501, %v330
        %v3503 = vpop.permute.xlu0 %3502
        %3506 = vset.pattern.permute.xlu0 0
        %3507 = vperm.xlu0 %3506, %v331
        %v3508 = vpop.permute.xlu0 %3507
        %3511 = vset.pattern.permute.xlu0 0
        %3512 = vperm.xlu0 %3511, %v332
        %v3513 = vpop.permute.xlu0 %3512
        %3516 = vset.pattern.permute.xlu0 0
        %3517 = vperm.xlu0 %3516, %v333
        %v3518 = vpop.permute.xlu0 %3517
        %3521 = vset.pattern.permute.xlu0 0
        %3522 = vperm.xlu0 %3521, %v334
        %v3523 = vpop.permute.xlu0 %3522
        %3526 = vset.pattern.permute.xlu0 0
        %3527 = vperm.xlu0 %3526, %v335
        %v3528 = vpop.permute.xlu0 %3527
        %3531 = vset.pattern.permute.xlu0 0
        %3532 = vperm.xlu0 %3531, %v336
        %v3533 = vpop.permute.xlu0 %3532
        %3536 = vset.pattern.permute.xlu0 0
        %3537 = vperm.xlu0 %3536, %v337
        %v3538 = vpop.permute.xlu0 %3537
        %3541 = vset.pattern.permute.xlu0 0
        %3542 = vperm.xlu0 %3541, %v338
        %v3543 = vpop.permute.xlu0 %3542
        %3546 = vset.pattern.permute.xlu0 0
        %3547 = vperm.xlu0 %3546, %v339
        %v3548 = vpop.permute.xlu0 %3547
        %3551 = vset.pattern.permute.xlu0 0
        %3552 = vperm.xlu0 %3551, %v340
        %v3553 = vpop.permute.xlu0 %3552
        %3556 = vset.pattern.permute.xlu0 0
        %3557 = vperm.xlu0 %3556, %v341
        %v3558 = vpop.permute.xlu0 %3557
        %3561 = vset.pattern.permute.xlu0 0
        %3562 = vperm.xlu0 %3561, %v342
        %v3563 = vpop.permute.xlu0 %3562
        %3566 = vset.pattern.permute.xlu0 0
        %3567 = vperm.xlu0 %3566, %v343
        %v3568 = vpop.permute.xlu0 %3567
        %3571 = vset.pattern.permute.xlu0 0
        %3572 = vperm.xlu0 %3571, %v344
        %v3573 = vpop.permute.xlu0 %3572
        %3576 = vset.pattern.permute.xlu0 0
        %3577 = vperm.xlu0 %3576, %v345
        %v3578 = vpop.permute.xlu0 %3577
        %3581 = vset.pattern.permute.xlu0 0
        %3582 = vperm.xlu0 %3581, %v346
        %v3583 = vpop.permute.xlu0 %3582
        %3586 = vset.pattern.permute.xlu0 0
        %3587 = vperm.xlu0 %3586, %v347
        %v3588 = vpop.permute.xlu0 %3587
        %3591 = vset.pattern.permute.xlu0 0
        %3592 = vperm.xlu0 %3591, %v348
        %v3593 = vpop.permute.xlu0 %3592
        %3596 = vset.pattern.permute.xlu0 0
        %3597 = vperm.xlu0 %3596, %v349
        %v3598 = vpop.permute.xlu0 %3597
        %3601 = vset.pattern.permute.xlu0 0
        %3602 = vperm.xlu0 %3601, %v350
        %v3603 = vpop.permute.xlu0 %3602
        %3606 = vset.pattern.permute.xlu0 0
        %3607 = vperm.xlu0 %3606, %v351
        %v3608 = vpop.permute.xlu0 %3607
        %3611 = vset.pattern.permute.xlu0 0
        %3612 = vperm.xlu0 %3611, %v352
        %v3613 = vpop.permute.xlu0 %3612
        %3616 = vset.pattern.permute.xlu0 0
        %3617 = vperm.xlu0 %3616, %v353
        %v3618 = vpop.permute.xlu0 %3617
        %3621 = vset.pattern.permute.xlu0 0
        %3622 = vperm.xlu0 %3621, %v354
        %v3623 = vpop.permute.xlu0 %3622
        %3626 = vset.pattern.permute.xlu0 0
        %3627 = vperm.xlu0 %3626, %v355
        %v3628 = vpop.permute.xlu0 %3627
        %3631 = vset.pattern.permute.xlu0 0
        %3632 = vperm.xlu0 %3631, %v356
        %v3633 = vpop.permute.xlu0 %3632
        %v3635 = vmul.f32 %v3442, %v3478
        %v3636 = vmul.f32 %v3443, %v3483
        %v3637 = vmul.f32 %v3444, %v3488
        %v3638 = vmul.f32 %v3445, %v3493
        %v3639 = vmul.f32 %v3446, %v3498
        %v3640 = vmul.f32 %v3447, %v3503
        %v3641 = vmul.f32 %v3448, %v3508
        %v3642 = vmul.f32 %v3449, %v3513
        %v3643 = vmul.f32 %v3450, %v3518
        %v3644 = vmul.f32 %v3451, %v3523
        %v3645 = vmul.f32 %v3452, %v3528
        %v3646 = vmul.f32 %v3453, %v3533
        %v3647 = vmul.f32 %v3454, %v3538
        %v3648 = vmul.f32 %v3455, %v3543
        %v3649 = vmul.f32 %v3456, %v3548
        %v3650 = vmul.f32 %v3457, %v3553
        %v3651 = vmul.f32 %v3458, %v3558
        %v3652 = vmul.f32 %v3459, %v3563
        %v3653 = vmul.f32 %v3460, %v3568
        %v3654 = vmul.f32 %v3461, %v3573
        %v3655 = vmul.f32 %v3462, %v3578
        %v3656 = vmul.f32 %v3463, %v3583
        %v3657 = vmul.f32 %v3464, %v3588
        %v3658 = vmul.f32 %v3465, %v3593
        %v3659 = vmul.f32 %v3466, %v3598
        %v3660 = vmul.f32 %v3467, %v3603
        %v3661 = vmul.f32 %v3468, %v3608
        %v3662 = vmul.f32 %v3469, %v3613
        %v3663 = vmul.f32 %v3470, %v3618
        %v3664 = vmul.f32 %v3471, %v3623
        %v3665 = vmul.f32 %v3472, %v3628
        %v3666 = vmul.f32 %v3473, %v3633
        %vm3667 = vcmask 64512
        %v3668 = vsel %vm3667, %v3635, 0.0
        %v3669 = vsel %vm3667, %v3636, 0.0
        %v3670 = vadd.f32 %v3668, %v3669
        %v3671 = vsel %vm3667, %v3637, 0.0
        %v3672 = vadd.f32 %v3670, %v3671
        %v3673 = vsel %vm3667, %v3638, 0.0
        %v3674 = vadd.f32 %v3672, %v3673
        %v3675 = vsel %vm3667, %v3639, 0.0
        %v3676 = vadd.f32 %v3674, %v3675
        %v3677 = vsel %vm3667, %v3640, 0.0
        %v3678 = vadd.f32 %v3676, %v3677
        %v3679 = vsel %vm3667, %v3641, 0.0
        %v3680 = vadd.f32 %v3678, %v3679
        %v3681 = vsel %vm3667, %v3642, 0.0
        %v3682 = vadd.f32 %v3680, %v3681
        %v3683 = vsel %vm3667, %v3643, 0.0
        %v3684 = vadd.f32 %v3682, %v3683
        %v3685 = vsel %vm3667, %v3644, 0.0
        %v3686 = vadd.f32 %v3684, %v3685
        %v3687 = vsel %vm3667, %v3645, 0.0
        %v3688 = vadd.f32 %v3686, %v3687
        %v3689 = vsel %vm3667, %v3646, 0.0
        %v3690 = vadd.f32 %v3688, %v3689
        %v3691 = vsel %vm3667, %v3647, 0.0
        %v3692 = vadd.f32 %v3690, %v3691
        %v3693 = vsel %vm3667, %v3648, 0.0
        %v3694 = vadd.f32 %v3692, %v3693
        %v3695 = vsel %vm3667, %v3649, 0.0
        %v3696 = vadd.f32 %v3694, %v3695
        %v3697 = vsel %vm3667, %v3650, 0.0
        %v3698 = vadd.f32 %v3696, %v3697
        %v3699 = vsel %vm3667, %v3651, 0.0
        %v3700 = vadd.f32 %v3698, %v3699
        %v3701 = vsel %vm3667, %v3652, 0.0
        %v3702 = vadd.f32 %v3700, %v3701
        %v3703 = vsel %vm3667, %v3653, 0.0
        %v3704 = vadd.f32 %v3702, %v3703
        %v3705 = vsel %vm3667, %v3654, 0.0
        %v3706 = vadd.f32 %v3704, %v3705
        %v3707 = vsel %vm3667, %v3655, 0.0
        %v3708 = vadd.f32 %v3706, %v3707
        %v3709 = vsel %vm3667, %v3656, 0.0
        %v3710 = vadd.f32 %v3708, %v3709
        %v3711 = vsel %vm3667, %v3657, 0.0
        %v3712 = vadd.f32 %v3710, %v3711
        %v3713 = vsel %vm3667, %v3658, 0.0
        %v3714 = vadd.f32 %v3712, %v3713
        %v3715 = vsel %vm3667, %v3659, 0.0
        %v3716 = vadd.f32 %v3714, %v3715
        %v3717 = vsel %vm3667, %v3660, 0.0
        %v3718 = vadd.f32 %v3716, %v3717
        %v3719 = vsel %vm3667, %v3661, 0.0
        %v3720 = vadd.f32 %v3718, %v3719
        %v3721 = vsel %vm3667, %v3662, 0.0
        %v3722 = vadd.f32 %v3720, %v3721
        %v3723 = vsel %vm3667, %v3663, 0.0
        %v3724 = vadd.f32 %v3722, %v3723
        %v3725 = vsel %vm3667, %v3664, 0.0
        %v3726 = vadd.f32 %v3724, %v3725
        %v3727 = vsel %vm3667, %v3665, 0.0
        %v3728 = vadd.f32 %v3726, %v3727
        %v3729 = vsel %vm3667, %v3666, 0.0
        %v3730 = vadd.f32 %v3728, %v3729
        %v3731 = vrot.slane %v3730, 4
        %v3732 = vadd.f32 %v3730, %v3731
        %v3733 = vrot.slane %v3732, 2
        %v3734 = vadd.f32 %v3732, %v3733
        %v3735 = vrot.slane %v3734, 1
        %v3736 = vadd.f32 %v3734, %v3735
        %v3737 = vadd.f32 %v3474, %v3736
        %vm3738 = vcmask 57344
        %3739 = vst.msk [vmem:[#allocation2] sm:$0x1] %vm3738, %v3737
        // Predicated region
        $region41: #{tpu_custom_call.1} parent=35 // pred_check
          _
        $region42: #{tpu_custom_call.1} parent=35 // pred_check_branch
          %3741 = sbr.rel (%p285) target = $region44
        $region43: #{tpu_custom_call.1} parent=35 // pred_region
          %v3742 = vld [vmem:[#allocation2] sm:$0x1]
          %3743 = vst.msk [vmem:[%s259] sm:$0x1] %vm3738, %v3742
        $region44: #{tpu_custom_call.1} parent=35 // pred_fallthru
          _
        %s3744 = sand.u32 %s153, 1
        %s3745 = scalar_lea.sflag [#allocation4], %s3744
        %s3746 = sand.u32 %s153, 1
        %s3747 = scalar_lea.vmem [#allocation3], %s3746
        // Predicated region
        $region45: #{tpu_custom_call.1} parent=35 // pred_check
          %p3748 = pneg %p163
        $region46: #{tpu_custom_call.1} parent=35 // pred_check_branch
          %3750 = sbr.rel (%p3748) target = $region48
        $region47: #{tpu_custom_call.1} parent=35 // pred_region
          %s3752 = ssub.s32 16, 16
          %3753 = vsyncadd %s3745, %s3752
          %s3754 = smul.addr %s23, 16
          %s3755 = scalar_lea.hbm %s4, %s3754
          %s3757 = sshll.u32 %s3747, 4
          %s3758 = int_to_ptr.vmem [resolvable:$true] %s3757
          %3760 = dma.vmem_to_hbm [thread:$0]  %s3758, 16, %s3755, %s3745
        $region48: #{tpu_custom_call.1} parent=35 // pred_fallthru
          _
      $region36: #{tpu_custom_call.1} parent=5 // pred_fallthru
        _
      %p3761 = scmp.le.s32.totalorder 2, %s13
      // Predicated region
      $region49: #{tpu_custom_call.1} parent=5 // pred_check
        %p3762 = pneg %p3761
      $region50: #{tpu_custom_call.1} parent=5 // pred_check_branch
        %3764 = sbr.rel (%p3762) target = $region52
      $region51: #{tpu_custom_call.1} parent=5 // pred_region
        %s3765 = ssub.s32 %s13, 2
        // Predicated region
        $region53: #{tpu_custom_call.1} parent=51 // pred_check
          %p3766 = pneg %p169
        $region54: #{tpu_custom_call.1} parent=51 // pred_check_branch
          %3768 = sbr.rel (%p3766) target = $region56
        $region55: #{tpu_custom_call.1} parent=51 // pred_region
          %s3769 = sand.u32 %s154, 1
          %s3770 = scalar_lea.sflag [#allocation4], %s3769
          %s3771 = sand.u32 %s154, 1
          %s3772 = scalar_lea.vmem [#allocation3], %s3771
          %3773 = dma.done %s3770, 16
        $region56: #{tpu_custom_call.1} parent=51 // pred_fallthru
          _
      $region52: #{tpu_custom_call.1} parent=5 // pred_fallthru
        _
    $region6: #{tpu_custom_call.1} parent=1 // loop_footer
      %s17 = sadd.s32 1, %s13
    $region7: #{tpu_custom_call.1} parent=1 // loop_footer_branch
      %12 = sbr.rel target = $region3
    $region8: #{tpu_custom_call.1} parent=1 // loop_exit
      _
    %3774 = vsyncpa [#allocation4], 1
    %s3775 = scalar_lea.sflag [#allocation4], 1
    %3776 = vsyncpa %s3775, 1

</llo_original>
